<compile_context>
chip_gen: v6e
topology: v6e:2x2x1
jax: 0.10.0
libtpu: 0.0.40
codegen_flags: <defaults>
</compile_context>

<pallas_src>
import functools

import jax
import jax.numpy as jnp
from jax.experimental import pallas as pl
from jax.experimental.pallas import tpu as pltpu


# ----------------------------------------------------------------------------
# Pallas kernel: fused bilinear warp for F packed frames x one TILE_N tile
# ----------------------------------------------------------------------------
def _warp_kernel(mat_ref, img_ref, out_ref, img_scr, whx_scr, *, H, W, F, TILE_N):
    """One grid step = F packed frames x one TILE_N-wide destination tile.

    mat_ref : VMEM (1, F, 8) f32 — per-frame inverse 2x3 matrix (row-major,
              dst px -> src px), padded to 8.
    img_ref : VMEM (1, F, H, W) float — F source frames (resident across the
              inner grid axis).
    out_ref : VMEM (1, F, TILE_N) f32 — frame f's destination pixels
              [j*TILE_N, (j+1)*TILE_N) on sublane f (lane-dense writeback).
    img_scr : VMEM (H, F*W) bf16 scratch — lane-packed, bf16-cast frames.
    whx_scr : VMEM (F*W, F*TILE_N) bf16 scratch — block-diagonal weighted
              one-hot (matmul RHS); off-diagonal blocks stay zero.
    """
    j = pl.program_id(1)

    # ---- once per frame group (new g => j == 0 runs first on its core) ----
    @pl.when(j == 0)
    def _init():
        # Off-block-diagonal entries stay zero forever; the diagonal
        # (W, TILE_N) blocks are fully rewritten every step below.
        whx_scr[...] = jnp.zeros_like(whx_scr)
        # Lane-pack the F frames (H, W) -> (H, F*W) and cast to bf16 in VMEM
        # (avoids a separate XLA transpose+cast pass over HBM in the wrapper).
        img_scr[...] = jnp.concatenate(
            [img_ref[0, f] for f in range(F)], axis=1).astype(jnp.bfloat16)

    # ---- destination pixel coords for this tile (shared by all frames) ----
    q = jax.lax.broadcasted_iota(jnp.int32, (1, TILE_N), 1) + j * TILE_N
    if (W & (W - 1)) == 0:  # power-of-two width: shift/and
        shift = W.bit_length() - 1
        yi = jax.lax.shift_right_logical(q, shift)
        xi = jax.lax.bitwise_and(q, W - 1)
    else:
        # No HW integer divide: f32 reciprocal + one-step correction
        # (exact while H*W stays well inside f32's 24-bit integer range).
        yi = jnp.floor(q.astype(jnp.float32) * jnp.float32(1.0 / W)).astype(jnp.int32)
        xi = q - yi * W
        up = (xi >= W).astype(jnp.int32)
        dn = (xi < 0).astype(jnp.int32)
        yi = yi + up - dn
        xi = xi - W * up + W * dn
    xf = xi.astype(jnp.float32)  # (1, TILE_N)
    yf = yi.astype(jnp.float32)

    # ---- sublane-vectorized inverse-affine source coords: (F, TILE_N) ----
    m = mat_ref[0]                                         # (F, 8) f32
    sx = m[:, 0:1] * xf + m[:, 1:2] * yf + m[:, 2:3]       # (F,1)*(1,T)->(F,T)
    sy = m[:, 3:4] * xf + m[:, 4:5] * yf + m[:, 5:6]
    x0f = jnp.floor(sx)
    y0f = jnp.floor(sy)
    fx = sx - x0f
    fy = sy - y0f
    x0 = x0f.astype(jnp.int32)
    y0 = y0f.astype(jnp.int32)
    # zeros padding: out-of-range x0/y0 simply never match the iota compares
    # below, so out-of-bounds corners contribute 0 (grid_sample 'zeros').

    # ---- horizontal lerp: per-frame (W, TILE_N) weighted one-hot written into
    # the block-diagonal scratch at static offsets, then ONE bf16 MXU matmul.
    ciota = jax.lax.broadcasted_iota(jnp.int32, (W, TILE_N), 0)
    for f in range(F):  # static & small
        dx = ciota - x0[f:f + 1, :]
        blk = jnp.where(dx == 0, 1.0 - fx[f:f + 1, :],
                        jnp.where(dx == 1, fx[f:f + 1, :], 0.0))
        whx_scr[f * W:(f + 1) * W, f * TILE_N:(f + 1) * TILE_N] = (
            blk.astype(jnp.bfloat16))

    hcols = jnp.dot(img_scr[...], whx_scr[...],
                    preferred_element_type=jnp.float32)    # (H, F*TILE_N) f32

    # ---- vertical lerp: per-frame weighted row mask (f32, nested select)
    # + sublane reduction; each frame lands on its own output sublane.
    riota = jax.lax.broadcasted_iota(jnp.int32, (H, TILE_N), 0)
    for f in range(F):
        dy = riota - y0[f:f + 1, :]
        wy = jnp.where(dy == 0, 1.0 - fy[f:f + 1, :],
                       jnp.where(dy == 1, fy[f:f + 1, :], 0.0))
        hc = hcols[:, f * TILE_N:(f + 1) * TILE_N]
        out_ref[0, f, :] = jnp.sum(hc * wy, axis=0)


# ----------------------------------------------------------------------------
# Wrapper: frame packing + destination tiling + pallas_call
# ----------------------------------------------------------------------------
def _choose_frame_pack(BT, W, target_k=256):
    """Largest divisor F of BT with F*W <= target_k (fills the MXU K dim),
    capped so that G = BT // F >= 2 frame groups remain (v7x has 2 TCs).
    target_k=256 suits v6e/v7x; v5e's 128-deep MXU simply takes two passes."""
    f_cap = max(1, min(BT, target_k // max(W, 1)))
    if BT >= 2:
        f_cap = min(f_cap, BT // 2)
    for f in range(f_cap, 0, -1):
        if BT % f == 0:
            return f
    return 1


def _choose_tile_n(N, F, max_lanes=4096):
    """Destination tile: full N if it fits, else the largest 128-aligned
    divisor of N with F*TILE_N <= max_lanes (keeps BlockSpec last-dim legal
    and frame lane-offsets aligned)."""
    cap = max(1, max_lanes // F)
    if N <= cap:
        return N
    aligned = [t for t in range(128, cap + 1, 128) if N % t == 0]
    if aligned:
        return aligned[-1]
    return N  # fallback: single (possibly large) tile; last dim == N is legal


def warp_affine_pallas(frames, minv):
    """frames: (B, T, H, W) float; minv: (B, T, 2, 3) f32 (dst px -> src px)."""
    B, T, H, W = frames.shape
    BT = B * T
    N = H * W

    F = _choose_frame_pack(BT, W)          # frames packed per MXU contraction
    G = BT // F                            # frame groups ("parallel" grid axis)
    KF = F * W
    TILE_N = _choose_tile_n(N, F)
    NT = N // TILE_N
    L = F * TILE_N

    # Free (copy-less) views; the lane packing + bf16 cast happen in-kernel.
    frames4 = frames.reshape(G, F, H, W)
    mats = jnp.zeros((G, F, 8), jnp.float32)
    mats = mats.at[:, :, :6].set(minv.reshape(G, F, 6).astype(jnp.float32))

    kernel = functools.partial(_warp_kernel, H=H, W=W, F=F, TILE_N=TILE_N)

    cost = pl.CostEstimate(
        flops=int(2 * H * KF * L * G * NT),
        transcendentals=0,
        bytes_accessed=int(frames.size * frames.dtype.itemsize
                           + G * F * N * 4 + mats.size * 4),
    )

    out = pl.pallas_call(
        kernel,
        out_shape=jax.ShapeDtypeStruct((G, F, N), jnp.float32),
        grid_spec=pltpu.PrefetchScalarGridSpec(
            num_scalar_prefetch=0,
            grid=(G, NT),
            in_specs=[
                pl.BlockSpec((1, F, 8), lambda g, j: (g, 0, 0)),
                pl.BlockSpec((1, F, H, W), lambda g, j: (g, 0, 0, 0)),
            ],
            out_specs=pl.BlockSpec((1, F, TILE_N), lambda g, j: (g, 0, j)),
            scratch_shapes=[
                pltpu.VMEM((H, KF), jnp.bfloat16),    # lane-packed bf16 frames
                pltpu.VMEM((KF, L), jnp.bfloat16),    # block-diagonal one-hot
            ],
        ),
        compiler_params=pltpu.CompilerParams(
            dimension_semantics=("parallel", "arbitrary")),
        cost_estimate=cost,
    )(mats, frames4)

    # (G, F, N) -> (B, T, H, W): contiguous reshape, no transpose / copy.
    return out.reshape(B, T, H, W).astype(frames.dtype)


# ----------------------------------------------------------------------------
# Plain-JAX glue: deterministic AffineGenerator + tensor_linspace +
# get_affine_matrix2d, then 3x3 inverse -> 2x3 (dst px -> src px)
# ----------------------------------------------------------------------------
def generate_affine_params(key, B, T, H, W, degrees, translate, scale_range):
    keys = jax.random.split(key, B)

    def per_batch(k):
        k1, k2, k3, k4 = jax.random.split(k, 4)
        # Two endpoint samples (start / end of the camera move), as in
        # AffineGenerator((2, 1, H, W)).
        ang_ep = jax.random.uniform(k1, (2,), minval=degrees[0], maxval=degrees[1])
        max_dx = translate[0] * W
        max_dy = translate[1] * H
        tx_ep = jax.random.uniform(k2, (2,), minval=-max_dx, maxval=max_dx)
        ty_ep = jax.random.uniform(k3, (2,), minval=-max_dy, maxval=max_dy)
        sc_ep = jax.random.uniform(k4, (2,), minval=scale_range[0], maxval=scale_range[1])

        # tensor_linspace: out = linspace(1,0)*start + linspace(0,1)*end
        w_start = jnp.linspace(1.0, 0.0, T)
        w_end = jnp.linspace(0.0, 1.0, T)

        def lin(ep):
            return w_start * ep[0] + w_end * ep[1]

        angle = lin(ang_ep)   # (T,)
        tx = lin(tx_ep)
        ty = lin(ty_ep)
        sc = lin(sc_ep)

        cx = W / 2.0 - 0.5
        cy = H / 2.0 - 0.5

        # kornia get_affine_matrix2d: rotation about center by -angle, scale sc,
        # then add translations.
        a = -jnp.deg2rad(angle)
        cos = jnp.cos(a)
        sin = jnp.sin(a)
        A00 = sc * cos
        A01 = sc * sin
        A10 = -sc * sin
        A11 = sc * cos
        t0 = cx - (A00 * cx + A01 * cy) + tx
        t1 = cy - (A10 * cx + A11 * cy) + ty

        # warp_affine samples src at M^{-1} @ dst  (align_corners=True).
        det = A00 * A11 - A01 * A10
        i00 = A11 / det
        i01 = -A01 / det
        i10 = -A10 / det
        i11 = A00 / det
        it0 = -(i00 * t0 + i01 * t1)
        it1 = -(i10 * t0 + i11 * t1)

        minv = jnp.stack(
            [jnp.stack([i00, i01, it0], axis=-1),
             jnp.stack([i10, i11, it1], axis=-1)], axis=-2)  # (T, 2, 3)
        return minv

    return jax.vmap(per_batch)(keys)  # (B, T, 2, 3)


def random_camera_move(frames, key, *, degrees=(-10.0, 10.0),
                       translate=(0.1, 0.1), scale=(0.9, 1.1), p=1.0):
    B, T, H, W = frames.shape
    k_param, k_apply = jax.random.split(key)
    minv = generate_affine_params(k_param, B, T, H, W, degrees, translate, scale)
    warped = warp_affine_pallas(frames, minv)
    # per-batch gate (random.random() > p -> keep original); p=1.0 -> always warp
    apply = jax.random.uniform(k_apply, (B,)) <= p
    out = jnp.where(apply[:, None, None, None], warped, frames)
    return out, minv


# ----------------------------------------------------------------------------
# Pure-JAX reference (same math, gather-based) for a sanity check
# ----------------------------------------------------------------------------
def reference_warp(frames, minv):
    B, T, H, W = frames.shape
    ys, xs = jnp.meshgrid(jnp.arange(H, dtype=jnp.float32),
                          jnp.arange(W, dtype=jnp.float32), indexing="ij")

    def warp_one(img, m):
        sx = m[0, 0] * xs + m[0, 1] * ys + m[0, 2]
        sy = m[1, 0] * xs + m[1, 1] * ys + m[1, 2]
        x0 = jnp.floor(sx)
        y0 = jnp.floor(sy)
        fx = sx - x0
        fy = sy - y0
        x0i = x0.astype(jnp.int32)
        y0i = y0.astype(jnp.int32)

        def samp(yc, xc):
            inb = (yc >= 0) & (yc < H) & (xc >= 0) & (xc < W)
            v = img[jnp.clip(yc, 0, H - 1), jnp.clip(xc, 0, W - 1)]
            return jnp.where(inb, v, 0.0)

        return ((1 - fx) * (1 - fy) * samp(y0i, x0i)
                + fx * (1 - fy) * samp(y0i, x0i + 1)
                + (1 - fx) * fy * samp(y0i + 1, x0i)
                + fx * fy * samp(y0i + 1, x0i + 1))

    return jax.vmap(jax.vmap(warp_one))(frames, minv)


if __name__ == "__main__":
    key = jax.random.PRNGKey(0)
    k_data, k_aug, k_data2, k_aug2 = jax.random.split(key, 4)

    # Test 1: module-typical small shape (batch, num_frames, height, width),
    # power-of-two width -> F=8 frames packed into the MXU K dim, G=2 groups.
    B, T, H, W = 2, 8, 16, 16
    frames = jax.random.uniform(k_data, (B, T, H, W), dtype=jnp.float32)
    out, minv = random_camera_move(frames, k_aug,
                                   degrees=(-10.0, 10.0),
                                   translate=(0.1, 0.1),
                                   scale=(0.9, 1.1),
                                   p=1.0)
    out = jax.block_until_ready(out)
    assert out.shape == frames.shape and out.dtype == frames.dtype
    ref = reference_warp(frames, minv)
    max_err = float(jnp.max(jnp.abs(out - ref)))
    assert max_err < 1e-2, f"mismatch vs reference (pow2): {max_err}"

    # Test 2: non-power-of-two width (exercises the reciprocal division path
    # and F=2 frame packing with lane-aligned tiles).
    B2, T2, H2, W2 = 1, 4, 16, 48
    frames2 = jax.random.uniform(k_data2, (B2, T2, H2, W2), dtype=jnp.float32)
    out2, minv2 = random_camera_move(frames2, k_aug2, p=1.0)
    out2 = jax.block_until_ready(out2)
    assert out2.shape == frames2.shape and out2.dtype == frames2.dtype
    ref2 = reference_warp(frames2, minv2)
    max_err2 = float(jnp.max(jnp.abs(out2 - ref2)))
    assert max_err2 < 1e-2, f"mismatch vs reference (non-pow2): {max_err2}"

    print("KERNEL_OK")
</pallas_src>

<mosaic_0001>
module attributes {stable_mosaic.version = 11 : i64} {
  func.func @_warp_kernel(%arg0: i32, %arg1: i32, %arg2: memref<1x8x8xf32, #tpu.memory_space<vmem>>, %arg3: memref<1x8x16x16xf32, #tpu.memory_space<vmem>>, %arg4: memref<1x8x256xf32, #tpu.memory_space<vmem>>, %arg5: memref<16x128xbf16, #tpu.memory_space<vmem>>, %arg6: memref<128x2048xbf16, #tpu.memory_space<vmem>>) attributes {dimension_semantics = [#tpu.dimension_semantics<parallel>, #tpu.dimension_semantics<arbitrary>], iteration_bounds = array<i64: 2, 1>, scalar_prefetch = 0 : i64, scratch_operands = 2 : i64, tpu.core_type = #tpu.core_type<tc>, window_params = [{transform_indices = @transform_0, window_bounds = array<i64: 1, 8, 8>}, {transform_indices = @transform_1, window_bounds = array<i64: 1, 8, 16, 16>}, {transform_indices = @transform_2, window_bounds = array<i64: 1, 8, 256>}]} {
    %c0_i32 = arith.constant 0 : i32
    %0 = arith.cmpi eq, %arg1, %c0_i32 : i32
    %1 = arith.extui %0 : i1 to i32
    %c0_i32_0 = arith.constant 0 : i32
    %2 = arith.cmpi ne, %1, %c0_i32_0 : i32
    scf.if %2 {
      %cst_97 = arith.constant 0.000000e+00 : bf16
      %402 = vector.broadcast %cst_97 : bf16 to vector<128x2048xbf16>
      %c0_98 = arith.constant 0 : index
      %c0_99 = arith.constant 0 : index
      %403 = vector.load %arg6[%c0_98, %c0_99] : memref<128x2048xbf16, #tpu.memory_space<vmem>>, vector<128x2048xbf16>
      tpu.vector_store %arg6[%c0_98, %c0_99], %402 {strides = array<i32>} : memref<128x2048xbf16, #tpu.memory_space<vmem>>, vector<128x2048xbf16>,
      %c0_100 = arith.constant 0 : index
      %c0_101 = arith.constant 0 : index
      %c0_102 = arith.constant 0 : index
      %c0_103 = arith.constant 0 : index
      %404 = vector.load %arg3[%c0_100, %c0_101, %c0_102, %c0_103] : memref<1x8x16x16xf32, #tpu.memory_space<vmem>>, vector<1x1x16x16xf32>
      %405 = vector.shape_cast %404 : vector<1x1x16x16xf32> to vector<16x16xf32>
      %c0_104 = arith.constant 0 : index
      %c1_105 = arith.constant 1 : index
      %c0_106 = arith.constant 0 : index
      %c0_107 = arith.constant 0 : index
      %406 = vector.load %arg3[%c0_104, %c1_105, %c0_106, %c0_107] : memref<1x8x16x16xf32, #tpu.memory_space<vmem>>, vector<1x1x16x16xf32>
      %407 = vector.shape_cast %406 : vector<1x1x16x16xf32> to vector<16x16xf32>
      %c0_108 = arith.constant 0 : index
      %c2_109 = arith.constant 2 : index
      %c0_110 = arith.constant 0 : index
      %c0_111 = arith.constant 0 : index
      %408 = vector.load %arg3[%c0_108, %c2_109, %c0_110, %c0_111] : memref<1x8x16x16xf32, #tpu.memory_space<vmem>>, vector<1x1x16x16xf32>
      %409 = vector.shape_cast %408 : vector<1x1x16x16xf32> to vector<16x16xf32>
      %c0_112 = arith.constant 0 : index
      %c3_113 = arith.constant 3 : index
      %c0_114 = arith.constant 0 : index
      %c0_115 = arith.constant 0 : index
      %410 = vector.load %arg3[%c0_112, %c3_113, %c0_114, %c0_115] : memref<1x8x16x16xf32, #tpu.memory_space<vmem>>, vector<1x1x16x16xf32>
      %411 = vector.shape_cast %410 : vector<1x1x16x16xf32> to vector<16x16xf32>
      %c0_116 = arith.constant 0 : index
      %c4_117 = arith.constant 4 : index
      %c0_118 = arith.constant 0 : index
      %c0_119 = arith.constant 0 : index
      %412 = vector.load %arg3[%c0_116, %c4_117, %c0_118, %c0_119] : memref<1x8x16x16xf32, #tpu.memory_space<vmem>>, vector<1x1x16x16xf32>
      %413 = vector.shape_cast %412 : vector<1x1x16x16xf32> to vector<16x16xf32>
      %c0_120 = arith.constant 0 : index
      %c5_121 = arith.constant 5 : index
      %c0_122 = arith.constant 0 : index
      %c0_123 = arith.constant 0 : index
      %414 = vector.load %arg3[%c0_120, %c5_121, %c0_122, %c0_123] : memref<1x8x16x16xf32, #tpu.memory_space<vmem>>, vector<1x1x16x16xf32>
      %415 = vector.shape_cast %414 : vector<1x1x16x16xf32> to vector<16x16xf32>
      %c0_124 = arith.constant 0 : index
      %c6_125 = arith.constant 6 : index
      %c0_126 = arith.constant 0 : index
      %c0_127 = arith.constant 0 : index
      %416 = vector.load %arg3[%c0_124, %c6_125, %c0_126, %c0_127] : memref<1x8x16x16xf32, #tpu.memory_space<vmem>>, vector<1x1x16x16xf32>
      %417 = vector.shape_cast %416 : vector<1x1x16x16xf32> to vector<16x16xf32>
      %c0_128 = arith.constant 0 : index
      %c7_129 = arith.constant 7 : index
      %c0_130 = arith.constant 0 : index
      %c0_131 = arith.constant 0 : index
      %418 = vector.load %arg3[%c0_128, %c7_129, %c0_130, %c0_131] : memref<1x8x16x16xf32, #tpu.memory_space<vmem>>, vector<1x1x16x16xf32>
      %419 = vector.shape_cast %418 : vector<1x1x16x16xf32> to vector<16x16xf32>
      %420 = tpu.concatenate %405, %407, %409, %411, %413, %415, %417, %419 in 1 : vector<16x16xf32>, vector<16x16xf32>, vector<16x16xf32>, vector<16x16xf32>, vector<16x16xf32>, vector<16x16xf32>, vector<16x16xf32>, vector<16x16xf32> -> vector<16x128xf32>
      %421 = arith.truncf %420 : vector<16x128xf32> to vector<16x128xbf16>
      %c0_132 = arith.constant 0 : index
      %c0_133 = arith.constant 0 : index
      %422 = vector.load %arg5[%c0_132, %c0_133] : memref<16x128xbf16, #tpu.memory_space<vmem>>, vector<16x128xbf16>
      tpu.vector_store %arg5[%c0_132, %c0_133], %421 {strides = array<i32>} : memref<16x128xbf16, #tpu.memory_space<vmem>>, vector<16x128xbf16>,
    } else {
    }
    %3 = tpu.iota {dimensions = array<i32: 1>} : vector<1x256xi32>
    %c256_i32 = arith.constant 256 : i32
    %4 = arith.muli %arg1, %c256_i32 : i32
    %5 = vector.broadcast %4 : i32 to vector<1x256xi32>
    %6 = arith.addi %3, %5 : vector<1x256xi32>
    %c4_i32 = arith.constant 4 : i32
    %7 = vector.broadcast %c4_i32 : i32 to vector<1x256xi32>
    %8 = arith.shrui %6, %7 : vector<1x256xi32>
    %c15_i32 = arith.constant 15 : i32
    %9 = vector.broadcast %c15_i32 : i32 to vector<1x256xi32>
    %10 = arith.andi %6, %9 : vector<1x256xi32>
    %11 = arith.sitofp %10 : vector<1x256xi32> to vector<1x256xf32>
    %12 = arith.sitofp %8 : vector<1x256xi32> to vector<1x256xf32>
    %c0 = arith.constant 0 : index
    %c0_1 = arith.constant 0 : index
    %c0_2 = arith.constant 0 : index
    %13 = vector.load %arg2[%c0, %c0_1, %c0_2] : memref<1x8x8xf32, #tpu.memory_space<vmem>>, vector<1x8x8xf32>
    %14 = vector.shape_cast %13 : vector<1x8x8xf32> to vector<8x8xf32>
    %15 = vector.extract_strided_slice %14 {offsets = [0, 0], sizes = [8, 1], strides = [1, 1]} : vector<8x8xf32> to vector<8x1xf32>
    %16 = vector.broadcast %15 : vector<8x1xf32> to vector<8x256xf32>
    %17 = vector.broadcast %11 : vector<1x256xf32> to vector<8x256xf32>
    %18 = arith.mulf %16, %17 : vector<8x256xf32>
    %19 = vector.extract_strided_slice %14 {offsets = [0, 1], sizes = [8, 1], strides = [1, 1]} : vector<8x8xf32> to vector<8x1xf32>
    %20 = vector.broadcast %19 : vector<8x1xf32> to vector<8x256xf32>
    %21 = vector.broadcast %12 : vector<1x256xf32> to vector<8x256xf32>
    %22 = arith.mulf %20, %21 : vector<8x256xf32>
    %23 = arith.addf %18, %22 : vector<8x256xf32>
    %24 = vector.extract_strided_slice %14 {offsets = [0, 2], sizes = [8, 1], strides = [1, 1]} : vector<8x8xf32> to vector<8x1xf32>
    %25 = vector.broadcast %24 : vector<8x1xf32> to vector<8x256xf32>
    %26 = arith.addf %23, %25 : vector<8x256xf32>
    %27 = vector.extract_strided_slice %14 {offsets = [0, 3], sizes = [8, 1], strides = [1, 1]} : vector<8x8xf32> to vector<8x1xf32>
    %28 = vector.broadcast %27 : vector<8x1xf32> to vector<8x256xf32>
    %29 = vector.broadcast %11 : vector<1x256xf32> to vector<8x256xf32>
    %30 = arith.mulf %28, %29 : vector<8x256xf32>
    %31 = vector.extract_strided_slice %14 {offsets = [0, 4], sizes = [8, 1], strides = [1, 1]} : vector<8x8xf32> to vector<8x1xf32>
    %32 = vector.broadcast %31 : vector<8x1xf32> to vector<8x256xf32>
    %33 = vector.broadcast %12 : vector<1x256xf32> to vector<8x256xf32>
    %34 = arith.mulf %32, %33 : vector<8x256xf32>
    %35 = arith.addf %30, %34 : vector<8x256xf32>
    %36 = vector.extract_strided_slice %14 {offsets = [0, 5], sizes = [8, 1], strides = [1, 1]} : vector<8x8xf32> to vector<8x1xf32>
    %37 = vector.broadcast %36 : vector<8x1xf32> to vector<8x256xf32>
    %38 = arith.addf %35, %37 : vector<8x256xf32>
    %39 = math.floor %26 : vector<8x256xf32>
    %40 = math.floor %38 : vector<8x256xf32>
    %41 = arith.subf %26, %39 : vector<8x256xf32>
    %42 = arith.subf %38, %40 : vector<8x256xf32>
    %43 = arith.fptosi %39 : vector<8x256xf32> to vector<8x256xi32>
    %44 = arith.fptosi %40 : vector<8x256xf32> to vector<8x256xi32>
    %45 = tpu.iota {dimensions = array<i32: 0>} : vector<16x256xi32>
    %46 = vector.extract_strided_slice %43 {offsets = [0, 0], sizes = [1, 256], strides = [1, 1]} : vector<8x256xi32> to vector<1x256xi32>
    %47 = vector.broadcast %46 : vector<1x256xi32> to vector<16x256xi32>
    %48 = arith.subi %45, %47 : vector<16x256xi32>
    %c0_i32_3 = arith.constant 0 : i32
    %49 = vector.broadcast %c0_i32_3 : i32 to vector<16x256xi32>
    %50 = arith.cmpi eq, %48, %49 : vector<16x256xi32>
    %51 = vector.extract_strided_slice %41 {offsets = [0, 0], sizes = [1, 256], strides = [1, 1]} : vector<8x256xf32> to vector<1x256xf32>
    %cst = arith.constant 1.000000e+00 : f32
    %52 = vector.broadcast %cst : f32 to vector<1x256xf32>
    %53 = arith.subf %52, %51 : vector<1x256xf32>
    %c1_i32 = arith.constant 1 : i32
    %54 = vector.broadcast %c1_i32 : i32 to vector<16x256xi32>
    %55 = arith.cmpi eq, %48, %54 : vector<16x256xi32>
    %56 = vector.extract_strided_slice %41 {offsets = [0, 0], sizes = [1, 256], strides = [1, 1]} : vector<8x256xf32> to vector<1x256xf32>
    %cst_4 = arith.constant 0.000000e+00 : f32
    %57 = vector.shape_cast %56 : vector<1x256xf32> to vector<1x256xf32>
    %58 = vector.broadcast %57 : vector<1x256xf32> to vector<16x256xf32>
    %59 = vector.broadcast %cst_4 : f32 to vector<16x256xf32>
    %60 = arith.select %55, %58, %59 : vector<16x256xi1>, vector<16x256xf32>
    %61 = vector.shape_cast %53 : vector<1x256xf32> to vector<1x256xf32>
    %62 = vector.broadcast %61 : vector<1x256xf32> to vector<16x256xf32>
    %63 = arith.select %50, %62, %60 : vector<16x256xi1>, vector<16x256xf32>
    %64 = arith.truncf %63 : vector<16x256xf32> to vector<16x256xbf16>
    %c0_5 = arith.constant 0 : index
    %c0_6 = arith.constant 0 : index
    %65 = vector.load %arg6[%c0_5, %c0_6] : memref<128x2048xbf16, #tpu.memory_space<vmem>>, vector<16x256xbf16>
    tpu.vector_store %arg6[%c0_5, %c0_6], %64 {strides = array<i32>} : memref<128x2048xbf16, #tpu.memory_space<vmem>>, vector<16x256xbf16>,
    %66 = vector.extract_strided_slice %43 {offsets = [1, 0], sizes = [1, 256], strides = [1, 1]} : vector<8x256xi32> to vector<1x256xi32>
    %67 = vector.broadcast %66 : vector<1x256xi32> to vector<16x256xi32>
    %68 = arith.subi %45, %67 : vector<16x256xi32>
    %c0_i32_7 = arith.constant 0 : i32
    %69 = vector.broadcast %c0_i32_7 : i32 to vector<16x256xi32>
    %70 = arith.cmpi eq, %68, %69 : vector<16x256xi32>
    %71 = vector.extract_strided_slice %41 {offsets = [1, 0], sizes = [1, 256], strides = [1, 1]} : vector<8x256xf32> to vector<1x256xf32>
    %cst_8 = arith.constant 1.000000e+00 : f32
    %72 = vector.broadcast %cst_8 : f32 to vector<1x256xf32>
    %73 = arith.subf %72, %71 : vector<1x256xf32>
    %c1_i32_9 = arith.constant 1 : i32
    %74 = vector.broadcast %c1_i32_9 : i32 to vector<16x256xi32>
    %75 = arith.cmpi eq, %68, %74 : vector<16x256xi32>
    %76 = vector.extract_strided_slice %41 {offsets = [1, 0], sizes = [1, 256], strides = [1, 1]} : vector<8x256xf32> to vector<1x256xf32>
    %cst_10 = arith.constant 0.000000e+00 : f32
    %77 = vector.shape_cast %76 : vector<1x256xf32> to vector<1x256xf32>
    %78 = vector.broadcast %77 : vector<1x256xf32> to vector<16x256xf32>
    %79 = vector.broadcast %cst_10 : f32 to vector<16x256xf32>
    %80 = arith.select %75, %78, %79 : vector<16x256xi1>, vector<16x256xf32>
    %81 = vector.shape_cast %73 : vector<1x256xf32> to vector<1x256xf32>
    %82 = vector.broadcast %81 : vector<1x256xf32> to vector<16x256xf32>
    %83 = arith.select %70, %82, %80 : vector<16x256xi1>, vector<16x256xf32>
    %84 = arith.truncf %83 : vector<16x256xf32> to vector<16x256xbf16>
    %c16 = arith.constant 16 : index
    %c256 = arith.constant 256 : index
    %85 = vector.load %arg6[%c16, %c256] : memref<128x2048xbf16, #tpu.memory_space<vmem>>, vector<16x256xbf16>
    tpu.vector_store %arg6[%c16, %c256], %84 {strides = array<i32>} : memref<128x2048xbf16, #tpu.memory_space<vmem>>, vector<16x256xbf16>,
    %86 = vector.extract_strided_slice %43 {offsets = [2, 0], sizes = [1, 256], strides = [1, 1]} : vector<8x256xi32> to vector<1x256xi32>
    %87 = vector.broadcast %86 : vector<1x256xi32> to vector<16x256xi32>
    %88 = arith.subi %45, %87 : vector<16x256xi32>
    %c0_i32_11 = arith.constant 0 : i32
    %89 = vector.broadcast %c0_i32_11 : i32 to vector<16x256xi32>
    %90 = arith.cmpi eq, %88, %89 : vector<16x256xi32>
    %91 = vector.extract_strided_slice %41 {offsets = [2, 0], sizes = [1, 256], strides = [1, 1]} : vector<8x256xf32> to vector<1x256xf32>
    %cst_12 = arith.constant 1.000000e+00 : f32
    %92 = vector.broadcast %cst_12 : f32 to vector<1x256xf32>
    %93 = arith.subf %92, %91 : vector<1x256xf32>
    %c1_i32_13 = arith.constant 1 : i32
    %94 = vector.broadcast %c1_i32_13 : i32 to vector<16x256xi32>
    %95 = arith.cmpi eq, %88, %94 : vector<16x256xi32>
    %96 = vector.extract_strided_slice %41 {offsets = [2, 0], sizes = [1, 256], strides = [1, 1]} : vector<8x256xf32> to vector<1x256xf32>
    %cst_14 = arith.constant 0.000000e+00 : f32
    %97 = vector.shape_cast %96 : vector<1x256xf32> to vector<1x256xf32>
    %98 = vector.broadcast %97 : vector<1x256xf32> to vector<16x256xf32>
    %99 = vector.broadcast %cst_14 : f32 to vector<16x256xf32>
    %100 = arith.select %95, %98, %99 : vector<16x256xi1>, vector<16x256xf32>
    %101 = vector.shape_cast %93 : vector<1x256xf32> to vector<1x256xf32>
    %102 = vector.broadcast %101 : vector<1x256xf32> to vector<16x256xf32>
    %103 = arith.select %90, %102, %100 : vector<16x256xi1>, vector<16x256xf32>
    %104 = arith.truncf %103 : vector<16x256xf32> to vector<16x256xbf16>
    %c32 = arith.constant 32 : index
    %c512 = arith.constant 512 : index
    %105 = vector.load %arg6[%c32, %c512] : memref<128x2048xbf16, #tpu.memory_space<vmem>>, vector<16x256xbf16>
    tpu.vector_store %arg6[%c32, %c512], %104 {strides = array<i32>} : memref<128x2048xbf16, #tpu.memory_space<vmem>>, vector<16x256xbf16>,
    %106 = vector.extract_strided_slice %43 {offsets = [3, 0], sizes = [1, 256], strides = [1, 1]} : vector<8x256xi32> to vector<1x256xi32>
    %107 = vector.broadcast %106 : vector<1x256xi32> to vector<16x256xi32>
    %108 = arith.subi %45, %107 : vector<16x256xi32>
    %c0_i32_15 = arith.constant 0 : i32
    %109 = vector.broadcast %c0_i32_15 : i32 to vector<16x256xi32>
    %110 = arith.cmpi eq, %108, %109 : vector<16x256xi32>
    %111 = vector.extract_strided_slice %41 {offsets = [3, 0], sizes = [1, 256], strides = [1, 1]} : vector<8x256xf32> to vector<1x256xf32>
    %cst_16 = arith.constant 1.000000e+00 : f32
    %112 = vector.broadcast %cst_16 : f32 to vector<1x256xf32>
    %113 = arith.subf %112, %111 : vector<1x256xf32>
    %c1_i32_17 = arith.constant 1 : i32
    %114 = vector.broadcast %c1_i32_17 : i32 to vector<16x256xi32>
    %115 = arith.cmpi eq, %108, %114 : vector<16x256xi32>
    %116 = vector.extract_strided_slice %41 {offsets = [3, 0], sizes = [1, 256], strides = [1, 1]} : vector<8x256xf32> to vector<1x256xf32>
    %cst_18 = arith.constant 0.000000e+00 : f32
    %117 = vector.shape_cast %116 : vector<1x256xf32> to vector<1x256xf32>
    %118 = vector.broadcast %117 : vector<1x256xf32> to vector<16x256xf32>
    %119 = vector.broadcast %cst_18 : f32 to vector<16x256xf32>
    %120 = arith.select %115, %118, %119 : vector<16x256xi1>, vector<16x256xf32>
    %121 = vector.shape_cast %113 : vector<1x256xf32> to vector<1x256xf32>
    %122 = vector.broadcast %121 : vector<1x256xf32> to vector<16x256xf32>
    %123 = arith.select %110, %122, %120 : vector<16x256xi1>, vector<16x256xf32>
    %124 = arith.truncf %123 : vector<16x256xf32> to vector<16x256xbf16>
    %c48 = arith.constant 48 : index
    %c768 = arith.constant 768 : index
    %125 = vector.load %arg6[%c48, %c768] : memref<128x2048xbf16, #tpu.memory_space<vmem>>, vector<16x256xbf16>
    tpu.vector_store %arg6[%c48, %c768], %124 {strides = array<i32>} : memref<128x2048xbf16, #tpu.memory_space<vmem>>, vector<16x256xbf16>,
    %126 = vector.extract_strided_slice %43 {offsets = [4, 0], sizes = [1, 256], strides = [1, 1]} : vector<8x256xi32> to vector<1x256xi32>
    %127 = vector.broadcast %126 : vector<1x256xi32> to vector<16x256xi32>
    %128 = arith.subi %45, %127 : vector<16x256xi32>
    %c0_i32_19 = arith.constant 0 : i32
    %129 = vector.broadcast %c0_i32_19 : i32 to vector<16x256xi32>
    %130 = arith.cmpi eq, %128, %129 : vector<16x256xi32>
    %131 = vector.extract_strided_slice %41 {offsets = [4, 0], sizes = [1, 256], strides = [1, 1]} : vector<8x256xf32> to vector<1x256xf32>
    %cst_20 = arith.constant 1.000000e+00 : f32
    %132 = vector.broadcast %cst_20 : f32 to vector<1x256xf32>
    %133 = arith.subf %132, %131 : vector<1x256xf32>
    %c1_i32_21 = arith.constant 1 : i32
    %134 = vector.broadcast %c1_i32_21 : i32 to vector<16x256xi32>
    %135 = arith.cmpi eq, %128, %134 : vector<16x256xi32>
    %136 = vector.extract_strided_slice %41 {offsets = [4, 0], sizes = [1, 256], strides = [1, 1]} : vector<8x256xf32> to vector<1x256xf32>
    %cst_22 = arith.constant 0.000000e+00 : f32
    %137 = vector.shape_cast %136 : vector<1x256xf32> to vector<1x256xf32>
    %138 = vector.broadcast %137 : vector<1x256xf32> to vector<16x256xf32>
    %139 = vector.broadcast %cst_22 : f32 to vector<16x256xf32>
    %140 = arith.select %135, %138, %139 : vector<16x256xi1>, vector<16x256xf32>
    %141 = vector.shape_cast %133 : vector<1x256xf32> to vector<1x256xf32>
    %142 = vector.broadcast %141 : vector<1x256xf32> to vector<16x256xf32>
    %143 = arith.select %130, %142, %140 : vector<16x256xi1>, vector<16x256xf32>
    %144 = arith.truncf %143 : vector<16x256xf32> to vector<16x256xbf16>
    %c64 = arith.constant 64 : index
    %c1024 = arith.constant 1024 : index
    %145 = vector.load %arg6[%c64, %c1024] : memref<128x2048xbf16, #tpu.memory_space<vmem>>, vector<16x256xbf16>
    tpu.vector_store %arg6[%c64, %c1024], %144 {strides = array<i32>} : memref<128x2048xbf16, #tpu.memory_space<vmem>>, vector<16x256xbf16>,
    %146 = vector.extract_strided_slice %43 {offsets = [5, 0], sizes = [1, 256], strides = [1, 1]} : vector<8x256xi32> to vector<1x256xi32>
    %147 = vector.broadcast %146 : vector<1x256xi32> to vector<16x256xi32>
    %148 = arith.subi %45, %147 : vector<16x256xi32>
    %c0_i32_23 = arith.constant 0 : i32
    %149 = vector.broadcast %c0_i32_23 : i32 to vector<16x256xi32>
    %150 = arith.cmpi eq, %148, %149 : vector<16x256xi32>
    %151 = vector.extract_strided_slice %41 {offsets = [5, 0], sizes = [1, 256], strides = [1, 1]} : vector<8x256xf32> to vector<1x256xf32>
    %cst_24 = arith.constant 1.000000e+00 : f32
    %152 = vector.broadcast %cst_24 : f32 to vector<1x256xf32>
    %153 = arith.subf %152, %151 : vector<1x256xf32>
    %c1_i32_25 = arith.constant 1 : i32
    %154 = vector.broadcast %c1_i32_25 : i32 to vector<16x256xi32>
    %155 = arith.cmpi eq, %148, %154 : vector<16x256xi32>
    %156 = vector.extract_strided_slice %41 {offsets = [5, 0], sizes = [1, 256], strides = [1, 1]} : vector<8x256xf32> to vector<1x256xf32>
    %cst_26 = arith.constant 0.000000e+00 : f32
    %157 = vector.shape_cast %156 : vector<1x256xf32> to vector<1x256xf32>
    %158 = vector.broadcast %157 : vector<1x256xf32> to vector<16x256xf32>
    %159 = vector.broadcast %cst_26 : f32 to vector<16x256xf32>
    %160 = arith.select %155, %158, %159 : vector<16x256xi1>, vector<16x256xf32>
    %161 = vector.shape_cast %153 : vector<1x256xf32> to vector<1x256xf32>
    %162 = vector.broadcast %161 : vector<1x256xf32> to vector<16x256xf32>
    %163 = arith.select %150, %162, %160 : vector<16x256xi1>, vector<16x256xf32>
    %164 = arith.truncf %163 : vector<16x256xf32> to vector<16x256xbf16>
    %c80 = arith.constant 80 : index
    %c1280 = arith.constant 1280 : index
    %165 = vector.load %arg6[%c80, %c1280] : memref<128x2048xbf16, #tpu.memory_space<vmem>>, vector<16x256xbf16>
    tpu.vector_store %arg6[%c80, %c1280], %164 {strides = array<i32>} : memref<128x2048xbf16, #tpu.memory_space<vmem>>, vector<16x256xbf16>,
    %166 = vector.extract_strided_slice %43 {offsets = [6, 0], sizes = [1, 256], strides = [1, 1]} : vector<8x256xi32> to vector<1x256xi32>
    %167 = vector.broadcast %166 : vector<1x256xi32> to vector<16x256xi32>
    %168 = arith.subi %45, %167 : vector<16x256xi32>
    %c0_i32_27 = arith.constant 0 : i32
    %169 = vector.broadcast %c0_i32_27 : i32 to vector<16x256xi32>
    %170 = arith.cmpi eq, %168, %169 : vector<16x256xi32>
    %171 = vector.extract_strided_slice %41 {offsets = [6, 0], sizes = [1, 256], strides = [1, 1]} : vector<8x256xf32> to vector<1x256xf32>
    %cst_28 = arith.constant 1.000000e+00 : f32
    %172 = vector.broadcast %cst_28 : f32 to vector<1x256xf32>
    %173 = arith.subf %172, %171 : vector<1x256xf32>
    %c1_i32_29 = arith.constant 1 : i32
    %174 = vector.broadcast %c1_i32_29 : i32 to vector<16x256xi32>
    %175 = arith.cmpi eq, %168, %174 : vector<16x256xi32>
    %176 = vector.extract_strided_slice %41 {offsets = [6, 0], sizes = [1, 256], strides = [1, 1]} : vector<8x256xf32> to vector<1x256xf32>
    %cst_30 = arith.constant 0.000000e+00 : f32
    %177 = vector.shape_cast %176 : vector<1x256xf32> to vector<1x256xf32>
    %178 = vector.broadcast %177 : vector<1x256xf32> to vector<16x256xf32>
    %179 = vector.broadcast %cst_30 : f32 to vector<16x256xf32>
    %180 = arith.select %175, %178, %179 : vector<16x256xi1>, vector<16x256xf32>
    %181 = vector.shape_cast %173 : vector<1x256xf32> to vector<1x256xf32>
    %182 = vector.broadcast %181 : vector<1x256xf32> to vector<16x256xf32>
    %183 = arith.select %170, %182, %180 : vector<16x256xi1>, vector<16x256xf32>
    %184 = arith.truncf %183 : vector<16x256xf32> to vector<16x256xbf16>
    %c96 = arith.constant 96 : index
    %c1536 = arith.constant 1536 : index
    %185 = vector.load %arg6[%c96, %c1536] : memref<128x2048xbf16, #tpu.memory_space<vmem>>, vector<16x256xbf16>
    tpu.vector_store %arg6[%c96, %c1536], %184 {strides = array<i32>} : memref<128x2048xbf16, #tpu.memory_space<vmem>>, vector<16x256xbf16>,
    %186 = vector.extract_strided_slice %43 {offsets = [7, 0], sizes = [1, 256], strides = [1, 1]} : vector<8x256xi32> to vector<1x256xi32>
    %187 = vector.broadcast %186 : vector<1x256xi32> to vector<16x256xi32>
    %188 = arith.subi %45, %187 : vector<16x256xi32>
    %c0_i32_31 = arith.constant 0 : i32
    %189 = vector.broadcast %c0_i32_31 : i32 to vector<16x256xi32>
    %190 = arith.cmpi eq, %188, %189 : vector<16x256xi32>
    %191 = vector.extract_strided_slice %41 {offsets = [7, 0], sizes = [1, 256], strides = [1, 1]} : vector<8x256xf32> to vector<1x256xf32>
    %cst_32 = arith.constant 1.000000e+00 : f32
    %192 = vector.broadcast %cst_32 : f32 to vector<1x256xf32>
    %193 = arith.subf %192, %191 : vector<1x256xf32>
    %c1_i32_33 = arith.constant 1 : i32
    %194 = vector.broadcast %c1_i32_33 : i32 to vector<16x256xi32>
    %195 = arith.cmpi eq, %188, %194 : vector<16x256xi32>
    %196 = vector.extract_strided_slice %41 {offsets = [7, 0], sizes = [1, 256], strides = [1, 1]} : vector<8x256xf32> to vector<1x256xf32>
    %cst_34 = arith.constant 0.000000e+00 : f32
    %197 = vector.shape_cast %196 : vector<1x256xf32> to vector<1x256xf32>
    %198 = vector.broadcast %197 : vector<1x256xf32> to vector<16x256xf32>
    %199 = vector.broadcast %cst_34 : f32 to vector<16x256xf32>
    %200 = arith.select %195, %198, %199 : vector<16x256xi1>, vector<16x256xf32>
    %201 = vector.shape_cast %193 : vector<1x256xf32> to vector<1x256xf32>
    %202 = vector.broadcast %201 : vector<1x256xf32> to vector<16x256xf32>
    %203 = arith.select %190, %202, %200 : vector<16x256xi1>, vector<16x256xf32>
    %204 = arith.truncf %203 : vector<16x256xf32> to vector<16x256xbf16>
    %c112 = arith.constant 112 : index
    %c1792 = arith.constant 1792 : index
    %205 = vector.load %arg6[%c112, %c1792] : memref<128x2048xbf16, #tpu.memory_space<vmem>>, vector<16x256xbf16>
    tpu.vector_store %arg6[%c112, %c1792], %204 {strides = array<i32>} : memref<128x2048xbf16, #tpu.memory_space<vmem>>, vector<16x256xbf16>,
    %c0_35 = arith.constant 0 : index
    %c0_36 = arith.constant 0 : index
    %206 = vector.load %arg5[%c0_35, %c0_36] : memref<16x128xbf16, #tpu.memory_space<vmem>>, vector<16x128xbf16>
    %c0_37 = arith.constant 0 : index
    %c0_38 = arith.constant 0 : index
    %207 = vector.load %arg6[%c0_37, %c0_38] : memref<128x2048xbf16, #tpu.memory_space<vmem>>, vector<128x2048xbf16>
    %cst_39 = arith.constant dense<0.000000e+00> : vector<16x2048xf32>
    %208 = tpu.matmul %206, %207, %cst_39 {dimension_numbers = #tpu.dot_dimension_numbers<[1], [0], [0], [1], [0, 0, 1, 1], [], []>} : vector<16x128xbf16>, vector<128x2048xbf16>, vector<16x2048xf32> -> vector<16x2048xf32>
    %209 = tpu.iota {dimensions = array<i32: 0>} : vector<16x256xi32>
    %210 = vector.extract_strided_slice %44 {offsets = [0, 0], sizes = [1, 256], strides = [1, 1]} : vector<8x256xi32> to vector<1x256xi32>
    %211 = vector.broadcast %210 : vector<1x256xi32> to vector<16x256xi32>
    %212 = arith.subi %209, %211 : vector<16x256xi32>
    %c0_i32_40 = arith.constant 0 : i32
    %213 = vector.broadcast %c0_i32_40 : i32 to vector<16x256xi32>
    %214 = arith.cmpi eq, %212, %213 : vector<16x256xi32>
    %215 = vector.extract_strided_slice %42 {offsets = [0, 0], sizes = [1, 256], strides = [1, 1]} : vector<8x256xf32> to vector<1x256xf32>
    %cst_41 = arith.constant 1.000000e+00 : f32
    %216 = vector.broadcast %cst_41 : f32 to vector<1x256xf32>
    %217 = arith.subf %216, %215 : vector<1x256xf32>
    %c1_i32_42 = arith.constant 1 : i32
    %218 = vector.broadcast %c1_i32_42 : i32 to vector<16x256xi32>
    %219 = arith.cmpi eq, %212, %218 : vector<16x256xi32>
    %220 = vector.extract_strided_slice %42 {offsets = [0, 0], sizes = [1, 256], strides = [1, 1]} : vector<8x256xf32> to vector<1x256xf32>
    %cst_43 = arith.constant 0.000000e+00 : f32
    %221 = vector.shape_cast %220 : vector<1x256xf32> to vector<1x256xf32>
    %222 = vector.broadcast %221 : vector<1x256xf32> to vector<16x256xf32>
    %223 = vector.broadcast %cst_43 : f32 to vector<16x256xf32>
    %224 = arith.select %219, %222, %223 : vector<16x256xi1>, vector<16x256xf32>
    %225 = vector.shape_cast %217 : vector<1x256xf32> to vector<1x256xf32>
    %226 = vector.broadcast %225 : vector<1x256xf32> to vector<16x256xf32>
    %227 = arith.select %214, %226, %224 : vector<16x256xi1>, vector<16x256xf32>
    %228 = vector.extract_strided_slice %208 {offsets = [0, 0], sizes = [16, 256], strides = [1, 1]} : vector<16x2048xf32> to vector<16x256xf32>
    %229 = arith.mulf %228, %227 : vector<16x256xf32>
    %cst_44 = arith.constant dense<0.000000e+00> : vector<256xf32>
    %230 = vector.multi_reduction <add>, %229, %cst_44 [0] : vector<16x256xf32> to vector<256xf32>
    %c0_45 = arith.constant 0 : index
    %c0_46 = arith.constant 0 : index
    %c0_47 = arith.constant 0 : index
    %231 = vector.load %arg4[%c0_45, %c0_46, %c0_47] : memref<1x8x256xf32, #tpu.memory_space<vmem>>, vector<1x1x256xf32>
    %232 = vector.shape_cast %231 : vector<1x1x256xf32> to vector<256xf32>
    %233 = vector.shape_cast %230 : vector<256xf32> to vector<1x1x256xf32>
    tpu.vector_store %arg4[%c0_45, %c0_46, %c0_47], %233 {strides = array<i32>} : memref<1x8x256xf32, #tpu.memory_space<vmem>>, vector<1x1x256xf32>,
    %234 = vector.extract_strided_slice %44 {offsets = [1, 0], sizes = [1, 256], strides = [1, 1]} : vector<8x256xi32> to vector<1x256xi32>
    %235 = vector.broadcast %234 : vector<1x256xi32> to vector<16x256xi32>
    %236 = arith.subi %209, %235 : vector<16x256xi32>
    %c0_i32_48 = arith.constant 0 : i32
    %237 = vector.broadcast %c0_i32_48 : i32 to vector<16x256xi32>
    %238 = arith.cmpi eq, %236, %237 : vector<16x256xi32>
    %239 = vector.extract_strided_slice %42 {offsets = [1, 0], sizes = [1, 256], strides = [1, 1]} : vector<8x256xf32> to vector<1x256xf32>
    %cst_49 = arith.constant 1.000000e+00 : f32
    %240 = vector.broadcast %cst_49 : f32 to vector<1x256xf32>
    %241 = arith.subf %240, %239 : vector<1x256xf32>
    %c1_i32_50 = arith.constant 1 : i32
    %242 = vector.broadcast %c1_i32_50 : i32 to vector<16x256xi32>
    %243 = arith.cmpi eq, %236, %242 : vector<16x256xi32>
    %244 = vector.extract_strided_slice %42 {offsets = [1, 0], sizes = [1, 256], strides = [1, 1]} : vector<8x256xf32> to vector<1x256xf32>
    %cst_51 = arith.constant 0.000000e+00 : f32
    %245 = vector.shape_cast %244 : vector<1x256xf32> to vector<1x256xf32>
    %246 = vector.broadcast %245 : vector<1x256xf32> to vector<16x256xf32>
    %247 = vector.broadcast %cst_51 : f32 to vector<16x256xf32>
    %248 = arith.select %243, %246, %247 : vector<16x256xi1>, vector<16x256xf32>
    %249 = vector.shape_cast %241 : vector<1x256xf32> to vector<1x256xf32>
    %250 = vector.broadcast %249 : vector<1x256xf32> to vector<16x256xf32>
    %251 = arith.select %238, %250, %248 : vector<16x256xi1>, vector<16x256xf32>
    %252 = vector.extract_strided_slice %208 {offsets = [0, 256], sizes = [16, 256], strides = [1, 1]} : vector<16x2048xf32> to vector<16x256xf32>
    %253 = arith.mulf %252, %251 : vector<16x256xf32>
    %cst_52 = arith.constant dense<0.000000e+00> : vector<256xf32>
    %254 = vector.multi_reduction <add>, %253, %cst_52 [0] : vector<16x256xf32> to vector<256xf32>
    %c0_53 = arith.constant 0 : index
    %c1 = arith.constant 1 : index
    %c0_54 = arith.constant 0 : index
    %255 = vector.load %arg4[%c0_53, %c1, %c0_54] : memref<1x8x256xf32, #tpu.memory_space<vmem>>, vector<1x1x256xf32>
    %256 = vector.shape_cast %255 : vector<1x1x256xf32> to vector<256xf32>
    %257 = vector.shape_cast %254 : vector<256xf32> to vector<1x1x256xf32>
    tpu.vector_store %arg4[%c0_53, %c1, %c0_54], %257 {strides = array<i32>} : memref<1x8x256xf32, #tpu.memory_space<vmem>>, vector<1x1x256xf32>,
    %258 = vector.extract_strided_slice %44 {offsets = [2, 0], sizes = [1, 256], strides = [1, 1]} : vector<8x256xi32> to vector<1x256xi32>
    %259 = vector.broadcast %258 : vector<1x256xi32> to vector<16x256xi32>
    %260 = arith.subi %209, %259 : vector<16x256xi32>
    %c0_i32_55 = arith.constant 0 : i32
    %261 = vector.broadcast %c0_i32_55 : i32 to vector<16x256xi32>
    %262 = arith.cmpi eq, %260, %261 : vector<16x256xi32>
    %263 = vector.extract_strided_slice %42 {offsets = [2, 0], sizes = [1, 256], strides = [1, 1]} : vector<8x256xf32> to vector<1x256xf32>
    %cst_56 = arith.constant 1.000000e+00 : f32
    %264 = vector.broadcast %cst_56 : f32 to vector<1x256xf32>
    %265 = arith.subf %264, %263 : vector<1x256xf32>
    %c1_i32_57 = arith.constant 1 : i32
    %266 = vector.broadcast %c1_i32_57 : i32 to vector<16x256xi32>
    %267 = arith.cmpi eq, %260, %266 : vector<16x256xi32>
    %268 = vector.extract_strided_slice %42 {offsets = [2, 0], sizes = [1, 256], strides = [1, 1]} : vector<8x256xf32> to vector<1x256xf32>
    %cst_58 = arith.constant 0.000000e+00 : f32
    %269 = vector.shape_cast %268 : vector<1x256xf32> to vector<1x256xf32>
    %270 = vector.broadcast %269 : vector<1x256xf32> to vector<16x256xf32>
    %271 = vector.broadcast %cst_58 : f32 to vector<16x256xf32>
    %272 = arith.select %267, %270, %271 : vector<16x256xi1>, vector<16x256xf32>
    %273 = vector.shape_cast %265 : vector<1x256xf32> to vector<1x256xf32>
    %274 = vector.broadcast %273 : vector<1x256xf32> to vector<16x256xf32>
    %275 = arith.select %262, %274, %272 : vector<16x256xi1>, vector<16x256xf32>
    %276 = vector.extract_strided_slice %208 {offsets = [0, 512], sizes = [16, 256], strides = [1, 1]} : vector<16x2048xf32> to vector<16x256xf32>
    %277 = arith.mulf %276, %275 : vector<16x256xf32>
    %cst_59 = arith.constant dense<0.000000e+00> : vector<256xf32>
    %278 = vector.multi_reduction <add>, %277, %cst_59 [0] : vector<16x256xf32> to vector<256xf32>
    %c0_60 = arith.constant 0 : index
    %c2 = arith.constant 2 : index
    %c0_61 = arith.constant 0 : index
    %279 = vector.load %arg4[%c0_60, %c2, %c0_61] : memref<1x8x256xf32, #tpu.memory_space<vmem>>, vector<1x1x256xf32>
    %280 = vector.shape_cast %279 : vector<1x1x256xf32> to vector<256xf32>
    %281 = vector.shape_cast %278 : vector<256xf32> to vector<1x1x256xf32>
    tpu.vector_store %arg4[%c0_60, %c2, %c0_61], %281 {strides = array<i32>} : memref<1x8x256xf32, #tpu.memory_space<vmem>>, vector<1x1x256xf32>,
    %282 = vector.extract_strided_slice %44 {offsets = [3, 0], sizes = [1, 256], strides = [1, 1]} : vector<8x256xi32> to vector<1x256xi32>
    %283 = vector.broadcast %282 : vector<1x256xi32> to vector<16x256xi32>
    %284 = arith.subi %209, %283 : vector<16x256xi32>
    %c0_i32_62 = arith.constant 0 : i32
    %285 = vector.broadcast %c0_i32_62 : i32 to vector<16x256xi32>
    %286 = arith.cmpi eq, %284, %285 : vector<16x256xi32>
    %287 = vector.extract_strided_slice %42 {offsets = [3, 0], sizes = [1, 256], strides = [1, 1]} : vector<8x256xf32> to vector<1x256xf32>
    %cst_63 = arith.constant 1.000000e+00 : f32
    %288 = vector.broadcast %cst_63 : f32 to vector<1x256xf32>
    %289 = arith.subf %288, %287 : vector<1x256xf32>
    %c1_i32_64 = arith.constant 1 : i32
    %290 = vector.broadcast %c1_i32_64 : i32 to vector<16x256xi32>
    %291 = arith.cmpi eq, %284, %290 : vector<16x256xi32>
    %292 = vector.extract_strided_slice %42 {offsets = [3, 0], sizes = [1, 256], strides = [1, 1]} : vector<8x256xf32> to vector<1x256xf32>
    %cst_65 = arith.constant 0.000000e+00 : f32
    %293 = vector.shape_cast %292 : vector<1x256xf32> to vector<1x256xf32>
    %294 = vector.broadcast %293 : vector<1x256xf32> to vector<16x256xf32>
    %295 = vector.broadcast %cst_65 : f32 to vector<16x256xf32>
    %296 = arith.select %291, %294, %295 : vector<16x256xi1>, vector<16x256xf32>
    %297 = vector.shape_cast %289 : vector<1x256xf32> to vector<1x256xf32>
    %298 = vector.broadcast %297 : vector<1x256xf32> to vector<16x256xf32>
    %299 = arith.select %286, %298, %296 : vector<16x256xi1>, vector<16x256xf32>
    %300 = vector.extract_strided_slice %208 {offsets = [0, 768], sizes = [16, 256], strides = [1, 1]} : vector<16x2048xf32> to vector<16x256xf32>
    %301 = arith.mulf %300, %299 : vector<16x256xf32>
    %cst_66 = arith.constant dense<0.000000e+00> : vector<256xf32>
    %302 = vector.multi_reduction <add>, %301, %cst_66 [0] : vector<16x256xf32> to vector<256xf32>
    %c0_67 = arith.constant 0 : index
    %c3 = arith.constant 3 : index
    %c0_68 = arith.constant 0 : index
    %303 = vector.load %arg4[%c0_67, %c3, %c0_68] : memref<1x8x256xf32, #tpu.memory_space<vmem>>, vector<1x1x256xf32>
    %304 = vector.shape_cast %303 : vector<1x1x256xf32> to vector<256xf32>
    %305 = vector.shape_cast %302 : vector<256xf32> to vector<1x1x256xf32>
    tpu.vector_store %arg4[%c0_67, %c3, %c0_68], %305 {strides = array<i32>} : memref<1x8x256xf32, #tpu.memory_space<vmem>>, vector<1x1x256xf32>,
    %306 = vector.extract_strided_slice %44 {offsets = [4, 0], sizes = [1, 256], strides = [1, 1]} : vector<8x256xi32> to vector<1x256xi32>
    %307 = vector.broadcast %306 : vector<1x256xi32> to vector<16x256xi32>
    %308 = arith.subi %209, %307 : vector<16x256xi32>
    %c0_i32_69 = arith.constant 0 : i32
    %309 = vector.broadcast %c0_i32_69 : i32 to vector<16x256xi32>
    %310 = arith.cmpi eq, %308, %309 : vector<16x256xi32>
    %311 = vector.extract_strided_slice %42 {offsets = [4, 0], sizes = [1, 256], strides = [1, 1]} : vector<8x256xf32> to vector<1x256xf32>
    %cst_70 = arith.constant 1.000000e+00 : f32
    %312 = vector.broadcast %cst_70 : f32 to vector<1x256xf32>
    %313 = arith.subf %312, %311 : vector<1x256xf32>
    %c1_i32_71 = arith.constant 1 : i32
    %314 = vector.broadcast %c1_i32_71 : i32 to vector<16x256xi32>
    %315 = arith.cmpi eq, %308, %314 : vector<16x256xi32>
    %316 = vector.extract_strided_slice %42 {offsets = [4, 0], sizes = [1, 256], strides = [1, 1]} : vector<8x256xf32> to vector<1x256xf32>
    %cst_72 = arith.constant 0.000000e+00 : f32
    %317 = vector.shape_cast %316 : vector<1x256xf32> to vector<1x256xf32>
    %318 = vector.broadcast %317 : vector<1x256xf32> to vector<16x256xf32>
    %319 = vector.broadcast %cst_72 : f32 to vector<16x256xf32>
    %320 = arith.select %315, %318, %319 : vector<16x256xi1>, vector<16x256xf32>
    %321 = vector.shape_cast %313 : vector<1x256xf32> to vector<1x256xf32>
    %322 = vector.broadcast %321 : vector<1x256xf32> to vector<16x256xf32>
    %323 = arith.select %310, %322, %320 : vector<16x256xi1>, vector<16x256xf32>
    %324 = vector.extract_strided_slice %208 {offsets = [0, 1024], sizes = [16, 256], strides = [1, 1]} : vector<16x2048xf32> to vector<16x256xf32>
    %325 = arith.mulf %324, %323 : vector<16x256xf32>
    %cst_73 = arith.constant dense<0.000000e+00> : vector<256xf32>
    %326 = vector.multi_reduction <add>, %325, %cst_73 [0] : vector<16x256xf32> to vector<256xf32>
    %c0_74 = arith.constant 0 : index
    %c4 = arith.constant 4 : index
    %c0_75 = arith.constant 0 : index
    %327 = vector.load %arg4[%c0_74, %c4, %c0_75] : memref<1x8x256xf32, #tpu.memory_space<vmem>>, vector<1x1x256xf32>
    %328 = vector.shape_cast %327 : vector<1x1x256xf32> to vector<256xf32>
    %329 = vector.shape_cast %326 : vector<256xf32> to vector<1x1x256xf32>
    tpu.vector_store %arg4[%c0_74, %c4, %c0_75], %329 {strides = array<i32>} : memref<1x8x256xf32, #tpu.memory_space<vmem>>, vector<1x1x256xf32>,
    %330 = vector.extract_strided_slice %44 {offsets = [5, 0], sizes = [1, 256], strides = [1, 1]} : vector<8x256xi32> to vector<1x256xi32>
    %331 = vector.broadcast %330 : vector<1x256xi32> to vector<16x256xi32>
    %332 = arith.subi %209, %331 : vector<16x256xi32>
    %c0_i32_76 = arith.constant 0 : i32
    %333 = vector.broadcast %c0_i32_76 : i32 to vector<16x256xi32>
    %334 = arith.cmpi eq, %332, %333 : vector<16x256xi32>
    %335 = vector.extract_strided_slice %42 {offsets = [5, 0], sizes = [1, 256], strides = [1, 1]} : vector<8x256xf32> to vector<1x256xf32>
    %cst_77 = arith.constant 1.000000e+00 : f32
    %336 = vector.broadcast %cst_77 : f32 to vector<1x256xf32>
    %337 = arith.subf %336, %335 : vector<1x256xf32>
    %c1_i32_78 = arith.constant 1 : i32
    %338 = vector.broadcast %c1_i32_78 : i32 to vector<16x256xi32>
    %339 = arith.cmpi eq, %332, %338 : vector<16x256xi32>
    %340 = vector.extract_strided_slice %42 {offsets = [5, 0], sizes = [1, 256], strides = [1, 1]} : vector<8x256xf32> to vector<1x256xf32>
    %cst_79 = arith.constant 0.000000e+00 : f32
    %341 = vector.shape_cast %340 : vector<1x256xf32> to vector<1x256xf32>
    %342 = vector.broadcast %341 : vector<1x256xf32> to vector<16x256xf32>
    %343 = vector.broadcast %cst_79 : f32 to vector<16x256xf32>
    %344 = arith.select %339, %342, %343 : vector<16x256xi1>, vector<16x256xf32>
    %345 = vector.shape_cast %337 : vector<1x256xf32> to vector<1x256xf32>
    %346 = vector.broadcast %345 : vector<1x256xf32> to vector<16x256xf32>
    %347 = arith.select %334, %346, %344 : vector<16x256xi1>, vector<16x256xf32>
    %348 = vector.extract_strided_slice %208 {offsets = [0, 1280], sizes = [16, 256], strides = [1, 1]} : vector<16x2048xf32> to vector<16x256xf32>
    %349 = arith.mulf %348, %347 : vector<16x256xf32>
    %cst_80 = arith.constant dense<0.000000e+00> : vector<256xf32>
    %350 = vector.multi_reduction <add>, %349, %cst_80 [0] : vector<16x256xf32> to vector<256xf32>
    %c0_81 = arith.constant 0 : index
    %c5 = arith.constant 5 : index
    %c0_82 = arith.constant 0 : index
    %351 = vector.load %arg4[%c0_81, %c5, %c0_82] : memref<1x8x256xf32, #tpu.memory_space<vmem>>, vector<1x1x256xf32>
    %352 = vector.shape_cast %351 : vector<1x1x256xf32> to vector<256xf32>
    %353 = vector.shape_cast %350 : vector<256xf32> to vector<1x1x256xf32>
    tpu.vector_store %arg4[%c0_81, %c5, %c0_82], %353 {strides = array<i32>} : memref<1x8x256xf32, #tpu.memory_space<vmem>>, vector<1x1x256xf32>,
    %354 = vector.extract_strided_slice %44 {offsets = [6, 0], sizes = [1, 256], strides = [1, 1]} : vector<8x256xi32> to vector<1x256xi32>
    %355 = vector.broadcast %354 : vector<1x256xi32> to vector<16x256xi32>
    %356 = arith.subi %209, %355 : vector<16x256xi32>
    %c0_i32_83 = arith.constant 0 : i32
    %357 = vector.broadcast %c0_i32_83 : i32 to vector<16x256xi32>
    %358 = arith.cmpi eq, %356, %357 : vector<16x256xi32>
    %359 = vector.extract_strided_slice %42 {offsets = [6, 0], sizes = [1, 256], strides = [1, 1]} : vector<8x256xf32> to vector<1x256xf32>
    %cst_84 = arith.constant 1.000000e+00 : f32
    %360 = vector.broadcast %cst_84 : f32 to vector<1x256xf32>
    %361 = arith.subf %360, %359 : vector<1x256xf32>
    %c1_i32_85 = arith.constant 1 : i32
    %362 = vector.broadcast %c1_i32_85 : i32 to vector<16x256xi32>
    %363 = arith.cmpi eq, %356, %362 : vector<16x256xi32>
    %364 = vector.extract_strided_slice %42 {offsets = [6, 0], sizes = [1, 256], strides = [1, 1]} : vector<8x256xf32> to vector<1x256xf32>
    %cst_86 = arith.constant 0.000000e+00 : f32
    %365 = vector.shape_cast %364 : vector<1x256xf32> to vector<1x256xf32>
    %366 = vector.broadcast %365 : vector<1x256xf32> to vector<16x256xf32>
    %367 = vector.broadcast %cst_86 : f32 to vector<16x256xf32>
    %368 = arith.select %363, %366, %367 : vector<16x256xi1>, vector<16x256xf32>
    %369 = vector.shape_cast %361 : vector<1x256xf32> to vector<1x256xf32>
    %370 = vector.broadcast %369 : vector<1x256xf32> to vector<16x256xf32>
    %371 = arith.select %358, %370, %368 : vector<16x256xi1>, vector<16x256xf32>
    %372 = vector.extract_strided_slice %208 {offsets = [0, 1536], sizes = [16, 256], strides = [1, 1]} : vector<16x2048xf32> to vector<16x256xf32>
    %373 = arith.mulf %372, %371 : vector<16x256xf32>
    %cst_87 = arith.constant dense<0.000000e+00> : vector<256xf32>
    %374 = vector.multi_reduction <add>, %373, %cst_87 [0] : vector<16x256xf32> to vector<256xf32>
    %c0_88 = arith.constant 0 : index
    %c6 = arith.constant 6 : index
    %c0_89 = arith.constant 0 : index
    %375 = vector.load %arg4[%c0_88, %c6, %c0_89] : memref<1x8x256xf32, #tpu.memory_space<vmem>>, vector<1x1x256xf32>
    %376 = vector.shape_cast %375 : vector<1x1x256xf32> to vector<256xf32>
    %377 = vector.shape_cast %374 : vector<256xf32> to vector<1x1x256xf32>
    tpu.vector_store %arg4[%c0_88, %c6, %c0_89], %377 {strides = array<i32>} : memref<1x8x256xf32, #tpu.memory_space<vmem>>, vector<1x1x256xf32>,
    %378 = vector.extract_strided_slice %44 {offsets = [7, 0], sizes = [1, 256], strides = [1, 1]} : vector<8x256xi32> to vector<1x256xi32>
    %379 = vector.broadcast %378 : vector<1x256xi32> to vector<16x256xi32>
    %380 = arith.subi %209, %379 : vector<16x256xi32>
    %c0_i32_90 = arith.constant 0 : i32
    %381 = vector.broadcast %c0_i32_90 : i32 to vector<16x256xi32>
    %382 = arith.cmpi eq, %380, %381 : vector<16x256xi32>
    %383 = vector.extract_strided_slice %42 {offsets = [7, 0], sizes = [1, 256], strides = [1, 1]} : vector<8x256xf32> to vector<1x256xf32>
    %cst_91 = arith.constant 1.000000e+00 : f32
    %384 = vector.broadcast %cst_91 : f32 to vector<1x256xf32>
    %385 = arith.subf %384, %383 : vector<1x256xf32>
    %c1_i32_92 = arith.constant 1 : i32
    %386 = vector.broadcast %c1_i32_92 : i32 to vector<16x256xi32>
    %387 = arith.cmpi eq, %380, %386 : vector<16x256xi32>
    %388 = vector.extract_strided_slice %42 {offsets = [7, 0], sizes = [1, 256], strides = [1, 1]} : vector<8x256xf32> to vector<1x256xf32>
    %cst_93 = arith.constant 0.000000e+00 : f32
    %389 = vector.shape_cast %388 : vector<1x256xf32> to vector<1x256xf32>
    %390 = vector.broadcast %389 : vector<1x256xf32> to vector<16x256xf32>
    %391 = vector.broadcast %cst_93 : f32 to vector<16x256xf32>
    %392 = arith.select %387, %390, %391 : vector<16x256xi1>, vector<16x256xf32>
    %393 = vector.shape_cast %385 : vector<1x256xf32> to vector<1x256xf32>
    %394 = vector.broadcast %393 : vector<1x256xf32> to vector<16x256xf32>
    %395 = arith.select %382, %394, %392 : vector<16x256xi1>, vector<16x256xf32>
    %396 = vector.extract_strided_slice %208 {offsets = [0, 1792], sizes = [16, 256], strides = [1, 1]} : vector<16x2048xf32> to vector<16x256xf32>
    %397 = arith.mulf %396, %395 : vector<16x256xf32>
    %cst_94 = arith.constant dense<0.000000e+00> : vector<256xf32>
    %398 = vector.multi_reduction <add>, %397, %cst_94 [0] : vector<16x256xf32> to vector<256xf32>
    %c0_95 = arith.constant 0 : index
    %c7 = arith.constant 7 : index
    %c0_96 = arith.constant 0 : index
    %399 = vector.load %arg4[%c0_95, %c7, %c0_96] : memref<1x8x256xf32, #tpu.memory_space<vmem>>, vector<1x1x256xf32>
    %400 = vector.shape_cast %399 : vector<1x1x256xf32> to vector<256xf32>
    %401 = vector.shape_cast %398 : vector<256xf32> to vector<1x1x256xf32>
    tpu.vector_store %arg4[%c0_95, %c7, %c0_96], %401 {strides = array<i32>} : memref<1x8x256xf32, #tpu.memory_space<vmem>>, vector<1x1x256xf32>,
    return
  }
  func.func @transform_0(%arg0: i32, %arg1: i32) -> (i32, i32, i32) {
    %c0_i32 = arith.constant 0 : i32
    %c0_i32_0 = arith.constant 0 : i32
    %c0_i32_1 = arith.constant 0 : i32
    return %arg0, %c0_i32, %c0_i32_0 : i32, i32, i32
  }
  func.func @transform_1(%arg0: i32, %arg1: i32) -> (i32, i32, i32, i32) {
    %c0_i32 = arith.constant 0 : i32
    %c0_i32_0 = arith.constant 0 : i32
    %c0_i32_1 = arith.constant 0 : i32
    %c0_i32_2 = arith.constant 0 : i32
    return %arg0, %c0_i32, %c0_i32_0, %c0_i32_1 : i32, i32, i32, i32
  }
  func.func @transform_2(%arg0: i32, %arg1: i32) -> (i32, i32, i32) {
    %c0_i32 = arith.constant 0 : i32
    %c0_i32_0 = arith.constant 0 : i32
    return %arg0, %c0_i32, %arg1 : i32, i32, i32
  }
}

</mosaic_0001>

<llo_original>
// kernel: tpu_custom_call.1
$region0: #{tpu_custom_call.1}
  #allocation0 [shape = 'u32[]', space=smem, size = 0x4, offset = 0x4, fixed_abs, tag = 'smem constant byte address 0x4 - core index']
  #allocation1 [shape = 'u32[144,128]{1,0:T(1,128)}', space=vmem, size = 0x12000, scoped, tag = 'internal scratch']
  #allocation2 [shape = 'bf16[16,128]{1,0:T(8,128)(2,1)}', space=vmem, size = 0x1000, scoped, tag = 'scratch operand']
  #allocation3 [shape = 'bf16[128,2048]{1,0:T(8,128)(2,1)}', space=vmem, size = 0x80000, scoped, tag = 'scratch operand']
  %s0 = inlined_call_operand.hbm [shape: f32[2,8,8], index: 0, kind: input, shape index: {}]
  %s1 = inlined_call_operand.hbm [shape: f32[2,8,16,16], index: 1, kind: input, shape index: {}]
  %s2 = inlined_call_operand.hbm [shape: f32[2,8,256], index: 2, kind: output, shape index: {}]
  %s3 = sld [smem:[#allocation0]]
  $region53: #{tpu_custom_call.1} parent=0
    _
  %s5 = ssub.s32 1, %s3
  %s6 = scalar_select 0, %s5, %s3
  $region1: #{tpu_custom_call.1} parent=0
    #allocation4 [shape = 'u8[8192]{0}', space=vmem, size = 0x2000, scoped, tag = 'input window, operand 0']
    #allocation5 [shape = 's32[2]{0}', space=sflag, size = 0x8, scoped, tag = 'scoped memory for tpu_custom_call.1']
    #allocation6 [shape = 's32[2]{0}', space=sflag, size = 0x8, scoped, tag = 'scoped memory for tpu_custom_call.1']
    #allocation7 [shape = 'u8[131072]{0}', space=vmem, size = 0x20000, scoped, tag = 'input window, operand 1']
    #allocation8 [shape = 's32[2]{0}', space=sflag, size = 0x8, scoped, tag = 'scoped memory for tpu_custom_call.1']
    #allocation9 [shape = 'u8[16384]{0}', space=vmem, size = 0x4000, scoped, tag = 'output window, operand 0']
    %7 = vsyncpa [#allocation5], 0
    %s8 = scalar_lea.sflag [#allocation5], 1
    %9 = vsyncpa %s8, 0
    %10 = vsyncpa [#allocation8], 0
    %s11 = scalar_lea.sflag [#allocation8], 1
    %12 = vsyncpa %s11, 0
    %13 = vsyncpa [#allocation6], 0
    %s14 = scalar_lea.sflag [#allocation6], 1
    %15 = vsyncpa %s14, 0
    loop: start=0, step=1, limit=4
    $region2: #{tpu_custom_call.1} parent=1 // loop_pre_header
      _
    $region3: #{tpu_custom_call.1} parent=1 // loop_header
      %s17 = sphi 0, %s21
      %p18 = scmp.ge.s32.totalorder %s17, 4
      %s24 = sphi 0, %s36
      %s25 = sphi 0, %s32
      %s26 = sphi 0, %s24
      %s27 = sphi 0, %s25
      %s28 = sphi 0, %s26
      %s29 = sphi 0, %s27
      %s39 = sphi 0, %s41
      %s42 = sphi 0, %s39
      %s43 = sphi 0, %s42
      %s59 = sphi 0, %s43
      %s65 = sphi 0, %s67
      %s68 = sphi 0, %s65
      %s69 = sphi 0, %s68
      %s85 = sphi 0, %s69
      %s93 = sphi 0, %s95
      %s96 = sphi 0, %s93
      %s97 = sphi 0, %s96
      %s113 = sphi 0, %s97
    $region4: #{tpu_custom_call.1} parent=1 // loop_header_branch
      %20 = sbr.rel (%p18) target = $region8
    $region5: #{tpu_custom_call.1} parent=1 // loop_body
      %s22 = ssub.s32 %s17, 1
      %s23 = ssub.s32 %s17, 2
      %s30 = sadd.s32 1, %s25
      %p31 = scmp.ge.s32.totalorder %s30, 1
      %s32 = scalar_select %p31, 0, %s30
      %s33 = sadd.s32 1, %s24
      %s34 = scalar_select %p31, %s33, %s24
      %p35 = scmp.ge.s32.totalorder %s34, 2
      %s36 = scalar_select %p35, 0, %s34
      %s37 = ssub.s32 %s24, %s36
      %p38 = scmp.eq.s32.totalorder %s37, 0
      %s40 = sadd.s32 %s39, 1
      %s41 = scalar_select %p38, %s39, %s40
      %p44 = pneg %p38
      %p45 = scmp.eq.s32.totalorder %s17, 1
      %p46 = por %p44, %p45
      %p47 = scmp.ne.s32.totalorder %s39, %s42
      %p48 = scmp.eq.s32.totalorder %s17, 0
      %p49 = por %p47, %p48
      %p50 = scmp.ne.s32.totalorder %s39, %s42
      %p51 = scmp.eq.s32.totalorder %s22, 1
      %p52 = por %p50, %p51
      %p53 = scmp.ne.s32.totalorder %s42, %s43
      %p54 = scmp.eq.s32.totalorder %s22, 0
      %p55 = por %p53, %p54
      %p56 = scmp.ne.s32.totalorder %s42, %s43
      %p57 = scmp.eq.s32.totalorder %s23, 1
      %p58 = por %p56, %p57
      %p60 = scmp.ne.s32.totalorder %s43, %s59
      %p61 = scmp.eq.s32.totalorder %s23, 0
      %p62 = por %p60, %p61
      %s63 = ssub.s32 %s24, %s36
      %p64 = scmp.eq.s32.totalorder %s63, 0
      %s66 = sadd.s32 %s65, 1
      %s67 = scalar_select %p64, %s65, %s66
      %p70 = pneg %p64
      %p71 = scmp.eq.s32.totalorder %s17, 1
      %p72 = por %p70, %p71
      %p73 = scmp.ne.s32.totalorder %s65, %s68
      %p74 = scmp.eq.s32.totalorder %s17, 0
      %p75 = por %p73, %p74
      %p76 = scmp.ne.s32.totalorder %s65, %s68
      %p77 = scmp.eq.s32.totalorder %s22, 1
      %p78 = por %p76, %p77
      %p79 = scmp.ne.s32.totalorder %s68, %s69
      %p80 = scmp.eq.s32.totalorder %s22, 0
      %p81 = por %p79, %p80
      %p82 = scmp.ne.s32.totalorder %s68, %s69
      %p83 = scmp.eq.s32.totalorder %s23, 1
      %p84 = por %p82, %p83
      %p86 = scmp.ne.s32.totalorder %s69, %s85
      %p87 = scmp.eq.s32.totalorder %s23, 0
      %p88 = por %p86, %p87
      %s89 = ssub.s32 %s24, %s36
      %s90 = ssub.s32 %s25, %s32
      %s91 = sor.u32 %s89, %s90
      %p92 = scmp.eq.s32.totalorder %s91, 0
      %s94 = sadd.s32 %s93, 1
      %s95 = scalar_select %p92, %s93, %s94
      %p98 = pneg %p92
      %p99 = scmp.eq.s32.totalorder %s17, 1
      %p100 = por %p98, %p99
      %p101 = scmp.ne.s32.totalorder %s93, %s96
      %p102 = scmp.eq.s32.totalorder %s17, 0
      %p103 = por %p101, %p102
      %p104 = scmp.ne.s32.totalorder %s93, %s96
      %p105 = scmp.eq.s32.totalorder %s22, 1
      %p106 = por %p104, %p105
      %p107 = scmp.ne.s32.totalorder %s96, %s97
      %p108 = scmp.eq.s32.totalorder %s22, 0
      %p109 = por %p107, %p108
      %p110 = scmp.ne.s32.totalorder %s96, %s97
      %p111 = scmp.eq.s32.totalorder %s23, 1
      %p112 = por %p110, %p111
      %p114 = scmp.ne.s32.totalorder %s97, %s113
      %p115 = scmp.eq.s32.totalorder %s23, 0
      %p116 = por %p114, %p115
      %p117 = scmp.le.s32.totalorder 1, %s17
      %p118 = scmp.lt.s32.totalorder %s17, 3
      %p119 = pnand %p117, %p118
      %p120 = pneg %p119
      // Predicated region
      $region9: #{tpu_custom_call.1} parent=5 // pred_check
        _
      $region10: #{tpu_custom_call.1} parent=5 // pred_check_branch
        %122 = sbr.rel (%p119) target = $region12
      $region11: #{tpu_custom_call.1} parent=5 // pred_region
        %s123 = ssub.s32 %s17, 1
      $region12: #{tpu_custom_call.1} parent=5 // pred_fallthru
        _
      %p124 = scmp.lt.s32.totalorder %s17, 2
      // Predicated region
      $region13: #{tpu_custom_call.1} parent=5 // pred_check
        %p125 = pneg %p124
      $region14: #{tpu_custom_call.1} parent=5 // pred_check_branch
        %127 = sbr.rel (%p125) target = $region16
      $region15: #{tpu_custom_call.1} parent=5 // pred_region
        // Predicated region
        $region17: #{tpu_custom_call.1} parent=15 // pred_check
          %p128 = pneg %p49
        $region18: #{tpu_custom_call.1} parent=15 // pred_check_branch
          %130 = sbr.rel (%p128) target = $region20
        $region19: #{tpu_custom_call.1} parent=15 // pred_region
          %s131 = sand.u32 %s39, 1
          %s132 = scalar_lea.sflag [#allocation5], %s131
          %s133 = sand.u32 %s39, 1
          %s134 = smul.addr %s133, 8
          %s135 = scalar_lea.vmem [#allocation4], %s134
          %s137 = ssub.s32 128, 128
          %138 = vsyncadd %s132, %s137
          %s139 = smul.addr %s24, 128
          %s140 = scalar_lea.hbm %s0, %s139
          %s142 = sshll.u32 %s135, 4
          %s143 = int_to_ptr.vmem [resolvable:$true] %s142
          %145 = dma.hbm_to_vmem [thread:$0]  %s140, 128, %s143, %s132
        $region20: #{tpu_custom_call.1} parent=15 // pred_fallthru
          _
        // Predicated region
        $region21: #{tpu_custom_call.1} parent=15 // pred_check
          %p146 = pneg %p75
        $region22: #{tpu_custom_call.1} parent=15 // pred_check_branch
          %148 = sbr.rel (%p146) target = $region24
        $region23: #{tpu_custom_call.1} parent=15 // pred_region
          %s149 = sand.u32 %s65, 1
          %s150 = scalar_lea.sflag [#allocation8], %s149
          %s151 = sand.u32 %s65, 1
          %s152 = smul.addr %s151, 128
          %s153 = scalar_lea.vmem [#allocation7], %s152
          %s155 = ssub.s32 2048, 2048
          %156 = vsyncadd %s150, %s155
          %s157 = smul.addr %s24, 16
          %s158 = smul.addr %s157, 128
          %s159 = scalar_lea.hbm %s1, %s158
          %s160 = sshll.u32 %s153, 4
          %s161 = int_to_ptr.vmem [resolvable:$true] %s160
          %166 = dma.hbm_to_vmem [thread:$0]  %s159, 2048, %s161, %s150, 128, 128, 8
        $region24: #{tpu_custom_call.1} parent=15 // pred_fallthru
          _
      $region16: #{tpu_custom_call.1} parent=5 // pred_fallthru
        _
      %p167 = scmp.le.s32.totalorder 1, %s17
      %p168 = scmp.lt.s32.totalorder %s17, 3
      %p169 = pnand %p167, %p168
      %p170 = pneg %p169
      // Predicated region
      $region25: #{tpu_custom_call.1} parent=5 // pred_check
        _
      $region26: #{tpu_custom_call.1} parent=5 // pred_check_branch
        %172 = sbr.rel (%p169) target = $region28
      $region27: #{tpu_custom_call.1} parent=5 // pred_region
        %s173 = ssub.s32 %s17, 1
        %s174 = sand.u32 %s42, 1
        %s175 = scalar_lea.sflag [#allocation5], %s174
        %s176 = sand.u32 %s42, 1
        %s177 = smul.addr %s176, 8
        %s178 = scalar_lea.vmem [#allocation4], %s177
        // Predicated region
        $region29: #{tpu_custom_call.1} parent=27 // pred_check
          %p179 = pneg %p55
        $region30: #{tpu_custom_call.1} parent=27 // pred_check_branch
          %181 = sbr.rel (%p179) target = $region32
        $region31: #{tpu_custom_call.1} parent=27 // pred_region
          %182 = dma.done %s175, 128
        $region32: #{tpu_custom_call.1} parent=27 // pred_fallthru
          _
        %s183 = sand.u32 %s68, 1
        %s184 = scalar_lea.sflag [#allocation8], %s183
        %s185 = sand.u32 %s68, 1
        %s186 = smul.addr %s185, 128
        %s187 = scalar_lea.vmem [#allocation7], %s186
        // Predicated region
        $region33: #{tpu_custom_call.1} parent=27 // pred_check
          %p188 = pneg %p81
        $region34: #{tpu_custom_call.1} parent=27 // pred_check_branch
          %190 = sbr.rel (%p188) target = $region36
        $region35: #{tpu_custom_call.1} parent=27 // pred_region
          %191 = dma.done %s184, 2048
        $region36: #{tpu_custom_call.1} parent=27 // pred_fallthru
          _
        %s192 = sand.u32 %s42, 1
        %s193 = scalar_lea.sflag [#allocation5], %s192
        %s194 = sand.u32 %s42, 1
        %s195 = smul.addr %s194, 8
        %s196 = scalar_lea.vmem [#allocation4], %s195
        %p197 = pneg %p55
        %p198 = pneg %p52
        %s199 = sand.u32 %s68, 1
        %s200 = scalar_lea.sflag [#allocation8], %s199
        %s201 = sand.u32 %s68, 1
        %s202 = smul.addr %s201, 128
        %s203 = scalar_lea.vmem [#allocation7], %s202
        %p204 = pneg %p81
        %p205 = pneg %p78
        %p206 = pneg %p109
        %p207 = pneg %p106
        %s208 = sand.u32 %s96, 1
        %s209 = scalar_lea.sflag [#allocation6], %s208
        %s210 = sand.u32 %s96, 1
        %s211 = smul.addr %s210, 16
        %s212 = scalar_lea.vmem [#allocation9], %s211
        %s213 = smul.u32 2, %s27
        %p215 = scmp.eq.s32.totalorder %s27, 0
        // Predicated region
        $region37: #{tpu_custom_call.1} parent=27 // pred_check
          %p216 = pneg %p215
        $region38: #{tpu_custom_call.1} parent=27 // pred_check_branch
          %218 = sbr.rel (%p216) target = $region40
        $region39: #{tpu_custom_call.1} parent=27 // pred_region
          %219 = vst [vmem:[#allocation3] sm:$0xff] 0
          %220 = vst [vmem:[#allocation3 + $0x8] sm:$0xff] 0
          %221 = vst [vmem:[#allocation3 + $0x10] sm:$0xff] 0
          %222 = vst [vmem:[#allocation3 + $0x18] sm:$0xff] 0
          %223 = vst [vmem:[#allocation3 + $0x20] sm:$0xff] 0
          %224 = vst [vmem:[#allocation3 + $0x28] sm:$0xff] 0
          %225 = vst [vmem:[#allocation3 + $0x30] sm:$0xff] 0
          %226 = vst [vmem:[#allocation3 + $0x38] sm:$0xff] 0
          %227 = vst [vmem:[#allocation3 + $0x40] sm:$0xff] 0
          %228 = vst [vmem:[#allocation3 + $0x48] sm:$0xff] 0
          %229 = vst [vmem:[#allocation3 + $0x50] sm:$0xff] 0
          %230 = vst [vmem:[#allocation3 + $0x58] sm:$0xff] 0
          %231 = vst [vmem:[#allocation3 + $0x60] sm:$0xff] 0
          %232 = vst [vmem:[#allocation3 + $0x68] sm:$0xff] 0
          %233 = vst [vmem:[#allocation3 + $0x70] sm:$0xff] 0
          %234 = vst [vmem:[#allocation3 + $0x78] sm:$0xff] 0
          %235 = vst [vmem:[#allocation3 + $0x80] sm:$0xff] 0
          %236 = vst [vmem:[#allocation3 + $0x88] sm:$0xff] 0
          %237 = vst [vmem:[#allocation3 + $0x90] sm:$0xff] 0
          %238 = vst [vmem:[#allocation3 + $0x98] sm:$0xff] 0
          %239 = vst [vmem:[#allocation3 + $0xa0] sm:$0xff] 0
          %240 = vst [vmem:[#allocation3 + $0xa8] sm:$0xff] 0
          %241 = vst [vmem:[#allocation3 + $0xb0] sm:$0xff] 0
          %242 = vst [vmem:[#allocation3 + $0xb8] sm:$0xff] 0
          %243 = vst [vmem:[#allocation3 + $0xc0] sm:$0xff] 0
          %244 = vst [vmem:[#allocation3 + $0xc8] sm:$0xff] 0
          %245 = vst [vmem:[#allocation3 + $0xd0] sm:$0xff] 0
          %246 = vst [vmem:[#allocation3 + $0xd8] sm:$0xff] 0
          %247 = vst [vmem:[#allocation3 + $0xe0] sm:$0xff] 0
          %248 = vst [vmem:[#allocation3 + $0xe8] sm:$0xff] 0
          %249 = vst [vmem:[#allocation3 + $0xf0] sm:$0xff] 0
          %250 = vst [vmem:[#allocation3 + $0xf8] sm:$0xff] 0
          %251 = vst [vmem:[#allocation3 + $0x100] sm:$0xff] 0
          %252 = vst [vmem:[#allocation3 + $0x108] sm:$0xff] 0
          %253 = vst [vmem:[#allocation3 + $0x110] sm:$0xff] 0
          %254 = vst [vmem:[#allocation3 + $0x118] sm:$0xff] 0
          %255 = vst [vmem:[#allocation3 + $0x120] sm:$0xff] 0
          %256 = vst [vmem:[#allocation3 + $0x128] sm:$0xff] 0
          %257 = vst [vmem:[#allocation3 + $0x130] sm:$0xff] 0
          %258 = vst [vmem:[#allocation3 + $0x138] sm:$0xff] 0
          %259 = vst [vmem:[#allocation3 + $0x140] sm:$0xff] 0
          %260 = vst [vmem:[#allocation3 + $0x148] sm:$0xff] 0
          %261 = vst [vmem:[#allocation3 + $0x150] sm:$0xff] 0
          %262 = vst [vmem:[#allocation3 + $0x158] sm:$0xff] 0
          %263 = vst [vmem:[#allocation3 + $0x160] sm:$0xff] 0
          %264 = vst [vmem:[#allocation3 + $0x168] sm:$0xff] 0
          %265 = vst [vmem:[#allocation3 + $0x170] sm:$0xff] 0
          %266 = vst [vmem:[#allocation3 + $0x178] sm:$0xff] 0
          %267 = vst [vmem:[#allocation3 + $0x180] sm:$0xff] 0
          %268 = vst [vmem:[#allocation3 + $0x188] sm:$0xff] 0
          %269 = vst [vmem:[#allocation3 + $0x190] sm:$0xff] 0
          %270 = vst [vmem:[#allocation3 + $0x198] sm:$0xff] 0
          %271 = vst [vmem:[#allocation3 + $0x1a0] sm:$0xff] 0
          %272 = vst [vmem:[#allocation3 + $0x1a8] sm:$0xff] 0
          %273 = vst [vmem:[#allocation3 + $0x1b0] sm:$0xff] 0
          %274 = vst [vmem:[#allocation3 + $0x1b8] sm:$0xff] 0
          %275 = vst [vmem:[#allocation3 + $0x1c0] sm:$0xff] 0
          %276 = vst [vmem:[#allocation3 + $0x1c8] sm:$0xff] 0
          %277 = vst [vmem:[#allocation3 + $0x1d0] sm:$0xff] 0
          %278 = vst [vmem:[#allocation3 + $0x1d8] sm:$0xff] 0
          %279 = vst [vmem:[#allocation3 + $0x1e0] sm:$0xff] 0
          %280 = vst [vmem:[#allocation3 + $0x1e8] sm:$0xff] 0
          %281 = vst [vmem:[#allocation3 + $0x1f0] sm:$0xff] 0
          %282 = vst [vmem:[#allocation3 + $0x1f8] sm:$0xff] 0
          %283 = vst [vmem:[#allocation3 + $0x200] sm:$0xff] 0
          %284 = vst [vmem:[#allocation3 + $0x208] sm:$0xff] 0
          %285 = vst [vmem:[#allocation3 + $0x210] sm:$0xff] 0
          %286 = vst [vmem:[#allocation3 + $0x218] sm:$0xff] 0
          %287 = vst [vmem:[#allocation3 + $0x220] sm:$0xff] 0
          %288 = vst [vmem:[#allocation3 + $0x228] sm:$0xff] 0
          %289 = vst [vmem:[#allocation3 + $0x230] sm:$0xff] 0
          %290 = vst [vmem:[#allocation3 + $0x238] sm:$0xff] 0
          %291 = vst [vmem:[#allocation3 + $0x240] sm:$0xff] 0
          %292 = vst [vmem:[#allocation3 + $0x248] sm:$0xff] 0
          %293 = vst [vmem:[#allocation3 + $0x250] sm:$0xff] 0
          %294 = vst [vmem:[#allocation3 + $0x258] sm:$0xff] 0
          %295 = vst [vmem:[#allocation3 + $0x260] sm:$0xff] 0
          %296 = vst [vmem:[#allocation3 + $0x268] sm:$0xff] 0
          %297 = vst [vmem:[#allocation3 + $0x270] sm:$0xff] 0
          %298 = vst [vmem:[#allocation3 + $0x278] sm:$0xff] 0
          %299 = vst [vmem:[#allocation3 + $0x280] sm:$0xff] 0
          %300 = vst [vmem:[#allocation3 + $0x288] sm:$0xff] 0
          %301 = vst [vmem:[#allocation3 + $0x290] sm:$0xff] 0
          %302 = vst [vmem:[#allocation3 + $0x298] sm:$0xff] 0
          %303 = vst [vmem:[#allocation3 + $0x2a0] sm:$0xff] 0
          %304 = vst [vmem:[#allocation3 + $0x2a8] sm:$0xff] 0
          %305 = vst [vmem:[#allocation3 + $0x2b0] sm:$0xff] 0
          %306 = vst [vmem:[#allocation3 + $0x2b8] sm:$0xff] 0
          %307 = vst [vmem:[#allocation3 + $0x2c0] sm:$0xff] 0
          %308 = vst [vmem:[#allocation3 + $0x2c8] sm:$0xff] 0
          %309 = vst [vmem:[#allocation3 + $0x2d0] sm:$0xff] 0
          %310 = vst [vmem:[#allocation3 + $0x2d8] sm:$0xff] 0
          %311 = vst [vmem:[#allocation3 + $0x2e0] sm:$0xff] 0
          %312 = vst [vmem:[#allocation3 + $0x2e8] sm:$0xff] 0
          %313 = vst [vmem:[#allocation3 + $0x2f0] sm:$0xff] 0
          %314 = vst [vmem:[#allocation3 + $0x2f8] sm:$0xff] 0
          %315 = vst [vmem:[#allocation3 + $0x300] sm:$0xff] 0
          %316 = vst [vmem:[#allocation3 + $0x308] sm:$0xff] 0
          %317 = vst [vmem:[#allocation3 + $0x310] sm:$0xff] 0
          %318 = vst [vmem:[#allocation3 + $0x318] sm:$0xff] 0
          %319 = vst [vmem:[#allocation3 + $0x320] sm:$0xff] 0
          %320 = vst [vmem:[#allocation3 + $0x328] sm:$0xff] 0
          %321 = vst [vmem:[#allocation3 + $0x330] sm:$0xff] 0
          %322 = vst [vmem:[#allocation3 + $0x338] sm:$0xff] 0
          %323 = vst [vmem:[#allocation3 + $0x340] sm:$0xff] 0
          %324 = vst [vmem:[#allocation3 + $0x348] sm:$0xff] 0
          %325 = vst [vmem:[#allocation3 + $0x350] sm:$0xff] 0
          %326 = vst [vmem:[#allocation3 + $0x358] sm:$0xff] 0
          %327 = vst [vmem:[#allocation3 + $0x360] sm:$0xff] 0
          %328 = vst [vmem:[#allocation3 + $0x368] sm:$0xff] 0
          %329 = vst [vmem:[#allocation3 + $0x370] sm:$0xff] 0
          %330 = vst [vmem:[#allocation3 + $0x378] sm:$0xff] 0
          %331 = vst [vmem:[#allocation3 + $0x380] sm:$0xff] 0
          %332 = vst [vmem:[#allocation3 + $0x388] sm:$0xff] 0
          %333 = vst [vmem:[#allocation3 + $0x390] sm:$0xff] 0
          %334 = vst [vmem:[#allocation3 + $0x398] sm:$0xff] 0
          %335 = vst [vmem:[#allocation3 + $0x3a0] sm:$0xff] 0
          %336 = vst [vmem:[#allocation3 + $0x3a8] sm:$0xff] 0
          %337 = vst [vmem:[#allocation3 + $0x3b0] sm:$0xff] 0
          %338 = vst [vmem:[#allocation3 + $0x3b8] sm:$0xff] 0
          %339 = vst [vmem:[#allocation3 + $0x3c0] sm:$0xff] 0
          %340 = vst [vmem:[#allocation3 + $0x3c8] sm:$0xff] 0
          %341 = vst [vmem:[#allocation3 + $0x3d0] sm:$0xff] 0
          %342 = vst [vmem:[#allocation3 + $0x3d8] sm:$0xff] 0
          %343 = vst [vmem:[#allocation3 + $0x3e0] sm:$0xff] 0
          %344 = vst [vmem:[#allocation3 + $0x3e8] sm:$0xff] 0
          %345 = vst [vmem:[#allocation3 + $0x3f0] sm:$0xff] 0
          %346 = vst [vmem:[#allocation3 + $0x3f8] sm:$0xff] 0
          %v347 = vld [vmem:[%s187] sm:$0xff]
          %v348 = vld [vmem:[%s187 + $0x8] sm:$0xff]
          %s349 = scalar_lea.vmem %s187, 16 [#allocation7]
          %v350 = vld [vmem:[%s349] sm:$0xff]
          %v351 = vld [vmem:[%s349 + $0x8] sm:$0xff]
          %s352 = scalar_lea.vmem %s187, 32 [#allocation7]
          %v353 = vld [vmem:[%s352] sm:$0xff]
          %v354 = vld [vmem:[%s352 + $0x8] sm:$0xff]
          %s355 = scalar_lea.vmem %s187, 48 [#allocation7]
          %v356 = vld [vmem:[%s355] sm:$0xff]
          %v357 = vld [vmem:[%s355 + $0x8] sm:$0xff]
          %s358 = scalar_lea.vmem %s187, 64 [#allocation7]
          %v359 = vld [vmem:[%s358] sm:$0xff]
          %v360 = vld [vmem:[%s358 + $0x8] sm:$0xff]
          %s361 = scalar_lea.vmem %s187, 80 [#allocation7]
          %v362 = vld [vmem:[%s361] sm:$0xff]
          %v363 = vld [vmem:[%s361 + $0x8] sm:$0xff]
          %s364 = scalar_lea.vmem %s187, 96 [#allocation7]
          %v365 = vld [vmem:[%s364] sm:$0xff]
          %v366 = vld [vmem:[%s364 + $0x8] sm:$0xff]
          %s367 = scalar_lea.vmem %s187, 112 [#allocation7]
          %v368 = vld [vmem:[%s367] sm:$0xff]
          %v369 = vld [vmem:[%s367 + $0x8] sm:$0xff]
          %372 = vrot.lane.b32.xlu0 %v350, 16
          %v373 = vpop.permute.xlu0 %372
          %374 = vrot.lane.b32.xlu0 %v351, 16
          %v375 = vpop.permute.xlu0 %374
          %380 = vrot.lane.b32.xlu0 %v353, 32
          %v381 = vpop.permute.xlu0 %380
          %382 = vrot.lane.b32.xlu0 %v354, 32
          %v383 = vpop.permute.xlu0 %382
          %388 = vrot.lane.b32.xlu0 %v356, 48
          %v389 = vpop.permute.xlu0 %388
          %390 = vrot.lane.b32.xlu0 %v357, 48
          %v391 = vpop.permute.xlu0 %390
          %396 = vrot.lane.b32.xlu0 %v359, 64
          %v397 = vpop.permute.xlu0 %396
          %398 = vrot.lane.b32.xlu0 %v360, 64
          %v399 = vpop.permute.xlu0 %398
          %404 = vrot.lane.b32.xlu0 %v362, 80
          %v405 = vpop.permute.xlu0 %404
          %406 = vrot.lane.b32.xlu0 %v363, 80
          %v407 = vpop.permute.xlu0 %406
          %412 = vrot.lane.b32.xlu0 %v365, 96
          %v413 = vpop.permute.xlu0 %412
          %414 = vrot.lane.b32.xlu0 %v366, 96
          %v415 = vpop.permute.xlu0 %414
          %420 = vrot.lane.b32.xlu0 %v368, 112
          %v421 = vpop.permute.xlu0 %420
          %422 = vrot.lane.b32.xlu0 %v369, 112
          %v423 = vpop.permute.xlu0 %422
          %vm426 = vcmask 130048
          %v427 = vsel %vm426, %v347, %v373
          %v428 = vsel %vm426, %v348, %v375
          %vm429 = vcmask 261120
          %v430 = vsel %vm429, %v427, %v381
          %v431 = vsel %vm429, %v428, %v383
          %vm432 = vcmask 392192
          %v433 = vsel %vm432, %v430, %v389
          %v434 = vsel %vm432, %v431, %v391
          %vm435 = vcmask 523264
          %v436 = vsel %vm435, %v433, %v397
          %v437 = vsel %vm435, %v434, %v399
          %vm438 = vcmask 654336
          %v439 = vsel %vm438, %v436, %v405
          %v440 = vsel %vm438, %v437, %v407
          %vm441 = vcmask 785408
          %v442 = vsel %vm441, %v439, %v413
          %v443 = vsel %vm441, %v440, %v415
          %vm444 = vcmask 916480
          %v445 = vsel %vm444, %v442, %v421
          %v446 = vsel %vm444, %v443, %v423
          %v447 = vpack.c.bf16 %v446, %v445
          %v449 = vunpack.c.l.b16 %v447
          %v450 = vunpack.c.h.b16 %v447
          %v451 = vpack.c.b16 %v449, %v449
          %v452 = vpack.c.b16 %v450, %v450
          %455 = vst [vmem:[#allocation2] sm:$0xf] %v451
          %456 = vst [vmem:[#allocation2 + $0x4] sm:$0xf] %v452
        $region40: #{tpu_custom_call.1} parent=27 // pred_fallthru
          _
        %v457 = vlaneseq
        %v458 = vand.u32 %v457, 127
        %v459 = vadd.s32 %v458, 128
        %s460 = smul.u32 %s27, 256
        %v461 = vstv %s460
        %v462 = vadd.s32 %v458, %v461
        %v463 = vadd.s32 %v459, %v461
        %v464 = vshrl.u32 %v462, 4
        %v465 = vshrl.u32 %v463, 4
        %v466 = vand.u32 %v462, 15
        %v467 = vand.u32 %v463, 15
        %v468 = vcvt.s32.f32 %v466
        %v469 = vcvt.s32.f32 %v467
        %v470 = vcvt.s32.f32 %v464
        %v471 = vcvt.s32.f32 %v465
        %v472 = vld [vmem:[%s178] sm:$0xff]
        %474 = vset.pattern.permute.xlu0 0
        %475 = vperm.xlu0 %474, %v472
        %v476 = vpop.permute.xlu0 %475
        %v478 = vmul.f32 %v476, %v468
        %v479 = vmul.f32 %v476, %v469
        %480 = vset.pattern.permute.xlu0 1
        %481 = vperm.xlu0 %480, %v472
        %v482 = vpop.permute.xlu0 %481
        %v484 = vmul.f32 %v482, %v470
        %v485 = vmul.f32 %v482, %v471
        %v486 = vadd.f32 %v478, %v484
        %v487 = vadd.f32 %v479, %v485
        %488 = vset.pattern.permute.xlu0 2
        %489 = vperm.xlu0 %488, %v472
        %v490 = vpop.permute.xlu0 %489
        %v492 = vadd.f32 %v486, %v490
        %v493 = vadd.f32 %v487, %v490
        %494 = vset.pattern.permute.xlu0 3
        %495 = vperm.xlu0 %494, %v472
        %v496 = vpop.permute.xlu0 %495
        %v498 = vmul.f32 %v496, %v468
        %v499 = vmul.f32 %v496, %v469
        %500 = vset.pattern.permute.xlu0 4
        %501 = vperm.xlu0 %500, %v472
        %v502 = vpop.permute.xlu0 %501
        %v504 = vmul.f32 %v502, %v470
        %v505 = vmul.f32 %v502, %v471
        %v506 = vadd.f32 %v498, %v504
        %v507 = vadd.f32 %v499, %v505
        %508 = vset.pattern.permute.xlu0 5
        %509 = vperm.xlu0 %508, %v472
        %v510 = vpop.permute.xlu0 %509
        %v512 = vadd.f32 %v506, %v510
        %v513 = vadd.f32 %v507, %v510
        %v514 = vfloor.f32 %v492
        %v515 = vfloor.f32 %v493
        %v516 = vfloor.f32 %v512
        %v517 = vfloor.f32 %v513
        %v518 = vsub.f32 %v492, %v514
        %v519 = vsub.f32 %v493, %v515
        %v520 = vsub.f32 %v512, %v516
        %v521 = vsub.f32 %v513, %v517
        %v522 = vcvt.f32.s32.to.zero.pseudo %v514
        %v523 = vcvt.f32.s32.to.zero.pseudo %v515
        %v524 = vcvt.f32.s32.to.zero.pseudo %v516
        %v525 = vcvt.f32.s32.to.zero.pseudo %v517
        %v526 = vlaneseq
        %v527 = vshrl.u32 %v526, 7
        %v528 = vadd.s32 %v527, 8
        %v529 = vlaneseq
        %v530 = vshrl.u32 %v529, 7
        %v531 = vsub.s32 0, %v530
        %v532 = vrot.slane %v522, %v531
        %v533 = vlaneseq
        %v534 = vshrl.u32 %v533, 7
        %v535 = vsub.s32 0, %v534
        %v536 = vrot.slane %v523, %v535
        %v537 = vsub.s32 %v527, %v532
        %v538 = vsub.s32 %v527, %v536
        %v539 = vsub.s32 %v528, %v532
        %v540 = vsub.s32 %v528, %v536
        %vm541 = vcmp.eq.s32.totalorder %v537, 0
        %vm542 = vcmp.eq.s32.totalorder %v538, 0
        %vm543 = vcmp.eq.s32.totalorder %v539, 0
        %vm544 = vcmp.eq.s32.totalorder %v540, 0
        %v545 = vsub.f32 1.0, %v518
        %v546 = vsub.f32 1.0, %v519
        %vm547 = vcmp.eq.s32.totalorder %v537, 1
        %vm548 = vcmp.eq.s32.totalorder %v538, 1
        %vm549 = vcmp.eq.s32.totalorder %v539, 1
        %vm550 = vcmp.eq.s32.totalorder %v540, 1
        %v551 = vlaneseq
        %v552 = vshrl.u32 %v551, 7
        %v553 = vsub.s32 0, %v552
        %v554 = vrot.slane %v518, %v553
        %v555 = vlaneseq
        %v556 = vshrl.u32 %v555, 7
        %v557 = vsub.s32 0, %v556
        %v558 = vrot.slane %v519, %v557
        %v559 = vsel %vm547, %v554, 0.0
        %v560 = vsel %vm548, %v558, 0.0
        %v561 = vsel %vm549, %v554, 0.0
        %v562 = vsel %vm550, %v558, 0.0
        %v563 = vlaneseq
        %v564 = vshrl.u32 %v563, 7
        %v565 = vsub.s32 0, %v564
        %v566 = vrot.slane %v545, %v565
        %v567 = vlaneseq
        %v568 = vshrl.u32 %v567, 7
        %v569 = vsub.s32 0, %v568
        %v570 = vrot.slane %v546, %v569
        %v571 = vsel %vm541, %v566, %v559
        %v572 = vsel %vm542, %v570, %v560
        %v573 = vsel %vm543, %v566, %v561
        %v574 = vsel %vm544, %v570, %v562
        %v575 = vpack.c.bf16 %v573, %v571
        %v576 = vpack.c.bf16 %v574, %v572
        %v579 = vunpack.c.l.b16 %v575
        %v580 = vunpack.c.l.b16 %v576
        %v581 = vunpack.c.h.b16 %v575
        %v582 = vunpack.c.h.b16 %v576
        %v583 = vpack.c.b16 %v580, %v579
        %v584 = vpack.c.b16 %v582, %v581
        %587 = vst [vmem:[#allocation3] sm:$0xff] %v583
        %588 = vst [vmem:[#allocation3 + $0x40] sm:$0xff] %v584
        %v589 = vlaneseq
        %v590 = vshrl.u32 %v589, 7
        %v591 = vsub.s32 1, %v590
        %v592 = vrot.slane %v522, %v591
        %v593 = vlaneseq
        %v594 = vshrl.u32 %v593, 7
        %v595 = vsub.s32 1, %v594
        %v596 = vrot.slane %v523, %v595
        %v597 = vsub.s32 %v527, %v592
        %v598 = vsub.s32 %v527, %v596
        %v599 = vsub.s32 %v528, %v592
        %v600 = vsub.s32 %v528, %v596
        %vm601 = vcmp.eq.s32.totalorder %v597, 0
        %vm602 = vcmp.eq.s32.totalorder %v598, 0
        %vm603 = vcmp.eq.s32.totalorder %v599, 0
        %vm604 = vcmp.eq.s32.totalorder %v600, 0
        %vm605 = vcmp.eq.s32.totalorder %v597, 1
        %vm606 = vcmp.eq.s32.totalorder %v598, 1
        %vm607 = vcmp.eq.s32.totalorder %v599, 1
        %vm608 = vcmp.eq.s32.totalorder %v600, 1
        %v609 = vlaneseq
        %v610 = vshrl.u32 %v609, 7
        %v611 = vsub.s32 1, %v610
        %v612 = vrot.slane %v518, %v611
        %v613 = vlaneseq
        %v614 = vshrl.u32 %v613, 7
        %v615 = vsub.s32 1, %v614
        %v616 = vrot.slane %v519, %v615
        %v617 = vsel %vm605, %v612, 0.0
        %v618 = vsel %vm606, %v616, 0.0
        %v619 = vsel %vm607, %v612, 0.0
        %v620 = vsel %vm608, %v616, 0.0
        %v621 = vlaneseq
        %v622 = vshrl.u32 %v621, 7
        %v623 = vsub.s32 1, %v622
        %v624 = vrot.slane %v545, %v623
        %v625 = vlaneseq
        %v626 = vshrl.u32 %v625, 7
        %v627 = vsub.s32 1, %v626
        %v628 = vrot.slane %v546, %v627
        %v629 = vsel %vm601, %v624, %v617
        %v630 = vsel %vm602, %v628, %v618
        %v631 = vsel %vm603, %v624, %v619
        %v632 = vsel %vm604, %v628, %v620
        %v633 = vpack.c.bf16 %v631, %v629
        %v634 = vpack.c.bf16 %v632, %v630
        %v637 = vunpack.c.l.b16 %v633
        %v638 = vunpack.c.l.b16 %v634
        %v639 = vunpack.c.h.b16 %v633
        %v640 = vunpack.c.h.b16 %v634
        %v641 = vpack.c.b16 %v638, %v637
        %v642 = vpack.c.b16 %v640, %v639
        %645 = vst [vmem:[#allocation3 + $0x88] sm:$0xff] %v641
        %646 = vst [vmem:[#allocation3 + $0xc8] sm:$0xff] %v642
        %v647 = vlaneseq
        %v648 = vshrl.u32 %v647, 7
        %v649 = vsub.s32 2, %v648
        %v650 = vrot.slane %v522, %v649
        %v651 = vlaneseq
        %v652 = vshrl.u32 %v651, 7
        %v653 = vsub.s32 2, %v652
        %v654 = vrot.slane %v523, %v653
        %v655 = vsub.s32 %v527, %v650
        %v656 = vsub.s32 %v527, %v654
        %v657 = vsub.s32 %v528, %v650
        %v658 = vsub.s32 %v528, %v654
        %vm659 = vcmp.eq.s32.totalorder %v655, 0
        %vm660 = vcmp.eq.s32.totalorder %v656, 0
        %vm661 = vcmp.eq.s32.totalorder %v657, 0
        %vm662 = vcmp.eq.s32.totalorder %v658, 0
        %vm663 = vcmp.eq.s32.totalorder %v655, 1
        %vm664 = vcmp.eq.s32.totalorder %v656, 1
        %vm665 = vcmp.eq.s32.totalorder %v657, 1
        %vm666 = vcmp.eq.s32.totalorder %v658, 1
        %v667 = vlaneseq
        %v668 = vshrl.u32 %v667, 7
        %v669 = vsub.s32 2, %v668
        %v670 = vrot.slane %v518, %v669
        %v671 = vlaneseq
        %v672 = vshrl.u32 %v671, 7
        %v673 = vsub.s32 2, %v672
        %v674 = vrot.slane %v519, %v673
        %v675 = vsel %vm663, %v670, 0.0
        %v676 = vsel %vm664, %v674, 0.0
        %v677 = vsel %vm665, %v670, 0.0
        %v678 = vsel %vm666, %v674, 0.0
        %v679 = vlaneseq
        %v680 = vshrl.u32 %v679, 7
        %v681 = vsub.s32 2, %v680
        %v682 = vrot.slane %v545, %v681
        %v683 = vlaneseq
        %v684 = vshrl.u32 %v683, 7
        %v685 = vsub.s32 2, %v684
        %v686 = vrot.slane %v546, %v685
        %v687 = vsel %vm659, %v682, %v675
        %v688 = vsel %vm660, %v686, %v676
        %v689 = vsel %vm661, %v682, %v677
        %v690 = vsel %vm662, %v686, %v678
        %v691 = vpack.c.bf16 %v689, %v687
        %v692 = vpack.c.bf16 %v690, %v688
        %v695 = vunpack.c.l.b16 %v691
        %v696 = vunpack.c.l.b16 %v692
        %v697 = vunpack.c.h.b16 %v691
        %v698 = vunpack.c.h.b16 %v692
        %v699 = vpack.c.b16 %v696, %v695
        %v700 = vpack.c.b16 %v698, %v697
        %703 = vst [vmem:[#allocation3 + $0x110] sm:$0xff] %v699
        %704 = vst [vmem:[#allocation3 + $0x150] sm:$0xff] %v700
        %v705 = vlaneseq
        %v706 = vshrl.u32 %v705, 7
        %v707 = vsub.s32 3, %v706
        %v708 = vrot.slane %v522, %v707
        %v709 = vlaneseq
        %v710 = vshrl.u32 %v709, 7
        %v711 = vsub.s32 3, %v710
        %v712 = vrot.slane %v523, %v711
        %v713 = vsub.s32 %v527, %v708
        %v714 = vsub.s32 %v527, %v712
        %v715 = vsub.s32 %v528, %v708
        %v716 = vsub.s32 %v528, %v712
        %vm717 = vcmp.eq.s32.totalorder %v713, 0
        %vm718 = vcmp.eq.s32.totalorder %v714, 0
        %vm719 = vcmp.eq.s32.totalorder %v715, 0
        %vm720 = vcmp.eq.s32.totalorder %v716, 0
        %vm721 = vcmp.eq.s32.totalorder %v713, 1
        %vm722 = vcmp.eq.s32.totalorder %v714, 1
        %vm723 = vcmp.eq.s32.totalorder %v715, 1
        %vm724 = vcmp.eq.s32.totalorder %v716, 1
        %v725 = vlaneseq
        %v726 = vshrl.u32 %v725, 7
        %v727 = vsub.s32 3, %v726
        %v728 = vrot.slane %v518, %v727
        %v729 = vlaneseq
        %v730 = vshrl.u32 %v729, 7
        %v731 = vsub.s32 3, %v730
        %v732 = vrot.slane %v519, %v731
        %v733 = vsel %vm721, %v728, 0.0
        %v734 = vsel %vm722, %v732, 0.0
        %v735 = vsel %vm723, %v728, 0.0
        %v736 = vsel %vm724, %v732, 0.0
        %v737 = vlaneseq
        %v738 = vshrl.u32 %v737, 7
        %v739 = vsub.s32 3, %v738
        %v740 = vrot.slane %v545, %v739
        %v741 = vlaneseq
        %v742 = vshrl.u32 %v741, 7
        %v743 = vsub.s32 3, %v742
        %v744 = vrot.slane %v546, %v743
        %v745 = vsel %vm717, %v740, %v733
        %v746 = vsel %vm718, %v744, %v734
        %v747 = vsel %vm719, %v740, %v735
        %v748 = vsel %vm720, %v744, %v736
        %v749 = vpack.c.bf16 %v747, %v745
        %v750 = vpack.c.bf16 %v748, %v746
        %v753 = vunpack.c.l.b16 %v749
        %v754 = vunpack.c.l.b16 %v750
        %v755 = vunpack.c.h.b16 %v749
        %v756 = vunpack.c.h.b16 %v750
        %v757 = vpack.c.b16 %v754, %v753
        %v758 = vpack.c.b16 %v756, %v755
        %761 = vst [vmem:[#allocation3 + $0x198] sm:$0xff] %v757
        %762 = vst [vmem:[#allocation3 + $0x1d8] sm:$0xff] %v758
        %v763 = vlaneseq
        %v764 = vshrl.u32 %v763, 7
        %v765 = vsub.s32 4, %v764
        %v766 = vrot.slane %v522, %v765
        %v767 = vlaneseq
        %v768 = vshrl.u32 %v767, 7
        %v769 = vsub.s32 4, %v768
        %v770 = vrot.slane %v523, %v769
        %v771 = vsub.s32 %v527, %v766
        %v772 = vsub.s32 %v527, %v770
        %v773 = vsub.s32 %v528, %v766
        %v774 = vsub.s32 %v528, %v770
        %vm775 = vcmp.eq.s32.totalorder %v771, 0
        %vm776 = vcmp.eq.s32.totalorder %v772, 0
        %vm777 = vcmp.eq.s32.totalorder %v773, 0
        %vm778 = vcmp.eq.s32.totalorder %v774, 0
        %vm779 = vcmp.eq.s32.totalorder %v771, 1
        %vm780 = vcmp.eq.s32.totalorder %v772, 1
        %vm781 = vcmp.eq.s32.totalorder %v773, 1
        %vm782 = vcmp.eq.s32.totalorder %v774, 1
        %v783 = vlaneseq
        %v784 = vshrl.u32 %v783, 7
        %v785 = vsub.s32 4, %v784
        %v786 = vrot.slane %v518, %v785
        %v787 = vlaneseq
        %v788 = vshrl.u32 %v787, 7
        %v789 = vsub.s32 4, %v788
        %v790 = vrot.slane %v519, %v789
        %v791 = vsel %vm779, %v786, 0.0
        %v792 = vsel %vm780, %v790, 0.0
        %v793 = vsel %vm781, %v786, 0.0
        %v794 = vsel %vm782, %v790, 0.0
        %v795 = vlaneseq
        %v796 = vshrl.u32 %v795, 7
        %v797 = vsub.s32 4, %v796
        %v798 = vrot.slane %v545, %v797
        %v799 = vlaneseq
        %v800 = vshrl.u32 %v799, 7
        %v801 = vsub.s32 4, %v800
        %v802 = vrot.slane %v546, %v801
        %v803 = vsel %vm775, %v798, %v791
        %v804 = vsel %vm776, %v802, %v792
        %v805 = vsel %vm777, %v798, %v793
        %v806 = vsel %vm778, %v802, %v794
        %v807 = vpack.c.bf16 %v805, %v803
        %v808 = vpack.c.bf16 %v806, %v804
        %v811 = vunpack.c.l.b16 %v807
        %v812 = vunpack.c.l.b16 %v808
        %v813 = vunpack.c.h.b16 %v807
        %v814 = vunpack.c.h.b16 %v808
        %v815 = vpack.c.b16 %v812, %v811
        %v816 = vpack.c.b16 %v814, %v813
        %819 = vst [vmem:[#allocation3 + $0x220] sm:$0xff] %v815
        %820 = vst [vmem:[#allocation3 + $0x260] sm:$0xff] %v816
        %v821 = vlaneseq
        %v822 = vshrl.u32 %v821, 7
        %v823 = vsub.s32 5, %v822
        %v824 = vrot.slane %v522, %v823
        %v825 = vlaneseq
        %v826 = vshrl.u32 %v825, 7
        %v827 = vsub.s32 5, %v826
        %v828 = vrot.slane %v523, %v827
        %v829 = vsub.s32 %v527, %v824
        %v830 = vsub.s32 %v527, %v828
        %v831 = vsub.s32 %v528, %v824
        %v832 = vsub.s32 %v528, %v828
        %vm833 = vcmp.eq.s32.totalorder %v829, 0
        %vm834 = vcmp.eq.s32.totalorder %v830, 0
        %vm835 = vcmp.eq.s32.totalorder %v831, 0
        %vm836 = vcmp.eq.s32.totalorder %v832, 0
        %vm837 = vcmp.eq.s32.totalorder %v829, 1
        %vm838 = vcmp.eq.s32.totalorder %v830, 1
        %vm839 = vcmp.eq.s32.totalorder %v831, 1
        %vm840 = vcmp.eq.s32.totalorder %v832, 1
        %v841 = vlaneseq
        %v842 = vshrl.u32 %v841, 7
        %v843 = vsub.s32 5, %v842
        %v844 = vrot.slane %v518, %v843
        %v845 = vlaneseq
        %v846 = vshrl.u32 %v845, 7
        %v847 = vsub.s32 5, %v846
        %v848 = vrot.slane %v519, %v847
        %v849 = vsel %vm837, %v844, 0.0
        %v850 = vsel %vm838, %v848, 0.0
        %v851 = vsel %vm839, %v844, 0.0
        %v852 = vsel %vm840, %v848, 0.0
        %v853 = vlaneseq
        %v854 = vshrl.u32 %v853, 7
        %v855 = vsub.s32 5, %v854
        %v856 = vrot.slane %v545, %v855
        %v857 = vlaneseq
        %v858 = vshrl.u32 %v857, 7
        %v859 = vsub.s32 5, %v858
        %v860 = vrot.slane %v546, %v859
        %v861 = vsel %vm833, %v856, %v849
        %v862 = vsel %vm834, %v860, %v850
        %v863 = vsel %vm835, %v856, %v851
        %v864 = vsel %vm836, %v860, %v852
        %v865 = vpack.c.bf16 %v863, %v861
        %v866 = vpack.c.bf16 %v864, %v862
        %v869 = vunpack.c.l.b16 %v865
        %v870 = vunpack.c.l.b16 %v866
        %v871 = vunpack.c.h.b16 %v865
        %v872 = vunpack.c.h.b16 %v866
        %v873 = vpack.c.b16 %v870, %v869
        %v874 = vpack.c.b16 %v872, %v871
        %877 = vst [vmem:[#allocation3 + $0x2a8] sm:$0xff] %v873
        %878 = vst [vmem:[#allocation3 + $0x2e8] sm:$0xff] %v874
        %v879 = vlaneseq
        %v880 = vshrl.u32 %v879, 7
        %v881 = vsub.s32 6, %v880
        %v882 = vrot.slane %v522, %v881
        %v883 = vlaneseq
        %v884 = vshrl.u32 %v883, 7
        %v885 = vsub.s32 6, %v884
        %v886 = vrot.slane %v523, %v885
        %v887 = vsub.s32 %v527, %v882
        %v888 = vsub.s32 %v527, %v886
        %v889 = vsub.s32 %v528, %v882
        %v890 = vsub.s32 %v528, %v886
        %vm891 = vcmp.eq.s32.totalorder %v887, 0
        %vm892 = vcmp.eq.s32.totalorder %v888, 0
        %vm893 = vcmp.eq.s32.totalorder %v889, 0
        %vm894 = vcmp.eq.s32.totalorder %v890, 0
        %vm895 = vcmp.eq.s32.totalorder %v887, 1
        %vm896 = vcmp.eq.s32.totalorder %v888, 1
        %vm897 = vcmp.eq.s32.totalorder %v889, 1
        %vm898 = vcmp.eq.s32.totalorder %v890, 1
        %v899 = vlaneseq
        %v900 = vshrl.u32 %v899, 7
        %v901 = vsub.s32 6, %v900
        %v902 = vrot.slane %v518, %v901
        %v903 = vlaneseq
        %v904 = vshrl.u32 %v903, 7
        %v905 = vsub.s32 6, %v904
        %v906 = vrot.slane %v519, %v905
        %v907 = vsel %vm895, %v902, 0.0
        %v908 = vsel %vm896, %v906, 0.0
        %v909 = vsel %vm897, %v902, 0.0
        %v910 = vsel %vm898, %v906, 0.0
        %v911 = vlaneseq
        %v912 = vshrl.u32 %v911, 7
        %v913 = vsub.s32 6, %v912
        %v914 = vrot.slane %v545, %v913
        %v915 = vlaneseq
        %v916 = vshrl.u32 %v915, 7
        %v917 = vsub.s32 6, %v916
        %v918 = vrot.slane %v546, %v917
        %v919 = vsel %vm891, %v914, %v907
        %v920 = vsel %vm892, %v918, %v908
        %v921 = vsel %vm893, %v914, %v909
        %v922 = vsel %vm894, %v918, %v910
        %v923 = vpack.c.bf16 %v921, %v919
        %v924 = vpack.c.bf16 %v922, %v920
        %v927 = vunpack.c.l.b16 %v923
        %v928 = vunpack.c.l.b16 %v924
        %v929 = vunpack.c.h.b16 %v923
        %v930 = vunpack.c.h.b16 %v924
        %v931 = vpack.c.b16 %v928, %v927
        %v932 = vpack.c.b16 %v930, %v929
        %935 = vst [vmem:[#allocation3 + $0x330] sm:$0xff] %v931
        %936 = vst [vmem:[#allocation3 + $0x370] sm:$0xff] %v932
        %v937 = vlaneseq
        %v938 = vshrl.u32 %v937, 7
        %v939 = vsub.s32 7, %v938
        %v940 = vrot.slane %v522, %v939
        %v941 = vlaneseq
        %v942 = vshrl.u32 %v941, 7
        %v943 = vsub.s32 7, %v942
        %v944 = vrot.slane %v523, %v943
        %v945 = vsub.s32 %v527, %v940
        %v946 = vsub.s32 %v527, %v944
        %v947 = vsub.s32 %v528, %v940
        %v948 = vsub.s32 %v528, %v944
        %vm949 = vcmp.eq.s32.totalorder %v945, 0
        %vm950 = vcmp.eq.s32.totalorder %v946, 0
        %vm951 = vcmp.eq.s32.totalorder %v947, 0
        %vm952 = vcmp.eq.s32.totalorder %v948, 0
        %vm953 = vcmp.eq.s32.totalorder %v945, 1
        %vm954 = vcmp.eq.s32.totalorder %v946, 1
        %vm955 = vcmp.eq.s32.totalorder %v947, 1
        %vm956 = vcmp.eq.s32.totalorder %v948, 1
        %v957 = vlaneseq
        %v958 = vshrl.u32 %v957, 7
        %v959 = vsub.s32 7, %v958
        %v960 = vrot.slane %v518, %v959
        %v961 = vlaneseq
        %v962 = vshrl.u32 %v961, 7
        %v963 = vsub.s32 7, %v962
        %v964 = vrot.slane %v519, %v963
        %v965 = vsel %vm953, %v960, 0.0
        %v966 = vsel %vm954, %v964, 0.0
        %v967 = vsel %vm955, %v960, 0.0
        %v968 = vsel %vm956, %v964, 0.0
        %v969 = vlaneseq
        %v970 = vshrl.u32 %v969, 7
        %v971 = vsub.s32 7, %v970
        %v972 = vrot.slane %v545, %v971
        %v973 = vlaneseq
        %v974 = vshrl.u32 %v973, 7
        %v975 = vsub.s32 7, %v974
        %v976 = vrot.slane %v546, %v975
        %v977 = vsel %vm949, %v972, %v965
        %v978 = vsel %vm950, %v976, %v966
        %v979 = vsel %vm951, %v972, %v967
        %v980 = vsel %vm952, %v976, %v968
        %v981 = vpack.c.bf16 %v979, %v977
        %v982 = vpack.c.bf16 %v980, %v978
        %v985 = vunpack.c.l.b16 %v981
        %v986 = vunpack.c.l.b16 %v982
        %v987 = vunpack.c.h.b16 %v981
        %v988 = vunpack.c.h.b16 %v982
        %v989 = vpack.c.b16 %v986, %v985
        %v990 = vpack.c.b16 %v988, %v987
        %993 = vst [vmem:[#allocation3 + $0x3b8] sm:$0xff] %v989
        %994 = vst [vmem:[#allocation3 + $0x3f8] sm:$0xff] %v990
        %v995 = vld [vmem:[#allocation2] sm:$0xf]
        %v996 = vld [vmem:[#allocation2 + $0x4] sm:$0xf]
        %v997 = vld [vmem:[#allocation3] sm:$0xff]
        %v998 = vld [vmem:[#allocation3 + $0x8] sm:$0xff]
        %v999 = vld [vmem:[#allocation3 + $0x10] sm:$0xff]
        %v1000 = vld [vmem:[#allocation3 + $0x18] sm:$0xff]
        %v1001 = vld [vmem:[#allocation3 + $0x20] sm:$0xff]
        %v1002 = vld [vmem:[#allocation3 + $0x28] sm:$0xff]
        %v1003 = vld [vmem:[#allocation3 + $0x30] sm:$0xff]
        %v1004 = vld [vmem:[#allocation3 + $0x38] sm:$0xff]
        %v1005 = vld [vmem:[#allocation3 + $0x40] sm:$0xff]
        %v1006 = vld [vmem:[#allocation3 + $0x48] sm:$0xff]
        %v1007 = vld [vmem:[#allocation3 + $0x50] sm:$0xff]
        %v1008 = vld [vmem:[#allocation3 + $0x58] sm:$0xff]
        %v1009 = vld [vmem:[#allocation3 + $0x60] sm:$0xff]
        %v1010 = vld [vmem:[#allocation3 + $0x68] sm:$0xff]
        %v1011 = vld [vmem:[#allocation3 + $0x70] sm:$0xff]
        %v1012 = vld [vmem:[#allocation3 + $0x78] sm:$0xff]
        %v1013 = vld [vmem:[#allocation3 + $0x80] sm:$0xff]
        %v1014 = vld [vmem:[#allocation3 + $0x88] sm:$0xff]
        %v1015 = vld [vmem:[#allocation3 + $0x90] sm:$0xff]
        %v1016 = vld [vmem:[#allocation3 + $0x98] sm:$0xff]
        %v1017 = vld [vmem:[#allocation3 + $0xa0] sm:$0xff]
        %v1018 = vld [vmem:[#allocation3 + $0xa8] sm:$0xff]
        %v1019 = vld [vmem:[#allocation3 + $0xb0] sm:$0xff]
        %v1020 = vld [vmem:[#allocation3 + $0xb8] sm:$0xff]
        %v1021 = vld [vmem:[#allocation3 + $0xc0] sm:$0xff]
        %v1022 = vld [vmem:[#allocation3 + $0xc8] sm:$0xff]
        %v1023 = vld [vmem:[#allocation3 + $0xd0] sm:$0xff]
        %v1024 = vld [vmem:[#allocation3 + $0xd8] sm:$0xff]
        %v1025 = vld [vmem:[#allocation3 + $0xe0] sm:$0xff]
        %v1026 = vld [vmem:[#allocation3 + $0xe8] sm:$0xff]
        %v1027 = vld [vmem:[#allocation3 + $0xf0] sm:$0xff]
        %v1028 = vld [vmem:[#allocation3 + $0xf8] sm:$0xff]
        %v1029 = vld [vmem:[#allocation3 + $0x100] sm:$0xff]
        %v1030 = vld [vmem:[#allocation3 + $0x108] sm:$0xff]
        %v1031 = vld [vmem:[#allocation3 + $0x110] sm:$0xff]
        %v1032 = vld [vmem:[#allocation3 + $0x118] sm:$0xff]
        %v1033 = vld [vmem:[#allocation3 + $0x120] sm:$0xff]
        %v1034 = vld [vmem:[#allocation3 + $0x128] sm:$0xff]
        %v1035 = vld [vmem:[#allocation3 + $0x130] sm:$0xff]
        %v1036 = vld [vmem:[#allocation3 + $0x138] sm:$0xff]
        %v1037 = vld [vmem:[#allocation3 + $0x140] sm:$0xff]
        %v1038 = vld [vmem:[#allocation3 + $0x148] sm:$0xff]
        %v1039 = vld [vmem:[#allocation3 + $0x150] sm:$0xff]
        %v1040 = vld [vmem:[#allocation3 + $0x158] sm:$0xff]
        %v1041 = vld [vmem:[#allocation3 + $0x160] sm:$0xff]
        %v1042 = vld [vmem:[#allocation3 + $0x168] sm:$0xff]
        %v1043 = vld [vmem:[#allocation3 + $0x170] sm:$0xff]
        %v1044 = vld [vmem:[#allocation3 + $0x178] sm:$0xff]
        %v1045 = vld [vmem:[#allocation3 + $0x180] sm:$0xff]
        %v1046 = vld [vmem:[#allocation3 + $0x188] sm:$0xff]
        %v1047 = vld [vmem:[#allocation3 + $0x190] sm:$0xff]
        %v1048 = vld [vmem:[#allocation3 + $0x198] sm:$0xff]
        %v1049 = vld [vmem:[#allocation3 + $0x1a0] sm:$0xff]
        %v1050 = vld [vmem:[#allocation3 + $0x1a8] sm:$0xff]
        %v1051 = vld [vmem:[#allocation3 + $0x1b0] sm:$0xff]
        %v1052 = vld [vmem:[#allocation3 + $0x1b8] sm:$0xff]
        %v1053 = vld [vmem:[#allocation3 + $0x1c0] sm:$0xff]
        %v1054 = vld [vmem:[#allocation3 + $0x1c8] sm:$0xff]
        %v1055 = vld [vmem:[#allocation3 + $0x1d0] sm:$0xff]
        %v1056 = vld [vmem:[#allocation3 + $0x1d8] sm:$0xff]
        %v1057 = vld [vmem:[#allocation3 + $0x1e0] sm:$0xff]
        %v1058 = vld [vmem:[#allocation3 + $0x1e8] sm:$0xff]
        %v1059 = vld [vmem:[#allocation3 + $0x1f0] sm:$0xff]
        %v1060 = vld [vmem:[#allocation3 + $0x1f8] sm:$0xff]
        %v1061 = vld [vmem:[#allocation3 + $0x200] sm:$0xff]
        %v1062 = vld [vmem:[#allocation3 + $0x208] sm:$0xff]
        %v1063 = vld [vmem:[#allocation3 + $0x210] sm:$0xff]
        %v1064 = vld [vmem:[#allocation3 + $0x218] sm:$0xff]
        %v1065 = vld [vmem:[#allocation3 + $0x220] sm:$0xff]
        %v1066 = vld [vmem:[#allocation3 + $0x228] sm:$0xff]
        %v1067 = vld [vmem:[#allocation3 + $0x230] sm:$0xff]
        %v1068 = vld [vmem:[#allocation3 + $0x238] sm:$0xff]
        %v1069 = vld [vmem:[#allocation3 + $0x240] sm:$0xff]
        %v1070 = vld [vmem:[#allocation3 + $0x248] sm:$0xff]
        %v1071 = vld [vmem:[#allocation3 + $0x250] sm:$0xff]
        %v1072 = vld [vmem:[#allocation3 + $0x258] sm:$0xff]
        %v1073 = vld [vmem:[#allocation3 + $0x260] sm:$0xff]
        %v1074 = vld [vmem:[#allocation3 + $0x268] sm:$0xff]
        %v1075 = vld [vmem:[#allocation3 + $0x270] sm:$0xff]
        %v1076 = vld [vmem:[#allocation3 + $0x278] sm:$0xff]
        %v1077 = vld [vmem:[#allocation3 + $0x280] sm:$0xff]
        %v1078 = vld [vmem:[#allocation3 + $0x288] sm:$0xff]
        %v1079 = vld [vmem:[#allocation3 + $0x290] sm:$0xff]
        %v1080 = vld [vmem:[#allocation3 + $0x298] sm:$0xff]
        %v1081 = vld [vmem:[#allocation3 + $0x2a0] sm:$0xff]
        %v1082 = vld [vmem:[#allocation3 + $0x2a8] sm:$0xff]
        %v1083 = vld [vmem:[#allocation3 + $0x2b0] sm:$0xff]
        %v1084 = vld [vmem:[#allocation3 + $0x2b8] sm:$0xff]
        %v1085 = vld [vmem:[#allocation3 + $0x2c0] sm:$0xff]
        %v1086 = vld [vmem:[#allocation3 + $0x2c8] sm:$0xff]
        %v1087 = vld [vmem:[#allocation3 + $0x2d0] sm:$0xff]
        %v1088 = vld [vmem:[#allocation3 + $0x2d8] sm:$0xff]
        %v1089 = vld [vmem:[#allocation3 + $0x2e0] sm:$0xff]
        %v1090 = vld [vmem:[#allocation3 + $0x2e8] sm:$0xff]
        %v1091 = vld [vmem:[#allocation3 + $0x2f0] sm:$0xff]
        %v1092 = vld [vmem:[#allocation3 + $0x2f8] sm:$0xff]
        %v1093 = vld [vmem:[#allocation3 + $0x300] sm:$0xff]
        %v1094 = vld [vmem:[#allocation3 + $0x308] sm:$0xff]
        %v1095 = vld [vmem:[#allocation3 + $0x310] sm:$0xff]
        %v1096 = vld [vmem:[#allocation3 + $0x318] sm:$0xff]
        %v1097 = vld [vmem:[#allocation3 + $0x320] sm:$0xff]
        %v1098 = vld [vmem:[#allocation3 + $0x328] sm:$0xff]
        %v1099 = vld [vmem:[#allocation3 + $0x330] sm:$0xff]
        %v1100 = vld [vmem:[#allocation3 + $0x338] sm:$0xff]
        %v1101 = vld [vmem:[#allocation3 + $0x340] sm:$0xff]
        %v1102 = vld [vmem:[#allocation3 + $0x348] sm:$0xff]
        %v1103 = vld [vmem:[#allocation3 + $0x350] sm:$0xff]
        %v1104 = vld [vmem:[#allocation3 + $0x358] sm:$0xff]
        %v1105 = vld [vmem:[#allocation3 + $0x360] sm:$0xff]
        %v1106 = vld [vmem:[#allocation3 + $0x368] sm:$0xff]
        %v1107 = vld [vmem:[#allocation3 + $0x370] sm:$0xff]
        %v1108 = vld [vmem:[#allocation3 + $0x378] sm:$0xff]
        %v1109 = vld [vmem:[#allocation3 + $0x380] sm:$0xff]
        %v1110 = vld [vmem:[#allocation3 + $0x388] sm:$0xff]
        %v1111 = vld [vmem:[#allocation3 + $0x390] sm:$0xff]
        %v1112 = vld [vmem:[#allocation3 + $0x398] sm:$0xff]
        %v1113 = vld [vmem:[#allocation3 + $0x3a0] sm:$0xff]
        %v1114 = vld [vmem:[#allocation3 + $0x3a8] sm:$0xff]
        %v1115 = vld [vmem:[#allocation3 + $0x3b0] sm:$0xff]
        %v1116 = vld [vmem:[#allocation3 + $0x3b8] sm:$0xff]
        %v1117 = vld [vmem:[#allocation3 + $0x3c0] sm:$0xff]
        %v1118 = vld [vmem:[#allocation3 + $0x3c8] sm:$0xff]
        %v1119 = vld [vmem:[#allocation3 + $0x3d0] sm:$0xff]
        %v1120 = vld [vmem:[#allocation3 + $0x3d8] sm:$0xff]
        %v1121 = vld [vmem:[#allocation3 + $0x3e0] sm:$0xff]
        %v1122 = vld [vmem:[#allocation3 + $0x3e8] sm:$0xff]
        %v1123 = vld [vmem:[#allocation3 + $0x3f0] sm:$0xff]
        %v1124 = vld [vmem:[#allocation3 + $0x3f8] sm:$0xff]
        %v1127 = vunpack.c.l.b16 %v995
        %v1128 = vunpack.c.l.b16 %v996
        %v1129 = vpack.c.b16 %v1128, %v1127
        %v1259 = vunpack.c.l.b16 %v997
        %v1260 = vunpack.c.h.b16 %v997
        %v1261 = vunpack.c.l.b16 %v998
        %v1262 = vunpack.c.h.b16 %v998
        %v1263 = vunpack.c.l.b16 %v999
        %v1264 = vunpack.c.h.b16 %v999
        %v1265 = vunpack.c.l.b16 %v1000
        %v1266 = vunpack.c.h.b16 %v1000
        %v1267 = vunpack.c.l.b16 %v1001
        %v1268 = vunpack.c.h.b16 %v1001
        %v1269 = vunpack.c.l.b16 %v1002
        %v1270 = vunpack.c.h.b16 %v1002
        %v1271 = vunpack.c.l.b16 %v1003
        %v1272 = vunpack.c.h.b16 %v1003
        %v1273 = vunpack.c.l.b16 %v1004
        %v1274 = vunpack.c.h.b16 %v1004
        %v1275 = vunpack.c.l.b16 %v1005
        %v1276 = vunpack.c.h.b16 %v1005
        %v1277 = vunpack.c.l.b16 %v1006
        %v1278 = vunpack.c.h.b16 %v1006
        %v1279 = vunpack.c.l.b16 %v1007
        %v1280 = vunpack.c.h.b16 %v1007
        %v1281 = vunpack.c.l.b16 %v1008
        %v1282 = vunpack.c.h.b16 %v1008
        %v1283 = vunpack.c.l.b16 %v1009
        %v1284 = vunpack.c.h.b16 %v1009
        %v1285 = vunpack.c.l.b16 %v1010
        %v1286 = vunpack.c.h.b16 %v1010
        %v1287 = vunpack.c.l.b16 %v1011
        %v1288 = vunpack.c.h.b16 %v1011
        %v1289 = vunpack.c.l.b16 %v1012
        %v1290 = vunpack.c.h.b16 %v1012
        %v1291 = vunpack.c.l.b16 %v1013
        %v1292 = vunpack.c.h.b16 %v1013
        %v1293 = vunpack.c.l.b16 %v1014
        %v1294 = vunpack.c.h.b16 %v1014
        %v1295 = vunpack.c.l.b16 %v1015
        %v1296 = vunpack.c.h.b16 %v1015
        %v1297 = vunpack.c.l.b16 %v1016
        %v1298 = vunpack.c.h.b16 %v1016
        %v1299 = vunpack.c.l.b16 %v1017
        %v1300 = vunpack.c.h.b16 %v1017
        %v1301 = vunpack.c.l.b16 %v1018
        %v1302 = vunpack.c.h.b16 %v1018
        %v1303 = vunpack.c.l.b16 %v1019
        %v1304 = vunpack.c.h.b16 %v1019
        %v1305 = vunpack.c.l.b16 %v1020
        %v1306 = vunpack.c.h.b16 %v1020
        %v1307 = vunpack.c.l.b16 %v1021
        %v1308 = vunpack.c.h.b16 %v1021
        %v1309 = vunpack.c.l.b16 %v1022
        %v1310 = vunpack.c.h.b16 %v1022
        %v1311 = vunpack.c.l.b16 %v1023
        %v1312 = vunpack.c.h.b16 %v1023
        %v1313 = vunpack.c.l.b16 %v1024
        %v1314 = vunpack.c.h.b16 %v1024
        %v1315 = vunpack.c.l.b16 %v1025
        %v1316 = vunpack.c.h.b16 %v1025
        %v1317 = vunpack.c.l.b16 %v1026
        %v1318 = vunpack.c.h.b16 %v1026
        %v1319 = vunpack.c.l.b16 %v1027
        %v1320 = vunpack.c.h.b16 %v1027
        %v1321 = vunpack.c.l.b16 %v1028
        %v1322 = vunpack.c.h.b16 %v1028
        %v1323 = vunpack.c.l.b16 %v1029
        %v1324 = vunpack.c.h.b16 %v1029
        %v1325 = vunpack.c.l.b16 %v1030
        %v1326 = vunpack.c.h.b16 %v1030
        %v1327 = vunpack.c.l.b16 %v1031
        %v1328 = vunpack.c.h.b16 %v1031
        %v1329 = vunpack.c.l.b16 %v1032
        %v1330 = vunpack.c.h.b16 %v1032
        %v1331 = vunpack.c.l.b16 %v1033
        %v1332 = vunpack.c.h.b16 %v1033
        %v1333 = vunpack.c.l.b16 %v1034
        %v1334 = vunpack.c.h.b16 %v1034
        %v1335 = vunpack.c.l.b16 %v1035
        %v1336 = vunpack.c.h.b16 %v1035
        %v1337 = vunpack.c.l.b16 %v1036
        %v1338 = vunpack.c.h.b16 %v1036
        %v1339 = vunpack.c.l.b16 %v1037
        %v1340 = vunpack.c.h.b16 %v1037
        %v1341 = vunpack.c.l.b16 %v1038
        %v1342 = vunpack.c.h.b16 %v1038
        %v1343 = vunpack.c.l.b16 %v1039
        %v1344 = vunpack.c.h.b16 %v1039
        %v1345 = vunpack.c.l.b16 %v1040
        %v1346 = vunpack.c.h.b16 %v1040
        %v1347 = vunpack.c.l.b16 %v1041
        %v1348 = vunpack.c.h.b16 %v1041
        %v1349 = vunpack.c.l.b16 %v1042
        %v1350 = vunpack.c.h.b16 %v1042
        %v1351 = vunpack.c.l.b16 %v1043
        %v1352 = vunpack.c.h.b16 %v1043
        %v1353 = vunpack.c.l.b16 %v1044
        %v1354 = vunpack.c.h.b16 %v1044
        %v1355 = vunpack.c.l.b16 %v1045
        %v1356 = vunpack.c.h.b16 %v1045
        %v1357 = vunpack.c.l.b16 %v1046
        %v1358 = vunpack.c.h.b16 %v1046
        %v1359 = vunpack.c.l.b16 %v1047
        %v1360 = vunpack.c.h.b16 %v1047
        %v1361 = vunpack.c.l.b16 %v1048
        %v1362 = vunpack.c.h.b16 %v1048
        %v1363 = vunpack.c.l.b16 %v1049
        %v1364 = vunpack.c.h.b16 %v1049
        %v1365 = vunpack.c.l.b16 %v1050
        %v1366 = vunpack.c.h.b16 %v1050
        %v1367 = vunpack.c.l.b16 %v1051
        %v1368 = vunpack.c.h.b16 %v1051
        %v1369 = vunpack.c.l.b16 %v1052
        %v1370 = vunpack.c.h.b16 %v1052
        %v1371 = vunpack.c.l.b16 %v1053
        %v1372 = vunpack.c.h.b16 %v1053
        %v1373 = vunpack.c.l.b16 %v1054
        %v1374 = vunpack.c.h.b16 %v1054
        %v1375 = vunpack.c.l.b16 %v1055
        %v1376 = vunpack.c.h.b16 %v1055
        %v1377 = vunpack.c.l.b16 %v1056
        %v1378 = vunpack.c.h.b16 %v1056
        %v1379 = vunpack.c.l.b16 %v1057
        %v1380 = vunpack.c.h.b16 %v1057
        %v1381 = vunpack.c.l.b16 %v1058
        %v1382 = vunpack.c.h.b16 %v1058
        %v1383 = vunpack.c.l.b16 %v1059
        %v1384 = vunpack.c.h.b16 %v1059
        %v1385 = vunpack.c.l.b16 %v1060
        %v1386 = vunpack.c.h.b16 %v1060
        %v1387 = vunpack.c.l.b16 %v1061
        %v1388 = vunpack.c.h.b16 %v1061
        %v1389 = vunpack.c.l.b16 %v1062
        %v1390 = vunpack.c.h.b16 %v1062
        %v1391 = vunpack.c.l.b16 %v1063
        %v1392 = vunpack.c.h.b16 %v1063
        %v1393 = vunpack.c.l.b16 %v1064
        %v1394 = vunpack.c.h.b16 %v1064
        %v1395 = vunpack.c.l.b16 %v1065
        %v1396 = vunpack.c.h.b16 %v1065
        %v1397 = vunpack.c.l.b16 %v1066
        %v1398 = vunpack.c.h.b16 %v1066
        %v1399 = vunpack.c.l.b16 %v1067
        %v1400 = vunpack.c.h.b16 %v1067
        %v1401 = vunpack.c.l.b16 %v1068
        %v1402 = vunpack.c.h.b16 %v1068
        %v1403 = vunpack.c.l.b16 %v1069
        %v1404 = vunpack.c.h.b16 %v1069
        %v1405 = vunpack.c.l.b16 %v1070
        %v1406 = vunpack.c.h.b16 %v1070
        %v1407 = vunpack.c.l.b16 %v1071
        %v1408 = vunpack.c.h.b16 %v1071
        %v1409 = vunpack.c.l.b16 %v1072
        %v1410 = vunpack.c.h.b16 %v1072
        %v1411 = vunpack.c.l.b16 %v1073
        %v1412 = vunpack.c.h.b16 %v1073
        %v1413 = vunpack.c.l.b16 %v1074
        %v1414 = vunpack.c.h.b16 %v1074
        %v1415 = vunpack.c.l.b16 %v1075
        %v1416 = vunpack.c.h.b16 %v1075
        %v1417 = vunpack.c.l.b16 %v1076
        %v1418 = vunpack.c.h.b16 %v1076
        %v1419 = vunpack.c.l.b16 %v1077
        %v1420 = vunpack.c.h.b16 %v1077
        %v1421 = vunpack.c.l.b16 %v1078
        %v1422 = vunpack.c.h.b16 %v1078
        %v1423 = vunpack.c.l.b16 %v1079
        %v1424 = vunpack.c.h.b16 %v1079
        %v1425 = vunpack.c.l.b16 %v1080
        %v1426 = vunpack.c.h.b16 %v1080
        %v1427 = vunpack.c.l.b16 %v1081
        %v1428 = vunpack.c.h.b16 %v1081
        %v1429 = vunpack.c.l.b16 %v1082
        %v1430 = vunpack.c.h.b16 %v1082
        %v1431 = vunpack.c.l.b16 %v1083
        %v1432 = vunpack.c.h.b16 %v1083
        %v1433 = vunpack.c.l.b16 %v1084
        %v1434 = vunpack.c.h.b16 %v1084
        %v1435 = vunpack.c.l.b16 %v1085
        %v1436 = vunpack.c.h.b16 %v1085
        %v1437 = vunpack.c.l.b16 %v1086
        %v1438 = vunpack.c.h.b16 %v1086
        %v1439 = vunpack.c.l.b16 %v1087
        %v1440 = vunpack.c.h.b16 %v1087
        %v1441 = vunpack.c.l.b16 %v1088
        %v1442 = vunpack.c.h.b16 %v1088
        %v1443 = vunpack.c.l.b16 %v1089
        %v1444 = vunpack.c.h.b16 %v1089
        %v1445 = vunpack.c.l.b16 %v1090
        %v1446 = vunpack.c.h.b16 %v1090
        %v1447 = vunpack.c.l.b16 %v1091
        %v1448 = vunpack.c.h.b16 %v1091
        %v1449 = vunpack.c.l.b16 %v1092
        %v1450 = vunpack.c.h.b16 %v1092
        %v1451 = vunpack.c.l.b16 %v1093
        %v1452 = vunpack.c.h.b16 %v1093
        %v1453 = vunpack.c.l.b16 %v1094
        %v1454 = vunpack.c.h.b16 %v1094
        %v1455 = vunpack.c.l.b16 %v1095
        %v1456 = vunpack.c.h.b16 %v1095
        %v1457 = vunpack.c.l.b16 %v1096
        %v1458 = vunpack.c.h.b16 %v1096
        %v1459 = vunpack.c.l.b16 %v1097
        %v1460 = vunpack.c.h.b16 %v1097
        %v1461 = vunpack.c.l.b16 %v1098
        %v1462 = vunpack.c.h.b16 %v1098
        %v1463 = vunpack.c.l.b16 %v1099
        %v1464 = vunpack.c.h.b16 %v1099
        %v1465 = vunpack.c.l.b16 %v1100
        %v1466 = vunpack.c.h.b16 %v1100
        %v1467 = vunpack.c.l.b16 %v1101
        %v1468 = vunpack.c.h.b16 %v1101
        %v1469 = vunpack.c.l.b16 %v1102
        %v1470 = vunpack.c.h.b16 %v1102
        %v1471 = vunpack.c.l.b16 %v1103
        %v1472 = vunpack.c.h.b16 %v1103
        %v1473 = vunpack.c.l.b16 %v1104
        %v1474 = vunpack.c.h.b16 %v1104
        %v1475 = vunpack.c.l.b16 %v1105
        %v1476 = vunpack.c.h.b16 %v1105
        %v1477 = vunpack.c.l.b16 %v1106
        %v1478 = vunpack.c.h.b16 %v1106
        %v1479 = vunpack.c.l.b16 %v1107
        %v1480 = vunpack.c.h.b16 %v1107
        %v1481 = vunpack.c.l.b16 %v1108
        %v1482 = vunpack.c.h.b16 %v1108
        %v1483 = vunpack.c.l.b16 %v1109
        %v1484 = vunpack.c.h.b16 %v1109
        %v1485 = vunpack.c.l.b16 %v1110
        %v1486 = vunpack.c.h.b16 %v1110
        %v1487 = vunpack.c.l.b16 %v1111
        %v1488 = vunpack.c.h.b16 %v1111
        %v1489 = vunpack.c.l.b16 %v1112
        %v1490 = vunpack.c.h.b16 %v1112
        %v1491 = vunpack.c.l.b16 %v1113
        %v1492 = vunpack.c.h.b16 %v1113
        %v1493 = vunpack.c.l.b16 %v1114
        %v1494 = vunpack.c.h.b16 %v1114
        %v1495 = vunpack.c.l.b16 %v1115
        %v1496 = vunpack.c.h.b16 %v1115
        %v1497 = vunpack.c.l.b16 %v1116
        %v1498 = vunpack.c.h.b16 %v1116
        %v1499 = vunpack.c.l.b16 %v1117
        %v1500 = vunpack.c.h.b16 %v1117
        %v1501 = vunpack.c.l.b16 %v1118
        %v1502 = vunpack.c.h.b16 %v1118
        %v1503 = vunpack.c.l.b16 %v1119
        %v1504 = vunpack.c.h.b16 %v1119
        %v1505 = vunpack.c.l.b16 %v1120
        %v1506 = vunpack.c.h.b16 %v1120
        %v1507 = vunpack.c.l.b16 %v1121
        %v1508 = vunpack.c.h.b16 %v1121
        %v1509 = vunpack.c.l.b16 %v1122
        %v1510 = vunpack.c.h.b16 %v1122
        %v1511 = vunpack.c.l.b16 %v1123
        %v1512 = vunpack.c.h.b16 %v1123
        %v1513 = vunpack.c.l.b16 %v1124
        %v1514 = vunpack.c.h.b16 %v1124
        %v1515 = vpack.c.b16 %v1275, %v1259
        %v1516 = vpack.c.b16 %v1276, %v1260
        %v1517 = vpack.c.b16 %v1277, %v1261
        %v1518 = vpack.c.b16 %v1278, %v1262
        %v1519 = vpack.c.b16 %v1279, %v1263
        %v1520 = vpack.c.b16 %v1280, %v1264
        %v1521 = vpack.c.b16 %v1281, %v1265
        %v1522 = vpack.c.b16 %v1282, %v1266
        %v1523 = vpack.c.b16 %v1283, %v1267
        %v1524 = vpack.c.b16 %v1284, %v1268
        %v1525 = vpack.c.b16 %v1285, %v1269
        %v1526 = vpack.c.b16 %v1286, %v1270
        %v1527 = vpack.c.b16 %v1287, %v1271
        %v1528 = vpack.c.b16 %v1288, %v1272
        %v1529 = vpack.c.b16 %v1289, %v1273
        %v1530 = vpack.c.b16 %v1290, %v1274
        %v1531 = vpack.c.b16 %v1307, %v1291
        %v1532 = vpack.c.b16 %v1308, %v1292
        %v1533 = vpack.c.b16 %v1309, %v1293
        %v1534 = vpack.c.b16 %v1310, %v1294
        %v1535 = vpack.c.b16 %v1311, %v1295
        %v1536 = vpack.c.b16 %v1312, %v1296
        %v1537 = vpack.c.b16 %v1313, %v1297
        %v1538 = vpack.c.b16 %v1314, %v1298
        %v1539 = vpack.c.b16 %v1315, %v1299
        %v1540 = vpack.c.b16 %v1316, %v1300
        %v1541 = vpack.c.b16 %v1317, %v1301
        %v1542 = vpack.c.b16 %v1318, %v1302
        %v1543 = vpack.c.b16 %v1319, %v1303
        %v1544 = vpack.c.b16 %v1320, %v1304
        %v1545 = vpack.c.b16 %v1321, %v1305
        %v1546 = vpack.c.b16 %v1322, %v1306
        %v1547 = vpack.c.b16 %v1339, %v1323
        %v1548 = vpack.c.b16 %v1340, %v1324
        %v1549 = vpack.c.b16 %v1341, %v1325
        %v1550 = vpack.c.b16 %v1342, %v1326
        %v1551 = vpack.c.b16 %v1343, %v1327
        %v1552 = vpack.c.b16 %v1344, %v1328
        %v1553 = vpack.c.b16 %v1345, %v1329
        %v1554 = vpack.c.b16 %v1346, %v1330
        %v1555 = vpack.c.b16 %v1347, %v1331
        %v1556 = vpack.c.b16 %v1348, %v1332
        %v1557 = vpack.c.b16 %v1349, %v1333
        %v1558 = vpack.c.b16 %v1350, %v1334
        %v1559 = vpack.c.b16 %v1351, %v1335
        %v1560 = vpack.c.b16 %v1352, %v1336
        %v1561 = vpack.c.b16 %v1353, %v1337
        %v1562 = vpack.c.b16 %v1354, %v1338
        %v1563 = vpack.c.b16 %v1371, %v1355
        %v1564 = vpack.c.b16 %v1372, %v1356
        %v1565 = vpack.c.b16 %v1373, %v1357
        %v1566 = vpack.c.b16 %v1374, %v1358
        %v1567 = vpack.c.b16 %v1375, %v1359
        %v1568 = vpack.c.b16 %v1376, %v1360
        %v1569 = vpack.c.b16 %v1377, %v1361
        %v1570 = vpack.c.b16 %v1378, %v1362
        %v1571 = vpack.c.b16 %v1379, %v1363
        %v1572 = vpack.c.b16 %v1380, %v1364
        %v1573 = vpack.c.b16 %v1381, %v1365
        %v1574 = vpack.c.b16 %v1382, %v1366
        %v1575 = vpack.c.b16 %v1383, %v1367
        %v1576 = vpack.c.b16 %v1384, %v1368
        %v1577 = vpack.c.b16 %v1385, %v1369
        %v1578 = vpack.c.b16 %v1386, %v1370
        %v1579 = vpack.c.b16 %v1403, %v1387
        %v1580 = vpack.c.b16 %v1404, %v1388
        %v1581 = vpack.c.b16 %v1405, %v1389
        %v1582 = vpack.c.b16 %v1406, %v1390
        %v1583 = vpack.c.b16 %v1407, %v1391
        %v1584 = vpack.c.b16 %v1408, %v1392
        %v1585 = vpack.c.b16 %v1409, %v1393
        %v1586 = vpack.c.b16 %v1410, %v1394
        %v1587 = vpack.c.b16 %v1411, %v1395
        %v1588 = vpack.c.b16 %v1412, %v1396
        %v1589 = vpack.c.b16 %v1413, %v1397
        %v1590 = vpack.c.b16 %v1414, %v1398
        %v1591 = vpack.c.b16 %v1415, %v1399
        %v1592 = vpack.c.b16 %v1416, %v1400
        %v1593 = vpack.c.b16 %v1417, %v1401
        %v1594 = vpack.c.b16 %v1418, %v1402
        %v1595 = vpack.c.b16 %v1435, %v1419
        %v1596 = vpack.c.b16 %v1436, %v1420
        %v1597 = vpack.c.b16 %v1437, %v1421
        %v1598 = vpack.c.b16 %v1438, %v1422
        %v1599 = vpack.c.b16 %v1439, %v1423
        %v1600 = vpack.c.b16 %v1440, %v1424
        %v1601 = vpack.c.b16 %v1441, %v1425
        %v1602 = vpack.c.b16 %v1442, %v1426
        %v1603 = vpack.c.b16 %v1443, %v1427
        %v1604 = vpack.c.b16 %v1444, %v1428
        %v1605 = vpack.c.b16 %v1445, %v1429
        %v1606 = vpack.c.b16 %v1446, %v1430
        %v1607 = vpack.c.b16 %v1447, %v1431
        %v1608 = vpack.c.b16 %v1448, %v1432
        %v1609 = vpack.c.b16 %v1449, %v1433
        %v1610 = vpack.c.b16 %v1450, %v1434
        %v1611 = vpack.c.b16 %v1467, %v1451
        %v1612 = vpack.c.b16 %v1468, %v1452
        %v1613 = vpack.c.b16 %v1469, %v1453
        %v1614 = vpack.c.b16 %v1470, %v1454
        %v1615 = vpack.c.b16 %v1471, %v1455
        %v1616 = vpack.c.b16 %v1472, %v1456
        %v1617 = vpack.c.b16 %v1473, %v1457
        %v1618 = vpack.c.b16 %v1474, %v1458
        %v1619 = vpack.c.b16 %v1475, %v1459
        %v1620 = vpack.c.b16 %v1476, %v1460
        %v1621 = vpack.c.b16 %v1477, %v1461
        %v1622 = vpack.c.b16 %v1478, %v1462
        %v1623 = vpack.c.b16 %v1479, %v1463
        %v1624 = vpack.c.b16 %v1480, %v1464
        %v1625 = vpack.c.b16 %v1481, %v1465
        %v1626 = vpack.c.b16 %v1482, %v1466
        %v1627 = vpack.c.b16 %v1499, %v1483
        %v1628 = vpack.c.b16 %v1500, %v1484
        %v1629 = vpack.c.b16 %v1501, %v1485
        %v1630 = vpack.c.b16 %v1502, %v1486
        %v1631 = vpack.c.b16 %v1503, %v1487
        %v1632 = vpack.c.b16 %v1504, %v1488
        %v1633 = vpack.c.b16 %v1505, %v1489
        %v1634 = vpack.c.b16 %v1506, %v1490
        %v1635 = vpack.c.b16 %v1507, %v1491
        %v1636 = vpack.c.b16 %v1508, %v1492
        %v1637 = vpack.c.b16 %v1509, %v1493
        %v1638 = vpack.c.b16 %v1510, %v1494
        %v1639 = vpack.c.b16 %v1511, %v1495
        %v1640 = vpack.c.b16 %v1512, %v1496
        %v1641 = vpack.c.b16 %v1513, %v1497
        %v1642 = vpack.c.b16 %v1514, %v1498
        %1771 = vmatprep.subr.bf16.mxu0 %v1628
        %1772 = vmatpush1.bf16.msra.mxu0 %v1627
        %1773 = vmatprep.subr.bf16.mxu0 %v1612
        %1774 = vmatpush1.bf16.msra.mxu0 %v1611
        %1775 = vmatprep.subr.bf16.mxu0 %v1596
        %1776 = vmatpush1.bf16.msra.mxu0 %v1595
        %1777 = vmatprep.subr.bf16.mxu0 %v1580
        %1778 = vmatpush1.bf16.msra.mxu0 %v1579
        %1779 = vmatprep.subr.bf16.mxu0 %v1564
        %1780 = vmatpush1.bf16.msra.mxu0 %v1563
        %1781 = vmatprep.subr.bf16.mxu0 %v1548
        %1782 = vmatpush1.bf16.msra.mxu0 %v1547
        %1783 = vmatprep.subr.bf16.mxu0 %v1532
        %1784 = vmatpush1.bf16.msra.mxu0 %v1531
        %1785 = vmatprep.subr.bf16.mxu0 %v1516
        %1786 = vmatpush1.bf16.msra.mxu0 %v1515
        %1787 = vmatprep.subr.bf16.mxu0 0
        %1788 = vmatpush2.bf16.msra.mxu0 0
        %1789 = vmatprep.subr.bf16.mxu0 0
        %1790 = vmatpush2.bf16.msra.mxu0 0
        %1791 = vmatprep.subr.bf16.mxu0 0
        %1792 = vmatpush2.bf16.msra.mxu0 0
        %1793 = vmatprep.subr.bf16.mxu0 0
        %1794 = vmatpush2.bf16.msra.mxu0 0
        %1795 = vmatprep.subr.bf16.mxu0 0
        %1796 = vmatpush2.bf16.msra.mxu0 0
        %1797 = vmatprep.subr.bf16.mxu0 0
        %1798 = vmatpush2.bf16.msra.mxu0 0
        %1799 = vmatprep.subr.bf16.mxu0 0
        %1800 = vmatpush2.bf16.msra.mxu0 0
        %1801 = vmatprep.subr.bf16.mxu0 0
        %1802 = vmatpush2.bf16.msra.mxu0 0
        %1803 = vmatprep.mubr.bf16.mxu0 0
        %1804 = vmatmul.mubr.bf16.gmra.mxu0 %v1129
        %v1805 = vpop.f32.mrf.mxu0
        %v1806 = vadd.f32 0.0, %v1805
        %v1807 = vpop.f32.mrf.mxu0
        %v1808 = vadd.f32 0.0, %v1807
        %v1809 = vpop.f32.mrf.mxu0
        %v1810 = vadd.f32 0.0, %v1809
        %v1811 = vpop.f32.mrf.mxu0
        %v1812 = vadd.f32 0.0, %v1811
        %1813 = vdwg.mxu0
        %1814 = vmatprep.subr.bf16.mxu0 %v1630
        %1815 = vmatpush1.bf16.msra.mxu0 %v1629
        %1816 = vmatprep.subr.bf16.mxu0 %v1614
        %1817 = vmatpush1.bf16.msra.mxu0 %v1613
        %1818 = vmatprep.subr.bf16.mxu0 %v1598
        %1819 = vmatpush1.bf16.msra.mxu0 %v1597
        %1820 = vmatprep.subr.bf16.mxu0 %v1582
        %1821 = vmatpush1.bf16.msra.mxu0 %v1581
        %1822 = vmatprep.subr.bf16.mxu0 %v1566
        %1823 = vmatpush1.bf16.msra.mxu0 %v1565
        %1824 = vmatprep.subr.bf16.mxu0 %v1550
        %1825 = vmatpush1.bf16.msra.mxu0 %v1549
        %1826 = vmatprep.subr.bf16.mxu0 %v1534
        %1827 = vmatpush1.bf16.msra.mxu0 %v1533
        %1828 = vmatprep.subr.bf16.mxu0 %v1518
        %1829 = vmatpush1.bf16.msra.mxu0 %v1517
        %1830 = vmatprep.subr.bf16.mxu0 0
        %1831 = vmatpush2.bf16.msra.mxu0 0
        %1832 = vmatprep.subr.bf16.mxu0 0
        %1833 = vmatpush2.bf16.msra.mxu0 0
        %1834 = vmatprep.subr.bf16.mxu0 0
        %1835 = vmatpush2.bf16.msra.mxu0 0
        %1836 = vmatprep.subr.bf16.mxu0 0
        %1837 = vmatpush2.bf16.msra.mxu0 0
        %1838 = vmatprep.subr.bf16.mxu0 0
        %1839 = vmatpush2.bf16.msra.mxu0 0
        %1840 = vmatprep.subr.bf16.mxu0 0
        %1841 = vmatpush2.bf16.msra.mxu0 0
        %1842 = vmatprep.subr.bf16.mxu0 0
        %1843 = vmatpush2.bf16.msra.mxu0 0
        %1844 = vmatprep.subr.bf16.mxu0 0
        %1845 = vmatpush2.bf16.msra.mxu0 0
        %1846 = vmatprep.mubr.bf16.mxu0 0
        %1847 = vmatmul.mubr.bf16.gmra.mxu0 %v1129
        %v1848 = vpop.f32.mrf.mxu0
        %v1849 = vadd.f32 0.0, %v1848
        %v1850 = vpop.f32.mrf.mxu0
        %v1851 = vadd.f32 0.0, %v1850
        %v1852 = vpop.f32.mrf.mxu0
        %v1853 = vadd.f32 0.0, %v1852
        %v1854 = vpop.f32.mrf.mxu0
        %v1855 = vadd.f32 0.0, %v1854
        %1856 = vdwg.mxu0
        %1857 = vmatprep.subr.bf16.mxu0 %v1632
        %1858 = vmatpush1.bf16.msra.mxu0 %v1631
        %1859 = vmatprep.subr.bf16.mxu0 %v1616
        %1860 = vmatpush1.bf16.msra.mxu0 %v1615
        %1861 = vmatprep.subr.bf16.mxu0 %v1600
        %1862 = vmatpush1.bf16.msra.mxu0 %v1599
        %1863 = vmatprep.subr.bf16.mxu0 %v1584
        %1864 = vmatpush1.bf16.msra.mxu0 %v1583
        %1865 = vmatprep.subr.bf16.mxu0 %v1568
        %1866 = vmatpush1.bf16.msra.mxu0 %v1567
        %1867 = vmatprep.subr.bf16.mxu0 %v1552
        %1868 = vmatpush1.bf16.msra.mxu0 %v1551
        %1869 = vmatprep.subr.bf16.mxu0 %v1536
        %1870 = vmatpush1.bf16.msra.mxu0 %v1535
        %1871 = vmatprep.subr.bf16.mxu0 %v1520
        %1872 = vmatpush1.bf16.msra.mxu0 %v1519
        %1873 = vmatprep.subr.bf16.mxu0 0
        %1874 = vmatpush2.bf16.msra.mxu0 0
        %1875 = vmatprep.subr.bf16.mxu0 0
        %1876 = vmatpush2.bf16.msra.mxu0 0
        %1877 = vmatprep.subr.bf16.mxu0 0
        %1878 = vmatpush2.bf16.msra.mxu0 0
        %1879 = vmatprep.subr.bf16.mxu0 0
        %1880 = vmatpush2.bf16.msra.mxu0 0
        %1881 = vmatprep.subr.bf16.mxu0 0
        %1882 = vmatpush2.bf16.msra.mxu0 0
        %1883 = vmatprep.subr.bf16.mxu0 0
        %1884 = vmatpush2.bf16.msra.mxu0 0
        %1885 = vmatprep.subr.bf16.mxu0 0
        %1886 = vmatpush2.bf16.msra.mxu0 0
        %1887 = vmatprep.subr.bf16.mxu0 0
        %1888 = vmatpush2.bf16.msra.mxu0 0
        %1889 = vmatprep.mubr.bf16.mxu0 0
        %1890 = vmatmul.mubr.bf16.gmra.mxu0 %v1129
        %v1891 = vpop.f32.mrf.mxu0
        %v1892 = vadd.f32 0.0, %v1891
        %v1893 = vpop.f32.mrf.mxu0
        %v1894 = vadd.f32 0.0, %v1893
        %v1895 = vpop.f32.mrf.mxu0
        %v1896 = vadd.f32 0.0, %v1895
        %v1897 = vpop.f32.mrf.mxu0
        %v1898 = vadd.f32 0.0, %v1897
        %1899 = vdwg.mxu0
        %1900 = vmatprep.subr.bf16.mxu0 %v1634
        %1901 = vmatpush1.bf16.msra.mxu0 %v1633
        %1902 = vmatprep.subr.bf16.mxu0 %v1618
        %1903 = vmatpush1.bf16.msra.mxu0 %v1617
        %1904 = vmatprep.subr.bf16.mxu0 %v1602
        %1905 = vmatpush1.bf16.msra.mxu0 %v1601
        %1906 = vmatprep.subr.bf16.mxu0 %v1586
        %1907 = vmatpush1.bf16.msra.mxu0 %v1585
        %1908 = vmatprep.subr.bf16.mxu0 %v1570
        %1909 = vmatpush1.bf16.msra.mxu0 %v1569
        %1910 = vmatprep.subr.bf16.mxu0 %v1554
        %1911 = vmatpush1.bf16.msra.mxu0 %v1553
        %1912 = vmatprep.subr.bf16.mxu0 %v1538
        %1913 = vmatpush1.bf16.msra.mxu0 %v1537
        %1914 = vmatprep.subr.bf16.mxu0 %v1522
        %1915 = vmatpush1.bf16.msra.mxu0 %v1521
        %1916 = vmatprep.subr.bf16.mxu0 0
        %1917 = vmatpush2.bf16.msra.mxu0 0
        %1918 = vmatprep.subr.bf16.mxu0 0
        %1919 = vmatpush2.bf16.msra.mxu0 0
        %1920 = vmatprep.subr.bf16.mxu0 0
        %1921 = vmatpush2.bf16.msra.mxu0 0
        %1922 = vmatprep.subr.bf16.mxu0 0
        %1923 = vmatpush2.bf16.msra.mxu0 0
        %1924 = vmatprep.subr.bf16.mxu0 0
        %1925 = vmatpush2.bf16.msra.mxu0 0
        %1926 = vmatprep.subr.bf16.mxu0 0
        %1927 = vmatpush2.bf16.msra.mxu0 0
        %1928 = vmatprep.subr.bf16.mxu0 0
        %1929 = vmatpush2.bf16.msra.mxu0 0
        %1930 = vmatprep.subr.bf16.mxu0 0
        %1931 = vmatpush2.bf16.msra.mxu0 0
        %1932 = vmatprep.mubr.bf16.mxu0 0
        %1933 = vmatmul.mubr.bf16.gmra.mxu0 %v1129
        %v1934 = vpop.f32.mrf.mxu0
        %v1935 = vadd.f32 0.0, %v1934
        %v1936 = vpop.f32.mrf.mxu0
        %v1937 = vadd.f32 0.0, %v1936
        %v1938 = vpop.f32.mrf.mxu0
        %v1939 = vadd.f32 0.0, %v1938
        %v1940 = vpop.f32.mrf.mxu0
        %v1941 = vadd.f32 0.0, %v1940
        %1942 = vdwg.mxu0
        %1943 = vmatprep.subr.bf16.mxu0 %v1636
        %1944 = vmatpush1.bf16.msra.mxu0 %v1635
        %1945 = vmatprep.subr.bf16.mxu0 %v1620
        %1946 = vmatpush1.bf16.msra.mxu0 %v1619
        %1947 = vmatprep.subr.bf16.mxu0 %v1604
        %1948 = vmatpush1.bf16.msra.mxu0 %v1603
        %1949 = vmatprep.subr.bf16.mxu0 %v1588
        %1950 = vmatpush1.bf16.msra.mxu0 %v1587
        %1951 = vmatprep.subr.bf16.mxu0 %v1572
        %1952 = vmatpush1.bf16.msra.mxu0 %v1571
        %1953 = vmatprep.subr.bf16.mxu0 %v1556
        %1954 = vmatpush1.bf16.msra.mxu0 %v1555
        %1955 = vmatprep.subr.bf16.mxu0 %v1540
        %1956 = vmatpush1.bf16.msra.mxu0 %v1539
        %1957 = vmatprep.subr.bf16.mxu0 %v1524
        %1958 = vmatpush1.bf16.msra.mxu0 %v1523
        %1959 = vmatprep.subr.bf16.mxu0 0
        %1960 = vmatpush2.bf16.msra.mxu0 0
        %1961 = vmatprep.subr.bf16.mxu0 0
        %1962 = vmatpush2.bf16.msra.mxu0 0
        %1963 = vmatprep.subr.bf16.mxu0 0
        %1964 = vmatpush2.bf16.msra.mxu0 0
        %1965 = vmatprep.subr.bf16.mxu0 0
        %1966 = vmatpush2.bf16.msra.mxu0 0
        %1967 = vmatprep.subr.bf16.mxu0 0
        %1968 = vmatpush2.bf16.msra.mxu0 0
        %1969 = vmatprep.subr.bf16.mxu0 0
        %1970 = vmatpush2.bf16.msra.mxu0 0
        %1971 = vmatprep.subr.bf16.mxu0 0
        %1972 = vmatpush2.bf16.msra.mxu0 0
        %1973 = vmatprep.subr.bf16.mxu0 0
        %1974 = vmatpush2.bf16.msra.mxu0 0
        %1975 = vmatprep.mubr.bf16.mxu0 0
        %1976 = vmatmul.mubr.bf16.gmra.mxu0 %v1129
        %v1977 = vpop.f32.mrf.mxu0
        %v1978 = vadd.f32 0.0, %v1977
        %v1979 = vpop.f32.mrf.mxu0
        %v1980 = vadd.f32 0.0, %v1979
        %v1981 = vpop.f32.mrf.mxu0
        %v1982 = vadd.f32 0.0, %v1981
        %v1983 = vpop.f32.mrf.mxu0
        %v1984 = vadd.f32 0.0, %v1983
        %1985 = vdwg.mxu0
        %1986 = vmatprep.subr.bf16.mxu0 %v1638
        %1987 = vmatpush1.bf16.msra.mxu0 %v1637
        %1988 = vmatprep.subr.bf16.mxu0 %v1622
        %1989 = vmatpush1.bf16.msra.mxu0 %v1621
        %1990 = vmatprep.subr.bf16.mxu0 %v1606
        %1991 = vmatpush1.bf16.msra.mxu0 %v1605
        %1992 = vmatprep.subr.bf16.mxu0 %v1590
        %1993 = vmatpush1.bf16.msra.mxu0 %v1589
        %1994 = vmatprep.subr.bf16.mxu0 %v1574
        %1995 = vmatpush1.bf16.msra.mxu0 %v1573
        %1996 = vmatprep.subr.bf16.mxu0 %v1558
        %1997 = vmatpush1.bf16.msra.mxu0 %v1557
        %1998 = vmatprep.subr.bf16.mxu0 %v1542
        %1999 = vmatpush1.bf16.msra.mxu0 %v1541
        %2000 = vmatprep.subr.bf16.mxu0 %v1526
        %2001 = vmatpush1.bf16.msra.mxu0 %v1525
        %2002 = vmatprep.subr.bf16.mxu0 0
        %2003 = vmatpush2.bf16.msra.mxu0 0
        %2004 = vmatprep.subr.bf16.mxu0 0
        %2005 = vmatpush2.bf16.msra.mxu0 0
        %2006 = vmatprep.subr.bf16.mxu0 0
        %2007 = vmatpush2.bf16.msra.mxu0 0
        %2008 = vmatprep.subr.bf16.mxu0 0
        %2009 = vmatpush2.bf16.msra.mxu0 0
        %2010 = vmatprep.subr.bf16.mxu0 0
        %2011 = vmatpush2.bf16.msra.mxu0 0
        %2012 = vmatprep.subr.bf16.mxu0 0
        %2013 = vmatpush2.bf16.msra.mxu0 0
        %2014 = vmatprep.subr.bf16.mxu0 0
        %2015 = vmatpush2.bf16.msra.mxu0 0
        %2016 = vmatprep.subr.bf16.mxu0 0
        %2017 = vmatpush2.bf16.msra.mxu0 0
        %2018 = vmatprep.mubr.bf16.mxu0 0
        %2019 = vmatmul.mubr.bf16.gmra.mxu0 %v1129
        %v2020 = vpop.f32.mrf.mxu0
        %v2021 = vadd.f32 0.0, %v2020
        %v2022 = vpop.f32.mrf.mxu0
        %v2023 = vadd.f32 0.0, %v2022
        %v2024 = vpop.f32.mrf.mxu0
        %v2025 = vadd.f32 0.0, %v2024
        %v2026 = vpop.f32.mrf.mxu0
        %v2027 = vadd.f32 0.0, %v2026
        %2028 = vdwg.mxu0
        %2029 = vmatprep.subr.bf16.mxu0 %v1640
        %2030 = vmatpush1.bf16.msra.mxu0 %v1639
        %2031 = vmatprep.subr.bf16.mxu0 %v1624
        %2032 = vmatpush1.bf16.msra.mxu0 %v1623
        %2033 = vmatprep.subr.bf16.mxu0 %v1608
        %2034 = vmatpush1.bf16.msra.mxu0 %v1607
        %2035 = vmatprep.subr.bf16.mxu0 %v1592
        %2036 = vmatpush1.bf16.msra.mxu0 %v1591
        %2037 = vmatprep.subr.bf16.mxu0 %v1576
        %2038 = vmatpush1.bf16.msra.mxu0 %v1575
        %2039 = vmatprep.subr.bf16.mxu0 %v1560
        %2040 = vmatpush1.bf16.msra.mxu0 %v1559
        %2041 = vmatprep.subr.bf16.mxu0 %v1544
        %2042 = vmatpush1.bf16.msra.mxu0 %v1543
        %2043 = vmatprep.subr.bf16.mxu0 %v1528
        %2044 = vmatpush1.bf16.msra.mxu0 %v1527
        %2045 = vmatprep.subr.bf16.mxu0 0
        %2046 = vmatpush2.bf16.msra.mxu0 0
        %2047 = vmatprep.subr.bf16.mxu0 0
        %2048 = vmatpush2.bf16.msra.mxu0 0
        %2049 = vmatprep.subr.bf16.mxu0 0
        %2050 = vmatpush2.bf16.msra.mxu0 0
        %2051 = vmatprep.subr.bf16.mxu0 0
        %2052 = vmatpush2.bf16.msra.mxu0 0
        %2053 = vmatprep.subr.bf16.mxu0 0
        %2054 = vmatpush2.bf16.msra.mxu0 0
        %2055 = vmatprep.subr.bf16.mxu0 0
        %2056 = vmatpush2.bf16.msra.mxu0 0
        %2057 = vmatprep.subr.bf16.mxu0 0
        %2058 = vmatpush2.bf16.msra.mxu0 0
        %2059 = vmatprep.subr.bf16.mxu0 0
        %2060 = vmatpush2.bf16.msra.mxu0 0
        %2061 = vmatprep.mubr.bf16.mxu0 0
        %2062 = vmatmul.mubr.bf16.gmra.mxu0 %v1129
        %v2063 = vpop.f32.mrf.mxu0
        %v2064 = vadd.f32 0.0, %v2063
        %v2065 = vpop.f32.mrf.mxu0
        %v2066 = vadd.f32 0.0, %v2065
        %v2067 = vpop.f32.mrf.mxu0
        %v2068 = vadd.f32 0.0, %v2067
        %v2069 = vpop.f32.mrf.mxu0
        %v2070 = vadd.f32 0.0, %v2069
        %2071 = vdwg.mxu0
        %2072 = vmatprep.subr.bf16.mxu0 %v1642
        %2073 = vmatpush1.bf16.msra.mxu0 %v1641
        %2074 = vmatprep.subr.bf16.mxu0 %v1626
        %2075 = vmatpush1.bf16.msra.mxu0 %v1625
        %2076 = vmatprep.subr.bf16.mxu0 %v1610
        %2077 = vmatpush1.bf16.msra.mxu0 %v1609
        %2078 = vmatprep.subr.bf16.mxu0 %v1594
        %2079 = vmatpush1.bf16.msra.mxu0 %v1593
        %2080 = vmatprep.subr.bf16.mxu0 %v1578
        %2081 = vmatpush1.bf16.msra.mxu0 %v1577
        %2082 = vmatprep.subr.bf16.mxu0 %v1562
        %2083 = vmatpush1.bf16.msra.mxu0 %v1561
        %2084 = vmatprep.subr.bf16.mxu0 %v1546
        %2085 = vmatpush1.bf16.msra.mxu0 %v1545
        %2086 = vmatprep.subr.bf16.mxu0 %v1530
        %2087 = vmatpush1.bf16.msra.mxu0 %v1529
        %2088 = vmatprep.subr.bf16.mxu0 0
        %2089 = vmatpush2.bf16.msra.mxu0 0
        %2090 = vmatprep.subr.bf16.mxu0 0
        %2091 = vmatpush2.bf16.msra.mxu0 0
        %2092 = vmatprep.subr.bf16.mxu0 0
        %2093 = vmatpush2.bf16.msra.mxu0 0
        %2094 = vmatprep.subr.bf16.mxu0 0
        %2095 = vmatpush2.bf16.msra.mxu0 0
        %2096 = vmatprep.subr.bf16.mxu0 0
        %2097 = vmatpush2.bf16.msra.mxu0 0
        %2098 = vmatprep.subr.bf16.mxu0 0
        %2099 = vmatpush2.bf16.msra.mxu0 0
        %2100 = vmatprep.subr.bf16.mxu0 0
        %2101 = vmatpush2.bf16.msra.mxu0 0
        %2102 = vmatprep.subr.bf16.mxu0 0
        %2103 = vmatpush2.bf16.msra.mxu0 0
        %2104 = vmatprep.mubr.bf16.mxu0 0
        %2105 = vmatmul.mubr.bf16.gmra.mxu0 %v1129
        %v2106 = vpop.f32.mrf.mxu0
        %v2107 = vadd.f32 0.0, %v2106
        %v2108 = vpop.f32.mrf.mxu0
        %v2109 = vadd.f32 0.0, %v2108
        %v2110 = vpop.f32.mrf.mxu0
        %v2111 = vadd.f32 0.0, %v2110
        %v2112 = vpop.f32.mrf.mxu0
        %v2113 = vadd.f32 0.0, %v2112
        %2114 = vdwg.mxu0
        %v2115 = vlaneseq
        %v2116 = vshrl.u32 %v2115, 7
        %v2117 = vsub.s32 0, %v2116
        %v2118 = vrot.slane %v524, %v2117
        %v2119 = vlaneseq
        %v2120 = vshrl.u32 %v2119, 7
        %v2121 = vsub.s32 0, %v2120
        %v2122 = vrot.slane %v525, %v2121
        %v2123 = vsub.s32 %v527, %v2118
        %v2124 = vsub.s32 %v527, %v2122
        %v2125 = vsub.s32 %v528, %v2118
        %v2126 = vsub.s32 %v528, %v2122
        %vm2127 = vcmp.eq.s32.totalorder %v2123, 0
        %vm2128 = vcmp.eq.s32.totalorder %v2124, 0
        %vm2129 = vcmp.eq.s32.totalorder %v2125, 0
        %vm2130 = vcmp.eq.s32.totalorder %v2126, 0
        %v2131 = vsub.f32 1.0, %v520
        %v2132 = vsub.f32 1.0, %v521
        %vm2133 = vcmp.eq.s32.totalorder %v2123, 1
        %vm2134 = vcmp.eq.s32.totalorder %v2124, 1
        %vm2135 = vcmp.eq.s32.totalorder %v2125, 1
        %vm2136 = vcmp.eq.s32.totalorder %v2126, 1
        %v2137 = vlaneseq
        %v2138 = vshrl.u32 %v2137, 7
        %v2139 = vsub.s32 0, %v2138
        %v2140 = vrot.slane %v520, %v2139
        %v2141 = vlaneseq
        %v2142 = vshrl.u32 %v2141, 7
        %v2143 = vsub.s32 0, %v2142
        %v2144 = vrot.slane %v521, %v2143
        %v2145 = vsel %vm2133, %v2140, 0.0
        %v2146 = vsel %vm2134, %v2144, 0.0
        %v2147 = vsel %vm2135, %v2140, 0.0
        %v2148 = vsel %vm2136, %v2144, 0.0
        %v2149 = vlaneseq
        %v2150 = vshrl.u32 %v2149, 7
        %v2151 = vsub.s32 0, %v2150
        %v2152 = vrot.slane %v2131, %v2151
        %v2153 = vlaneseq
        %v2154 = vshrl.u32 %v2153, 7
        %v2155 = vsub.s32 0, %v2154
        %v2156 = vrot.slane %v2132, %v2155
        %v2157 = vsel %vm2127, %v2152, %v2145
        %v2158 = vsel %vm2128, %v2156, %v2146
        %v2159 = vsel %vm2129, %v2152, %v2147
        %v2160 = vsel %vm2130, %v2156, %v2148
        %v2161 = vmul.f32 %v1806, %v2157
        %v2162 = vmul.f32 %v1808, %v2158
        %v2163 = vmul.f32 %v1810, %v2159
        %v2164 = vmul.f32 %v1812, %v2160
        %v2165 = vadd.f32 %v2161, %v2163
        %v2166 = vrot.slane %v2165, 4
        %v2167 = vadd.f32 %v2165, %v2166
        %v2168 = vrot.slane %v2167, 2
        %v2169 = vadd.f32 %v2167, %v2168
        %v2170 = vrot.slane %v2169, 1
        %v2171 = vadd.f32 %v2169, %v2170
        %v2172 = vadd.f32 %v2162, %v2164
        %v2173 = vrot.slane %v2172, 4
        %v2174 = vadd.f32 %v2172, %v2173
        %v2175 = vrot.slane %v2174, 2
        %v2176 = vadd.f32 %v2174, %v2175
        %v2177 = vrot.slane %v2176, 1
        %v2178 = vadd.f32 %v2176, %v2177
        %v2181 = vcombine.low %v2171, %v2178
        %v2183 = vunpack.c.l.s4 1966171168
        %v2184 = vunpack.c.0.s8 %v2183
        %v2185 = vlaneseq
        %v2186 = vshrl.u32 %v2185, 7
        %v2187 = vsub.s32 %v2184, %v2186
        %v2188 = vrot.slane %v2181, %v2187
        %v2190 = vunpack.c.l.s4 1966171168
        %v2191 = vunpack.c.0.s8 %v2190
        %v2192 = vlaneseq
        %v2193 = vshrl.u32 %v2192, 7
        %v2194 = vsub.s32 %v2191, %v2193
        %v2195 = vrot.slane %v2188, %v2194
        %v2197 = vlaneseq
        %vm2198 = vcmp.ge.s32.totalorder %v2197, 0
        %vm2199 = vcmp.lt.s32.totalorder %v2197, 256
        %vm2200 = vmand %vm2198, %vm2199
        %2201 = vst.msk [vmem:[%s212] ss:$8 sm:$0x3] %vm2200, %v2195
        %2202 = vst.msk [vmem:[%s212] ss:$8 sm:$0x0] %vm2200, %v2195
        %v2203 = vlaneseq
        %v2204 = vshrl.u32 %v2203, 7
        %v2205 = vsub.s32 1, %v2204
        %v2206 = vrot.slane %v524, %v2205
        %v2207 = vlaneseq
        %v2208 = vshrl.u32 %v2207, 7
        %v2209 = vsub.s32 1, %v2208
        %v2210 = vrot.slane %v525, %v2209
        %v2211 = vsub.s32 %v527, %v2206
        %v2212 = vsub.s32 %v527, %v2210
        %v2213 = vsub.s32 %v528, %v2206
        %v2214 = vsub.s32 %v528, %v2210
        %vm2215 = vcmp.eq.s32.totalorder %v2211, 0
        %vm2216 = vcmp.eq.s32.totalorder %v2212, 0
        %vm2217 = vcmp.eq.s32.totalorder %v2213, 0
        %vm2218 = vcmp.eq.s32.totalorder %v2214, 0
        %vm2219 = vcmp.eq.s32.totalorder %v2211, 1
        %vm2220 = vcmp.eq.s32.totalorder %v2212, 1
        %vm2221 = vcmp.eq.s32.totalorder %v2213, 1
        %vm2222 = vcmp.eq.s32.totalorder %v2214, 1
        %v2223 = vlaneseq
        %v2224 = vshrl.u32 %v2223, 7
        %v2225 = vsub.s32 1, %v2224
        %v2226 = vrot.slane %v520, %v2225
        %v2227 = vlaneseq
        %v2228 = vshrl.u32 %v2227, 7
        %v2229 = vsub.s32 1, %v2228
        %v2230 = vrot.slane %v521, %v2229
        %v2231 = vsel %vm2219, %v2226, 0.0
        %v2232 = vsel %vm2220, %v2230, 0.0
        %v2233 = vsel %vm2221, %v2226, 0.0
        %v2234 = vsel %vm2222, %v2230, 0.0
        %v2235 = vlaneseq
        %v2236 = vshrl.u32 %v2235, 7
        %v2237 = vsub.s32 1, %v2236
        %v2238 = vrot.slane %v2131, %v2237
        %v2239 = vlaneseq
        %v2240 = vshrl.u32 %v2239, 7
        %v2241 = vsub.s32 1, %v2240
        %v2242 = vrot.slane %v2132, %v2241
        %v2243 = vsel %vm2215, %v2238, %v2231
        %v2244 = vsel %vm2216, %v2242, %v2232
        %v2245 = vsel %vm2217, %v2238, %v2233
        %v2246 = vsel %vm2218, %v2242, %v2234
        %v2247 = vmul.f32 %v1849, %v2243
        %v2248 = vmul.f32 %v1851, %v2244
        %v2249 = vmul.f32 %v1853, %v2245
        %v2250 = vmul.f32 %v1855, %v2246
        %v2251 = vadd.f32 %v2247, %v2249
        %v2252 = vrot.slane %v2251, 4
        %v2253 = vadd.f32 %v2251, %v2252
        %v2254 = vrot.slane %v2253, 2
        %v2255 = vadd.f32 %v2253, %v2254
        %v2256 = vrot.slane %v2255, 1
        %v2257 = vadd.f32 %v2255, %v2256
        %v2258 = vadd.f32 %v2248, %v2250
        %v2259 = vrot.slane %v2258, 4
        %v2260 = vadd.f32 %v2258, %v2259
        %v2261 = vrot.slane %v2260, 2
        %v2262 = vadd.f32 %v2260, %v2261
        %v2263 = vrot.slane %v2262, 1
        %v2264 = vadd.f32 %v2262, %v2263
        %v2267 = vcombine.low %v2257, %v2264
        %v2269 = vunpack.c.l.s4 1966171168
        %v2270 = vunpack.c.0.s8 %v2269
        %v2271 = vlaneseq
        %v2272 = vshrl.u32 %v2271, 7
        %v2273 = vsub.s32 %v2270, %v2272
        %v2274 = vrot.slane %v2267, %v2273
        %v2276 = vunpack.c.l.s4 1966171168
        %v2277 = vunpack.c.0.s8 %v2276
        %v2278 = vlaneseq
        %v2279 = vshrl.u32 %v2278, 7
        %v2280 = vsub.s32 %v2277, %v2279
        %v2281 = vrot.slane %v2274, %v2280
        %s2283 = scalar_lea.vmem %s212, 1 [#allocation9]
        %2284 = vst.msk [vmem:[%s2283] ss:$8 sm:$0x3] %vm2200, %v2281
        %2285 = vst.msk [vmem:[%s2283] ss:$8 sm:$0x0] %vm2200, %v2281
        %v2286 = vlaneseq
        %v2287 = vshrl.u32 %v2286, 7
        %v2288 = vsub.s32 2, %v2287
        %v2289 = vrot.slane %v524, %v2288
        %v2290 = vlaneseq
        %v2291 = vshrl.u32 %v2290, 7
        %v2292 = vsub.s32 2, %v2291
        %v2293 = vrot.slane %v525, %v2292
        %v2294 = vsub.s32 %v527, %v2289
        %v2295 = vsub.s32 %v527, %v2293
        %v2296 = vsub.s32 %v528, %v2289
        %v2297 = vsub.s32 %v528, %v2293
        %vm2298 = vcmp.eq.s32.totalorder %v2294, 0
        %vm2299 = vcmp.eq.s32.totalorder %v2295, 0
        %vm2300 = vcmp.eq.s32.totalorder %v2296, 0
        %vm2301 = vcmp.eq.s32.totalorder %v2297, 0
        %vm2302 = vcmp.eq.s32.totalorder %v2294, 1
        %vm2303 = vcmp.eq.s32.totalorder %v2295, 1
        %vm2304 = vcmp.eq.s32.totalorder %v2296, 1
        %vm2305 = vcmp.eq.s32.totalorder %v2297, 1
        %v2306 = vlaneseq
        %v2307 = vshrl.u32 %v2306, 7
        %v2308 = vsub.s32 2, %v2307
        %v2309 = vrot.slane %v520, %v2308
        %v2310 = vlaneseq
        %v2311 = vshrl.u32 %v2310, 7
        %v2312 = vsub.s32 2, %v2311
        %v2313 = vrot.slane %v521, %v2312
        %v2314 = vsel %vm2302, %v2309, 0.0
        %v2315 = vsel %vm2303, %v2313, 0.0
        %v2316 = vsel %vm2304, %v2309, 0.0
        %v2317 = vsel %vm2305, %v2313, 0.0
        %v2318 = vlaneseq
        %v2319 = vshrl.u32 %v2318, 7
        %v2320 = vsub.s32 2, %v2319
        %v2321 = vrot.slane %v2131, %v2320
        %v2322 = vlaneseq
        %v2323 = vshrl.u32 %v2322, 7
        %v2324 = vsub.s32 2, %v2323
        %v2325 = vrot.slane %v2132, %v2324
        %v2326 = vsel %vm2298, %v2321, %v2314
        %v2327 = vsel %vm2299, %v2325, %v2315
        %v2328 = vsel %vm2300, %v2321, %v2316
        %v2329 = vsel %vm2301, %v2325, %v2317
        %v2330 = vmul.f32 %v1892, %v2326
        %v2331 = vmul.f32 %v1894, %v2327
        %v2332 = vmul.f32 %v1896, %v2328
        %v2333 = vmul.f32 %v1898, %v2329
        %v2334 = vadd.f32 %v2330, %v2332
        %v2335 = vrot.slane %v2334, 4
        %v2336 = vadd.f32 %v2334, %v2335
        %v2337 = vrot.slane %v2336, 2
        %v2338 = vadd.f32 %v2336, %v2337
        %v2339 = vrot.slane %v2338, 1
        %v2340 = vadd.f32 %v2338, %v2339
        %v2341 = vadd.f32 %v2331, %v2333
        %v2342 = vrot.slane %v2341, 4
        %v2343 = vadd.f32 %v2341, %v2342
        %v2344 = vrot.slane %v2343, 2
        %v2345 = vadd.f32 %v2343, %v2344
        %v2346 = vrot.slane %v2345, 1
        %v2347 = vadd.f32 %v2345, %v2346
        %v2350 = vcombine.low %v2340, %v2347
        %v2352 = vunpack.c.l.s4 1966171168
        %v2353 = vunpack.c.0.s8 %v2352
        %v2354 = vlaneseq
        %v2355 = vshrl.u32 %v2354, 7
        %v2356 = vsub.s32 %v2353, %v2355
        %v2357 = vrot.slane %v2350, %v2356
        %v2359 = vunpack.c.l.s4 1966171168
        %v2360 = vunpack.c.0.s8 %v2359
        %v2361 = vlaneseq
        %v2362 = vshrl.u32 %v2361, 7
        %v2363 = vsub.s32 %v2360, %v2362
        %v2364 = vrot.slane %v2357, %v2363
        %s2366 = scalar_lea.vmem %s212, 2 [#allocation9]
        %2367 = vst.msk [vmem:[%s2366] ss:$8 sm:$0x3] %vm2200, %v2364
        %2368 = vst.msk [vmem:[%s2366] ss:$8 sm:$0x0] %vm2200, %v2364
        %v2369 = vlaneseq
        %v2370 = vshrl.u32 %v2369, 7
        %v2371 = vsub.s32 3, %v2370
        %v2372 = vrot.slane %v524, %v2371
        %v2373 = vlaneseq
        %v2374 = vshrl.u32 %v2373, 7
        %v2375 = vsub.s32 3, %v2374
        %v2376 = vrot.slane %v525, %v2375
        %v2377 = vsub.s32 %v527, %v2372
        %v2378 = vsub.s32 %v527, %v2376
        %v2379 = vsub.s32 %v528, %v2372
        %v2380 = vsub.s32 %v528, %v2376
        %vm2381 = vcmp.eq.s32.totalorder %v2377, 0
        %vm2382 = vcmp.eq.s32.totalorder %v2378, 0
        %vm2383 = vcmp.eq.s32.totalorder %v2379, 0
        %vm2384 = vcmp.eq.s32.totalorder %v2380, 0
        %vm2385 = vcmp.eq.s32.totalorder %v2377, 1
        %vm2386 = vcmp.eq.s32.totalorder %v2378, 1
        %vm2387 = vcmp.eq.s32.totalorder %v2379, 1
        %vm2388 = vcmp.eq.s32.totalorder %v2380, 1
        %v2389 = vlaneseq
        %v2390 = vshrl.u32 %v2389, 7
        %v2391 = vsub.s32 3, %v2390
        %v2392 = vrot.slane %v520, %v2391
        %v2393 = vlaneseq
        %v2394 = vshrl.u32 %v2393, 7
        %v2395 = vsub.s32 3, %v2394
        %v2396 = vrot.slane %v521, %v2395
        %v2397 = vsel %vm2385, %v2392, 0.0
        %v2398 = vsel %vm2386, %v2396, 0.0
        %v2399 = vsel %vm2387, %v2392, 0.0
        %v2400 = vsel %vm2388, %v2396, 0.0
        %v2401 = vlaneseq
        %v2402 = vshrl.u32 %v2401, 7
        %v2403 = vsub.s32 3, %v2402
        %v2404 = vrot.slane %v2131, %v2403
        %v2405 = vlaneseq
        %v2406 = vshrl.u32 %v2405, 7
        %v2407 = vsub.s32 3, %v2406
        %v2408 = vrot.slane %v2132, %v2407
        %v2409 = vsel %vm2381, %v2404, %v2397
        %v2410 = vsel %vm2382, %v2408, %v2398
        %v2411 = vsel %vm2383, %v2404, %v2399
        %v2412 = vsel %vm2384, %v2408, %v2400
        %v2413 = vmul.f32 %v1935, %v2409
        %v2414 = vmul.f32 %v1937, %v2410
        %v2415 = vmul.f32 %v1939, %v2411
        %v2416 = vmul.f32 %v1941, %v2412
        %v2417 = vadd.f32 %v2413, %v2415
        %v2418 = vrot.slane %v2417, 4
        %v2419 = vadd.f32 %v2417, %v2418
        %v2420 = vrot.slane %v2419, 2
        %v2421 = vadd.f32 %v2419, %v2420
        %v2422 = vrot.slane %v2421, 1
        %v2423 = vadd.f32 %v2421, %v2422
        %v2424 = vadd.f32 %v2414, %v2416
        %v2425 = vrot.slane %v2424, 4
        %v2426 = vadd.f32 %v2424, %v2425
        %v2427 = vrot.slane %v2426, 2
        %v2428 = vadd.f32 %v2426, %v2427
        %v2429 = vrot.slane %v2428, 1
        %v2430 = vadd.f32 %v2428, %v2429
        %v2433 = vcombine.low %v2423, %v2430
        %v2435 = vunpack.c.l.s4 1966171168
        %v2436 = vunpack.c.0.s8 %v2435
        %v2437 = vlaneseq
        %v2438 = vshrl.u32 %v2437, 7
        %v2439 = vsub.s32 %v2436, %v2438
        %v2440 = vrot.slane %v2433, %v2439
        %v2442 = vunpack.c.l.s4 1966171168
        %v2443 = vunpack.c.0.s8 %v2442
        %v2444 = vlaneseq
        %v2445 = vshrl.u32 %v2444, 7
        %v2446 = vsub.s32 %v2443, %v2445
        %v2447 = vrot.slane %v2440, %v2446
        %s2449 = scalar_lea.vmem %s212, 3 [#allocation9]
        %2450 = vst.msk [vmem:[%s2449] ss:$8 sm:$0x3] %vm2200, %v2447
        %2451 = vst.msk [vmem:[%s2449] ss:$8 sm:$0x0] %vm2200, %v2447
        %v2452 = vlaneseq
        %v2453 = vshrl.u32 %v2452, 7
        %v2454 = vsub.s32 4, %v2453
        %v2455 = vrot.slane %v524, %v2454
        %v2456 = vlaneseq
        %v2457 = vshrl.u32 %v2456, 7
        %v2458 = vsub.s32 4, %v2457
        %v2459 = vrot.slane %v525, %v2458
        %v2460 = vsub.s32 %v527, %v2455
        %v2461 = vsub.s32 %v527, %v2459
        %v2462 = vsub.s32 %v528, %v2455
        %v2463 = vsub.s32 %v528, %v2459
        %vm2464 = vcmp.eq.s32.totalorder %v2460, 0
        %vm2465 = vcmp.eq.s32.totalorder %v2461, 0
        %vm2466 = vcmp.eq.s32.totalorder %v2462, 0
        %vm2467 = vcmp.eq.s32.totalorder %v2463, 0
        %vm2468 = vcmp.eq.s32.totalorder %v2460, 1
        %vm2469 = vcmp.eq.s32.totalorder %v2461, 1
        %vm2470 = vcmp.eq.s32.totalorder %v2462, 1
        %vm2471 = vcmp.eq.s32.totalorder %v2463, 1
        %v2472 = vlaneseq
        %v2473 = vshrl.u32 %v2472, 7
        %v2474 = vsub.s32 4, %v2473
        %v2475 = vrot.slane %v520, %v2474
        %v2476 = vlaneseq
        %v2477 = vshrl.u32 %v2476, 7
        %v2478 = vsub.s32 4, %v2477
        %v2479 = vrot.slane %v521, %v2478
        %v2480 = vsel %vm2468, %v2475, 0.0
        %v2481 = vsel %vm2469, %v2479, 0.0
        %v2482 = vsel %vm2470, %v2475, 0.0
        %v2483 = vsel %vm2471, %v2479, 0.0
        %v2484 = vlaneseq
        %v2485 = vshrl.u32 %v2484, 7
        %v2486 = vsub.s32 4, %v2485
        %v2487 = vrot.slane %v2131, %v2486
        %v2488 = vlaneseq
        %v2489 = vshrl.u32 %v2488, 7
        %v2490 = vsub.s32 4, %v2489
        %v2491 = vrot.slane %v2132, %v2490
        %v2492 = vsel %vm2464, %v2487, %v2480
        %v2493 = vsel %vm2465, %v2491, %v2481
        %v2494 = vsel %vm2466, %v2487, %v2482
        %v2495 = vsel %vm2467, %v2491, %v2483
        %v2496 = vmul.f32 %v1978, %v2492
        %v2497 = vmul.f32 %v1980, %v2493
        %v2498 = vmul.f32 %v1982, %v2494
        %v2499 = vmul.f32 %v1984, %v2495
        %v2500 = vadd.f32 %v2496, %v2498
        %v2501 = vrot.slane %v2500, 4
        %v2502 = vadd.f32 %v2500, %v2501
        %v2503 = vrot.slane %v2502, 2
        %v2504 = vadd.f32 %v2502, %v2503
        %v2505 = vrot.slane %v2504, 1
        %v2506 = vadd.f32 %v2504, %v2505
        %v2507 = vadd.f32 %v2497, %v2499
        %v2508 = vrot.slane %v2507, 4
        %v2509 = vadd.f32 %v2507, %v2508
        %v2510 = vrot.slane %v2509, 2
        %v2511 = vadd.f32 %v2509, %v2510
        %v2512 = vrot.slane %v2511, 1
        %v2513 = vadd.f32 %v2511, %v2512
        %v2516 = vcombine.low %v2506, %v2513
        %v2518 = vunpack.c.l.s4 1966171168
        %v2519 = vunpack.c.0.s8 %v2518
        %v2520 = vlaneseq
        %v2521 = vshrl.u32 %v2520, 7
        %v2522 = vsub.s32 %v2519, %v2521
        %v2523 = vrot.slane %v2516, %v2522
        %v2525 = vunpack.c.l.s4 1966171168
        %v2526 = vunpack.c.0.s8 %v2525
        %v2527 = vlaneseq
        %v2528 = vshrl.u32 %v2527, 7
        %v2529 = vsub.s32 %v2526, %v2528
        %v2530 = vrot.slane %v2523, %v2529
        %s2532 = scalar_lea.vmem %s212, 4 [#allocation9]
        %2533 = vst.msk [vmem:[%s2532] ss:$8 sm:$0x3] %vm2200, %v2530
        %2534 = vst.msk [vmem:[%s2532] ss:$8 sm:$0x0] %vm2200, %v2530
        %v2535 = vlaneseq
        %v2536 = vshrl.u32 %v2535, 7
        %v2537 = vsub.s32 5, %v2536
        %v2538 = vrot.slane %v524, %v2537
        %v2539 = vlaneseq
        %v2540 = vshrl.u32 %v2539, 7
        %v2541 = vsub.s32 5, %v2540
        %v2542 = vrot.slane %v525, %v2541
        %v2543 = vsub.s32 %v527, %v2538
        %v2544 = vsub.s32 %v527, %v2542
        %v2545 = vsub.s32 %v528, %v2538
        %v2546 = vsub.s32 %v528, %v2542
        %vm2547 = vcmp.eq.s32.totalorder %v2543, 0
        %vm2548 = vcmp.eq.s32.totalorder %v2544, 0
        %vm2549 = vcmp.eq.s32.totalorder %v2545, 0
        %vm2550 = vcmp.eq.s32.totalorder %v2546, 0
        %vm2551 = vcmp.eq.s32.totalorder %v2543, 1
        %vm2552 = vcmp.eq.s32.totalorder %v2544, 1
        %vm2553 = vcmp.eq.s32.totalorder %v2545, 1
        %vm2554 = vcmp.eq.s32.totalorder %v2546, 1
        %v2555 = vlaneseq
        %v2556 = vshrl.u32 %v2555, 7
        %v2557 = vsub.s32 5, %v2556
        %v2558 = vrot.slane %v520, %v2557
        %v2559 = vlaneseq
        %v2560 = vshrl.u32 %v2559, 7
        %v2561 = vsub.s32 5, %v2560
        %v2562 = vrot.slane %v521, %v2561
        %v2563 = vsel %vm2551, %v2558, 0.0
        %v2564 = vsel %vm2552, %v2562, 0.0
        %v2565 = vsel %vm2553, %v2558, 0.0
        %v2566 = vsel %vm2554, %v2562, 0.0
        %v2567 = vlaneseq
        %v2568 = vshrl.u32 %v2567, 7
        %v2569 = vsub.s32 5, %v2568
        %v2570 = vrot.slane %v2131, %v2569
        %v2571 = vlaneseq
        %v2572 = vshrl.u32 %v2571, 7
        %v2573 = vsub.s32 5, %v2572
        %v2574 = vrot.slane %v2132, %v2573
        %v2575 = vsel %vm2547, %v2570, %v2563
        %v2576 = vsel %vm2548, %v2574, %v2564
        %v2577 = vsel %vm2549, %v2570, %v2565
        %v2578 = vsel %vm2550, %v2574, %v2566
        %v2579 = vmul.f32 %v2021, %v2575
        %v2580 = vmul.f32 %v2023, %v2576
        %v2581 = vmul.f32 %v2025, %v2577
        %v2582 = vmul.f32 %v2027, %v2578
        %v2583 = vadd.f32 %v2579, %v2581
        %v2584 = vrot.slane %v2583, 4
        %v2585 = vadd.f32 %v2583, %v2584
        %v2586 = vrot.slane %v2585, 2
        %v2587 = vadd.f32 %v2585, %v2586
        %v2588 = vrot.slane %v2587, 1
        %v2589 = vadd.f32 %v2587, %v2588
        %v2590 = vadd.f32 %v2580, %v2582
        %v2591 = vrot.slane %v2590, 4
        %v2592 = vadd.f32 %v2590, %v2591
        %v2593 = vrot.slane %v2592, 2
        %v2594 = vadd.f32 %v2592, %v2593
        %v2595 = vrot.slane %v2594, 1
        %v2596 = vadd.f32 %v2594, %v2595
        %v2599 = vcombine.low %v2589, %v2596
        %v2601 = vunpack.c.l.s4 1966171168
        %v2602 = vunpack.c.0.s8 %v2601
        %v2603 = vlaneseq
        %v2604 = vshrl.u32 %v2603, 7
        %v2605 = vsub.s32 %v2602, %v2604
        %v2606 = vrot.slane %v2599, %v2605
        %v2608 = vunpack.c.l.s4 1966171168
        %v2609 = vunpack.c.0.s8 %v2608
        %v2610 = vlaneseq
        %v2611 = vshrl.u32 %v2610, 7
        %v2612 = vsub.s32 %v2609, %v2611
        %v2613 = vrot.slane %v2606, %v2612
        %s2615 = scalar_lea.vmem %s212, 5 [#allocation9]
        %2616 = vst.msk [vmem:[%s2615] ss:$8 sm:$0x3] %vm2200, %v2613
        %2617 = vst.msk [vmem:[%s2615] ss:$8 sm:$0x0] %vm2200, %v2613
        %v2618 = vlaneseq
        %v2619 = vshrl.u32 %v2618, 7
        %v2620 = vsub.s32 6, %v2619
        %v2621 = vrot.slane %v524, %v2620
        %v2622 = vlaneseq
        %v2623 = vshrl.u32 %v2622, 7
        %v2624 = vsub.s32 6, %v2623
        %v2625 = vrot.slane %v525, %v2624
        %v2626 = vsub.s32 %v527, %v2621
        %v2627 = vsub.s32 %v527, %v2625
        %v2628 = vsub.s32 %v528, %v2621
        %v2629 = vsub.s32 %v528, %v2625
        %vm2630 = vcmp.eq.s32.totalorder %v2626, 0
        %vm2631 = vcmp.eq.s32.totalorder %v2627, 0
        %vm2632 = vcmp.eq.s32.totalorder %v2628, 0
        %vm2633 = vcmp.eq.s32.totalorder %v2629, 0
        %vm2634 = vcmp.eq.s32.totalorder %v2626, 1
        %vm2635 = vcmp.eq.s32.totalorder %v2627, 1
        %vm2636 = vcmp.eq.s32.totalorder %v2628, 1
        %vm2637 = vcmp.eq.s32.totalorder %v2629, 1
        %v2638 = vlaneseq
        %v2639 = vshrl.u32 %v2638, 7
        %v2640 = vsub.s32 6, %v2639
        %v2641 = vrot.slane %v520, %v2640
        %v2642 = vlaneseq
        %v2643 = vshrl.u32 %v2642, 7
        %v2644 = vsub.s32 6, %v2643
        %v2645 = vrot.slane %v521, %v2644
        %v2646 = vsel %vm2634, %v2641, 0.0
        %v2647 = vsel %vm2635, %v2645, 0.0
        %v2648 = vsel %vm2636, %v2641, 0.0
        %v2649 = vsel %vm2637, %v2645, 0.0
        %v2650 = vlaneseq
        %v2651 = vshrl.u32 %v2650, 7
        %v2652 = vsub.s32 6, %v2651
        %v2653 = vrot.slane %v2131, %v2652
        %v2654 = vlaneseq
        %v2655 = vshrl.u32 %v2654, 7
        %v2656 = vsub.s32 6, %v2655
        %v2657 = vrot.slane %v2132, %v2656
        %v2658 = vsel %vm2630, %v2653, %v2646
        %v2659 = vsel %vm2631, %v2657, %v2647
        %v2660 = vsel %vm2632, %v2653, %v2648
        %v2661 = vsel %vm2633, %v2657, %v2649
        %v2662 = vmul.f32 %v2064, %v2658
        %v2663 = vmul.f32 %v2066, %v2659
        %v2664 = vmul.f32 %v2068, %v2660
        %v2665 = vmul.f32 %v2070, %v2661
        %v2666 = vadd.f32 %v2662, %v2664
        %v2667 = vrot.slane %v2666, 4
        %v2668 = vadd.f32 %v2666, %v2667
        %v2669 = vrot.slane %v2668, 2
        %v2670 = vadd.f32 %v2668, %v2669
        %v2671 = vrot.slane %v2670, 1
        %v2672 = vadd.f32 %v2670, %v2671
        %v2673 = vadd.f32 %v2663, %v2665
        %v2674 = vrot.slane %v2673, 4
        %v2675 = vadd.f32 %v2673, %v2674
        %v2676 = vrot.slane %v2675, 2
        %v2677 = vadd.f32 %v2675, %v2676
        %v2678 = vrot.slane %v2677, 1
        %v2679 = vadd.f32 %v2677, %v2678
        %v2682 = vcombine.low %v2672, %v2679
        %v2684 = vunpack.c.l.s4 1966171168
        %v2685 = vunpack.c.0.s8 %v2684
        %v2686 = vlaneseq
        %v2687 = vshrl.u32 %v2686, 7
        %v2688 = vsub.s32 %v2685, %v2687
        %v2689 = vrot.slane %v2682, %v2688
        %v2691 = vunpack.c.l.s4 1966171168
        %v2692 = vunpack.c.0.s8 %v2691
        %v2693 = vlaneseq
        %v2694 = vshrl.u32 %v2693, 7
        %v2695 = vsub.s32 %v2692, %v2694
        %v2696 = vrot.slane %v2689, %v2695
        %s2698 = scalar_lea.vmem %s212, 6 [#allocation9]
        %2699 = vst.msk [vmem:[%s2698] ss:$8 sm:$0x3] %vm2200, %v2696
        %2700 = vst.msk [vmem:[%s2698] ss:$8 sm:$0x0] %vm2200, %v2696
        %v2701 = vlaneseq
        %v2702 = vshrl.u32 %v2701, 7
        %v2703 = vsub.s32 7, %v2702
        %v2704 = vrot.slane %v524, %v2703
        %v2705 = vlaneseq
        %v2706 = vshrl.u32 %v2705, 7
        %v2707 = vsub.s32 7, %v2706
        %v2708 = vrot.slane %v525, %v2707
        %v2709 = vsub.s32 %v527, %v2704
        %v2710 = vsub.s32 %v527, %v2708
        %v2711 = vsub.s32 %v528, %v2704
        %v2712 = vsub.s32 %v528, %v2708
        %vm2713 = vcmp.eq.s32.totalorder %v2709, 0
        %vm2714 = vcmp.eq.s32.totalorder %v2710, 0
        %vm2715 = vcmp.eq.s32.totalorder %v2711, 0
        %vm2716 = vcmp.eq.s32.totalorder %v2712, 0
        %vm2717 = vcmp.eq.s32.totalorder %v2709, 1
        %vm2718 = vcmp.eq.s32.totalorder %v2710, 1
        %vm2719 = vcmp.eq.s32.totalorder %v2711, 1
        %vm2720 = vcmp.eq.s32.totalorder %v2712, 1
        %v2721 = vlaneseq
        %v2722 = vshrl.u32 %v2721, 7
        %v2723 = vsub.s32 7, %v2722
        %v2724 = vrot.slane %v520, %v2723
        %v2725 = vlaneseq
        %v2726 = vshrl.u32 %v2725, 7
        %v2727 = vsub.s32 7, %v2726
        %v2728 = vrot.slane %v521, %v2727
        %v2729 = vsel %vm2717, %v2724, 0.0
        %v2730 = vsel %vm2718, %v2728, 0.0
        %v2731 = vsel %vm2719, %v2724, 0.0
        %v2732 = vsel %vm2720, %v2728, 0.0
        %v2733 = vlaneseq
        %v2734 = vshrl.u32 %v2733, 7
        %v2735 = vsub.s32 7, %v2734
        %v2736 = vrot.slane %v2131, %v2735
        %v2737 = vlaneseq
        %v2738 = vshrl.u32 %v2737, 7
        %v2739 = vsub.s32 7, %v2738
        %v2740 = vrot.slane %v2132, %v2739
        %v2741 = vsel %vm2713, %v2736, %v2729
        %v2742 = vsel %vm2714, %v2740, %v2730
        %v2743 = vsel %vm2715, %v2736, %v2731
        %v2744 = vsel %vm2716, %v2740, %v2732
        %v2745 = vmul.f32 %v2107, %v2741
        %v2746 = vmul.f32 %v2109, %v2742
        %v2747 = vmul.f32 %v2111, %v2743
        %v2748 = vmul.f32 %v2113, %v2744
        %v2749 = vadd.f32 %v2745, %v2747
        %v2750 = vrot.slane %v2749, 4
        %v2751 = vadd.f32 %v2749, %v2750
        %v2752 = vrot.slane %v2751, 2
        %v2753 = vadd.f32 %v2751, %v2752
        %v2754 = vrot.slane %v2753, 1
        %v2755 = vadd.f32 %v2753, %v2754
        %v2756 = vadd.f32 %v2746, %v2748
        %v2757 = vrot.slane %v2756, 4
        %v2758 = vadd.f32 %v2756, %v2757
        %v2759 = vrot.slane %v2758, 2
        %v2760 = vadd.f32 %v2758, %v2759
        %v2761 = vrot.slane %v2760, 1
        %v2762 = vadd.f32 %v2760, %v2761
        %v2765 = vcombine.low %v2755, %v2762
        %v2767 = vunpack.c.l.s4 1966171168
        %v2768 = vunpack.c.0.s8 %v2767
        %v2769 = vlaneseq
        %v2770 = vshrl.u32 %v2769, 7
        %v2771 = vsub.s32 %v2768, %v2770
        %v2772 = vrot.slane %v2765, %v2771
        %v2774 = vunpack.c.l.s4 1966171168
        %v2775 = vunpack.c.0.s8 %v2774
        %v2776 = vlaneseq
        %v2777 = vshrl.u32 %v2776, 7
        %v2778 = vsub.s32 %v2775, %v2777
        %v2779 = vrot.slane %v2772, %v2778
        %s2781 = scalar_lea.vmem %s212, 7 [#allocation9]
        %2782 = vst.msk [vmem:[%s2781] ss:$8 sm:$0x3] %vm2200, %v2779
        %2783 = vst.msk [vmem:[%s2781] ss:$8 sm:$0x0] %vm2200, %v2779
        %s2784 = sand.u32 %s96, 1
        %s2785 = scalar_lea.sflag [#allocation6], %s2784
        %s2786 = sand.u32 %s96, 1
        %s2787 = smul.addr %s2786, 16
        %s2788 = scalar_lea.vmem [#allocation9], %s2787
        // Predicated region
        $region41: #{tpu_custom_call.1} parent=27 // pred_check
          %p2789 = pneg %p106
        $region42: #{tpu_custom_call.1} parent=27 // pred_check_branch
          %2791 = sbr.rel (%p2789) target = $region44
        $region43: #{tpu_custom_call.1} parent=27 // pred_region
          %s2792 = smul.u32 2, %s27
          %s2794 = ssub.s32 256, 256
          %2795 = vsyncadd %s2785, %s2794
          %s2796 = smul.addr %s26, 2
          %s2797 = sadd.s32 %s2792, %s2796
          %s2798 = smul.addr %s2797, 128
          %s2799 = scalar_lea.hbm %s2, %s2798
          %s2801 = sshll.u32 %s2788, 4
          %s2802 = int_to_ptr.vmem [resolvable:$true] %s2801
          %2804 = dma.vmem_to_hbm [thread:$0]  %s2802, 256, %s2799, %s2785
        $region44: #{tpu_custom_call.1} parent=27 // pred_fallthru
          _
      $region28: #{tpu_custom_call.1} parent=5 // pred_fallthru
        _
      %p2805 = scmp.le.s32.totalorder 2, %s17
      // Predicated region
      $region45: #{tpu_custom_call.1} parent=5 // pred_check
        %p2806 = pneg %p2805
      $region46: #{tpu_custom_call.1} parent=5 // pred_check_branch
        %2808 = sbr.rel (%p2806) target = $region48
      $region47: #{tpu_custom_call.1} parent=5 // pred_region
        %s2809 = ssub.s32 %s17, 2
        // Predicated region
        $region49: #{tpu_custom_call.1} parent=47 // pred_check
          %p2810 = pneg %p112
        $region50: #{tpu_custom_call.1} parent=47 // pred_check_branch
          %2812 = sbr.rel (%p2810) target = $region52
        $region51: #{tpu_custom_call.1} parent=47 // pred_region
          %s2813 = sand.u32 %s97, 1
          %s2814 = scalar_lea.sflag [#allocation6], %s2813
          %s2815 = sand.u32 %s97, 1
          %s2816 = smul.addr %s2815, 16
          %s2817 = scalar_lea.vmem [#allocation9], %s2816
          %2818 = dma.done %s2814, 256
        $region52: #{tpu_custom_call.1} parent=47 // pred_fallthru
          _
      $region48: #{tpu_custom_call.1} parent=5 // pred_fallthru
        _
    $region6: #{tpu_custom_call.1} parent=1 // loop_footer
      %s21 = sadd.s32 1, %s17
    $region7: #{tpu_custom_call.1} parent=1 // loop_footer_branch
      %16 = sbr.rel target = $region3
    $region8: #{tpu_custom_call.1} parent=1 // loop_exit
      _
    %2819 = vsyncpa [#allocation5], 1
    %s2820 = scalar_lea.sflag [#allocation5], 1
    %2821 = vsyncpa %s2820, 1
    %2822 = vsyncpa [#allocation8], 1
    %s2823 = scalar_lea.sflag [#allocation8], 1
    %2824 = vsyncpa %s2823, 1
    %2825 = vsyncpa [#allocation6], 1
    %s2826 = scalar_lea.sflag [#allocation6], 1
    %2827 = vsyncpa %s2826, 1

</llo_original>
